<compile_context>
chip_gen: v7x
topology: tpu7x:2x2x1
jax: 0.10.0
libtpu: 0.0.40
codegen_flags: <defaults>
</compile_context>

<pallas_src>
import math

import jax
import jax.numpy as jnp
import numpy as np
from jax import lax
from jax.experimental import pallas as pl
from jax.experimental.pallas import tpu as pltpu

LOG_STD_MAX = 2.0
LOG_STD_MIN = -5.0


def _round_up(x, m):
    return ((x + m - 1) // m) * m


def lstm_policy_kernel(gin_ref, whh0_ref, wih1_ref, whh1_ref, b1_ref,
                       wfc_ref, bfc_ref, h00_ref, c00_ref, h10_ref, c10_ref,
                       mean_ref, hn0_ref, cn0_ref, hn1_ref, cn1_ref):
    """2-layer LSTM recurrence (wavefront over layers) + fc_mean + sigmoid.

    Shapes (all padded):
      gin_ref  : (T, Bp, 4*Hp)  mm   hoisted layer-0 input projection (+ b0)
      whh0_ref : (Hp, 4*Hp)     mm   layer-0 recurrent weights
      wih1_ref : (Hp, 4*Hp)     mm   layer-1 input weights
      whh1_ref : (Hp, 4*Hp)     mm   layer-1 recurrent weights
      wfc_ref  : (Hp, Ap)       mm   fc_mean weights (lane-padded)
      b1/bfc   : (1, 4*Hp)/(1, Ap)  f32 combined biases
      h/c refs : (Bp, Hp)       f32  per-layer initial / final states

    Padded-lane invariant: padded gate columns see zero weights AND zero bias,
    so i=f=o=0.5, g=0 there and padded c/h lanes stay exactly 0 (c' = 0.5*c).
    Any future nonzero bias padding would silently corrupt layer-1's input.
    """
    T = gin_ref.shape[0]
    Bp, Hp = hn0_ref.shape
    mm = whh0_ref.dtype  # matmul operand dtype (bf16 or f32)

    whh0 = whh0_ref[...]
    wih1 = wih1_ref[...]
    whh1 = whh1_ref[...]
    b1 = b1_ref[...]

    def gate_update(gates, c):
        # PyTorch gate order i, f, g, o.  i|f done as one contiguous 2*Hp EUP
        # slab; every slab boundary is a multiple of 128 lanes.
        i_f = jax.nn.sigmoid(gates[:, :2 * Hp])
        g = jnp.tanh(gates[:, 2 * Hp:3 * Hp])
        o = jax.nn.sigmoid(gates[:, 3 * Hp:4 * Hp])
        c_new = i_f[:, Hp:] * c + i_f[:, :Hp] * g
        h_new = o * jnp.tanh(c_new)
        return h_new, c_new

    def layer0(t, h0, c0):
        g0 = (jnp.dot(h0.astype(mm), whh0, preferred_element_type=jnp.float32)
              + gin_ref[t].astype(jnp.float32))
        return gate_update(g0, c0)

    def layer1(h0_out, h1, c1):
        g1 = (jnp.dot(h0_out.astype(mm), wih1,
                      preferred_element_type=jnp.float32)
              + jnp.dot(h1.astype(mm), whh1,
                        preferred_element_type=jnp.float32)
              + b1)
        return gate_update(g1, c1)

    # Prologue: layer-0 at step 0.
    h0, c0 = layer0(0, h00_ref[...], c00_ref[...])
    h1, c1 = h10_ref[...], c10_ref[...]

    def step(t, carry):
        # Wavefront: layer-0 of step t and layer-1 of step t-1 both depend only
        # on the carried h0 (layer-0 output of step t-1) and on h1/c1, so their
        # three MXU pushes are independent and overlap; each layer's gate math
        # hides under the other layer's matmuls.
        h0, c0, h1, c1 = carry
        h0n, c0n = layer0(t, h0, c0)      # layer-0, step t
        h1n, c1n = layer1(h0, h1, c1)     # layer-1, step t-1 (input = h0(t-1))
        return h0n, c0n, h1n, c1n

    trip = T - 1
    h0, c0, h1, c1 = lax.fori_loop(1, T, step, (h0, c0, h1, c1),
                                   unroll=max(1, min(trip, 8)))

    # Epilogue: layer-1 at the last step.
    h1, c1 = layer1(h0, h1, c1)

    hn0_ref[...] = h0
    cn0_ref[...] = c0
    hn1_ref[...] = h1
    cn1_ref[...] = c1

    mean_ref[...] = jax.nn.sigmoid(
        jnp.dot(h1.astype(mm), wfc_ref[...],
                preferred_element_type=jnp.float32)
        + bfc_ref[...])


def lstm_policy_forward(obs, params, hidden_state=None,
                        matmul_dtype=jnp.bfloat16):
    """Returns ((mean, std), (h_n, c_n)) mirroring
    (MultivariateNormal(mean, diag(std)), hidden_state)."""
    if obs.ndim == 2:
        obs = obs[None]  # unsqueeze(0)
    B, T, D = obs.shape
    assert T >= 1, "empty sequence not supported"
    H = params["hidden_dim"]
    L = params["lstm_layers"]
    assert L == 2, "kernel is specialized to 2 LSTM layers"
    A = params["fc_b"].shape[0]

    mm = jnp.dtype(matmul_dtype)
    f32 = jnp.float32

    # vreg-friendly padded sizes
    Bp = _round_up(max(B, 8), 8)     # sublane dimension
    Hp = _round_up(H, 128)           # lane dimension (gate slab width)
    Ap = _round_up(A, 128)           # lane-dense mean output

    if hidden_state is None:
        h0 = jnp.zeros((L, B, H), f32)
        c0 = jnp.zeros((L, B, H), f32)
    else:
        h0, c0 = hidden_state
        h0 = h0.astype(f32)
        c0 = c0.astype(f32)

    # ---- weight re-layout / zero padding (glue, not the hot path) ----------
    def pad_gate_weight(w, in_dim, in_pad):
        # w: PyTorch (4H, in_dim), gate order i,f,g,o -> (in_pad, 4*Hp)
        w4 = w.reshape(4, H, in_dim)
        w4 = jnp.pad(w4, ((0, 0), (0, Hp - H), (0, in_pad - in_dim)))
        return jnp.transpose(w4, (2, 0, 1)).reshape(in_pad, 4 * Hp)

    def pad_gate_bias(b):
        b4 = b.reshape(4, H)
        b4 = jnp.pad(b4, ((0, 0), (0, Hp - H)))
        return b4.reshape(1, 4 * Hp)

    wih0_p = pad_gate_weight(params["w_ih_l0"], D, D)            # (D, 4Hp) f32
    b0_p = pad_gate_bias(params["b_ih_l0"] + params["b_hh_l0"])  # (1, 4Hp) f32
    whh0_p = pad_gate_weight(params["w_hh_l0"], H, Hp).astype(mm)
    wih1_p = pad_gate_weight(params["w_ih_l1"], H, Hp).astype(mm)
    whh1_p = pad_gate_weight(params["w_hh_l1"], H, Hp).astype(mm)
    b1_p = pad_gate_bias(params["b_ih_l1"] + params["b_hh_l1"])
    wfc_p = jnp.pad(params["fc_w"].T,
                    ((0, Hp - H), (0, Ap - A))).astype(mm)
    bfc_p = jnp.pad(params["fc_b"], ((0, Ap - A),)).reshape(1, Ap)

    # ---- hoisted layer-0 input projection: plain XLA GEMM in the wrapper ----
    x = jnp.transpose(obs, (1, 0, 2)).astype(f32)                # (T, B, D)
    x = jnp.pad(x, ((0, 0), (0, Bp - B), (0, 0)))                # (T, Bp, D)
    prec = jax.lax.Precision.HIGHEST if mm == jnp.float32 else None
    gin = jnp.dot(x.reshape(T * Bp, D), wih0_p.astype(mm),
                  precision=prec, preferred_element_type=f32) + b0_p
    gin = gin.astype(mm).reshape(T, Bp, 4 * Hp)

    # ---- activations / state padding ---------------------------------------
    h0p = jnp.pad(h0, ((0, 0), (0, Bp - B), (0, Hp - H)))
    c0p = jnp.pad(c0, ((0, 0), (0, Bp - B), (0, Hp - H)))
    h00, h10 = h0p[0], h0p[1]
    c00, c10 = c0p[0], c0p[1]

    # ---- VMEM budget (single-buffered: no grid => no pipeline buffers) -----
    w_bytes = mm.itemsize
    sub = 16 if w_bytes == 2 else 8                  # sublane tile of mm dtype
    vmem_needed = (
        T * _round_up(Bp, sub) * 4 * Hp * w_bytes    # gin (only T-scaling buf)
        + (whh0_p.size + wih1_p.size + whh1_p.size + wfc_p.size) * w_bytes
        + (b1_p.size + bfc_p.size) * 4
        + 8 * Bp * Hp * 4                            # h/c in + out
        + Bp * Ap * 4)                               # mean
    try:
        vmem_cap = int(pltpu.get_tpu_info().vmem_capacity_bytes)
    except Exception:
        vmem_cap = 64 << 20                          # conservative (v7x) default
    if vmem_needed > (vmem_cap * 4) // 5:
        raise ValueError(
            f"sequence too long for whole-sequence VMEM residency: need "
            f"~{vmem_needed >> 20} MiB, VMEM is {vmem_cap >> 20} MiB. "
            "Chunk the time axis or stream gin from HBM.")
    vmem_limit = int(min(vmem_cap * 0.9, max(16 << 20, vmem_needed * 2)))

    vmem_spec = lambda: pl.BlockSpec(memory_space=pltpu.MemorySpace.VMEM)

    mean_p, hn0, cn0, hn1, cn1 = pl.pallas_call(
        lstm_policy_kernel,
        out_shape=[
            jax.ShapeDtypeStruct((Bp, Ap), f32),   # mean (lane-padded)
            jax.ShapeDtypeStruct((Bp, Hp), f32),   # h_n layer 0
            jax.ShapeDtypeStruct((Bp, Hp), f32),   # c_n layer 0
            jax.ShapeDtypeStruct((Bp, Hp), f32),   # h_n layer 1
            jax.ShapeDtypeStruct((Bp, Hp), f32),   # c_n layer 1
        ],
        in_specs=[vmem_spec() for _ in range(11)],
        out_specs=[vmem_spec() for _ in range(5)],
        # in-place state update: h00->hn0, c00->cn0, h10->hn1, c10->cn1
        input_output_aliases={7: 1, 8: 2, 9: 3, 10: 4},
        compiler_params=pltpu.CompilerParams(vmem_limit_bytes=vmem_limit),
    )(gin, whh0_p, wih1_p, whh1_p, b1_p, wfc_p, bfc_p, h00, c00, h10, c10)

    mean = mean_p[:B, :A]
    hn = jnp.stack([hn0, hn1])[:, :B, :H]
    cn = jnp.stack([cn0, cn1])[:, :B, :H]

    std = jnp.exp(jnp.clip(params["log_std"], LOG_STD_MIN, LOG_STD_MAX))
    return (mean, std), (hn, cn)


def init_params(key, obs_dim, act_dim, hidden_dim=256, lstm_layers=2):
    """Deterministic init matching PyTorch LSTM/Linear param shapes."""
    assert lstm_layers == 2, "this synthetic kernel is specialized to 2 layers"
    bound = 1.0 / math.sqrt(hidden_dim)
    keys = jax.random.split(key, 12)
    u = lambda k, shape: jax.random.uniform(k, shape, jnp.float32, -bound, bound)
    return {
        "w_ih_l0": u(keys[0], (4 * hidden_dim, obs_dim)),
        "w_hh_l0": u(keys[1], (4 * hidden_dim, hidden_dim)),
        "b_ih_l0": u(keys[2], (4 * hidden_dim,)),
        "b_hh_l0": u(keys[3], (4 * hidden_dim,)),
        "w_ih_l1": u(keys[4], (4 * hidden_dim, hidden_dim)),
        "w_hh_l1": u(keys[5], (4 * hidden_dim, hidden_dim)),
        "b_ih_l1": u(keys[6], (4 * hidden_dim,)),
        "b_hh_l1": u(keys[7], (4 * hidden_dim,)),
        "fc_w": u(keys[8], (act_dim, hidden_dim)),
        "fc_b": u(keys[9], (act_dim,)),
        "log_std": jnp.zeros((act_dim,), jnp.float32),
        "hidden_dim": hidden_dim,
        "lstm_layers": lstm_layers,
    }


def reference_forward(obs, params):
    """Pure-JAX f32 reference (mirrors torch.nn.LSTM + fc + sigmoid)."""
    if obs.ndim == 2:
        obs = obs[None]
    B, T, D = obs.shape
    H = params["hidden_dim"]

    def cell(inp, h, c, wih, whh, bih, bhh):
        gates = inp @ wih.T + bih + h @ whh.T + bhh
        i = jax.nn.sigmoid(gates[:, 0:H])
        f = jax.nn.sigmoid(gates[:, H:2 * H])
        g = jnp.tanh(gates[:, 2 * H:3 * H])
        o = jax.nn.sigmoid(gates[:, 3 * H:4 * H])
        c_new = f * c + i * g
        return o * jnp.tanh(c_new), c_new

    h = [jnp.zeros((B, H)), jnp.zeros((B, H))]
    c = [jnp.zeros((B, H)), jnp.zeros((B, H))]
    for t in range(T):
        x_t = obs[:, t, :]
        h[0], c[0] = cell(x_t, h[0], c[0], params["w_ih_l0"],
                          params["w_hh_l0"], params["b_ih_l0"],
                          params["b_hh_l0"])
        h[1], c[1] = cell(h[0], h[1], c[1], params["w_ih_l1"],
                          params["w_hh_l1"], params["b_ih_l1"],
                          params["b_hh_l1"])
    mean = jax.nn.sigmoid(h[1] @ params["fc_w"].T + params["fc_b"])
    return mean, jnp.stack(h), jnp.stack(c)


if __name__ == "__main__":
    obs_dim, act_dim = 8, 2
    hidden_dim, lstm_layers = 32, 2
    B, T = 2, 8

    key = jax.random.PRNGKey(0)
    kp, kx = jax.random.split(key)
    params = init_params(kp, obs_dim, act_dim, hidden_dim, lstm_layers)
    obs = jax.random.normal(kx, (B, T, obs_dim), jnp.float32)

    ref_mean, ref_hn, ref_cn = reference_forward(obs, params)

    # f32 MXU path — verifies exact semantics against the f32 reference.
    (mean32, std), (hn32, cn32) = lstm_policy_forward(
        obs, params, matmul_dtype=jnp.float32)
    jax.block_until_ready((mean32, std, hn32, cn32))
    np.testing.assert_allclose(np.asarray(mean32), np.asarray(ref_mean),
                               rtol=1e-5, atol=1e-5)
    np.testing.assert_allclose(np.asarray(hn32), np.asarray(ref_hn),
                               rtol=1e-5, atol=1e-5)
    np.testing.assert_allclose(np.asarray(cn32), np.asarray(ref_cn),
                               rtol=1e-5, atol=1e-5)

    # bf16-weight / bf16-gin MXU path (default fast path) — loose tolerance.
    (mean16, _), (hn16, cn16) = lstm_policy_forward(obs, params)
    jax.block_until_ready((mean16, hn16, cn16))
    np.testing.assert_allclose(np.asarray(mean16), np.asarray(ref_mean),
                               rtol=3e-2, atol=3e-2)
    np.testing.assert_allclose(np.asarray(hn16), np.asarray(ref_hn),
                               rtol=3e-2, atol=3e-2)
    np.testing.assert_allclose(np.asarray(cn16), np.asarray(ref_cn),
                               rtol=3e-2, atol=3e-2)

    assert std.shape == (act_dim,)

    # TODO(synk): MultivariateNormal sampling (dist.sample) is not implemented;
    # the distribution is represented as (mean, diagonal std).
    print("KERNEL_OK")
</pallas_src>

<mosaic_0001>
module attributes {stable_mosaic.version = 11 : i64} {
  func.func @lstm_policy_kernel(%arg0: memref<8x8x512xf32, #tpu.memory_space<vmem>>, %arg1: memref<128x512xf32, #tpu.memory_space<vmem>>, %arg2: memref<128x512xf32, #tpu.memory_space<vmem>>, %arg3: memref<128x512xf32, #tpu.memory_space<vmem>>, %arg4: memref<1x512xf32, #tpu.memory_space<vmem>>, %arg5: memref<128x128xf32, #tpu.memory_space<vmem>>, %arg6: memref<1x128xf32, #tpu.memory_space<vmem>>, %arg7: memref<8x128xf32, #tpu.memory_space<vmem>>, %arg8: memref<8x128xf32, #tpu.memory_space<vmem>>, %arg9: memref<8x128xf32, #tpu.memory_space<vmem>>, %arg10: memref<8x128xf32, #tpu.memory_space<vmem>>, %arg11: memref<8x128xf32, #tpu.memory_space<vmem>>, %arg12: memref<8x128xf32, #tpu.memory_space<vmem>>, %arg13: memref<8x128xf32, #tpu.memory_space<vmem>>, %arg14: memref<8x128xf32, #tpu.memory_space<vmem>>, %arg15: memref<8x128xf32, #tpu.memory_space<vmem>>) attributes {dimension_semantics = [], scalar_prefetch = 0 : i64, scratch_operands = 0 : i64, tpu.core_type = #tpu.core_type<tc>} {
    %c0 = arith.constant 0 : index
    %c0_0 = arith.constant 0 : index
    %0 = vector.load %arg1[%c0, %c0_0] : memref<128x512xf32, #tpu.memory_space<vmem>>, vector<128x512xf32>
    %c0_1 = arith.constant 0 : index
    %c0_2 = arith.constant 0 : index
    %1 = vector.load %arg2[%c0_1, %c0_2] : memref<128x512xf32, #tpu.memory_space<vmem>>, vector<128x512xf32>
    %c0_3 = arith.constant 0 : index
    %c0_4 = arith.constant 0 : index
    %2 = vector.load %arg3[%c0_3, %c0_4] : memref<128x512xf32, #tpu.memory_space<vmem>>, vector<128x512xf32>
    %c0_5 = arith.constant 0 : index
    %c0_6 = arith.constant 0 : index
    %3 = vector.load %arg4[%c0_5, %c0_6] : memref<1x512xf32, #tpu.memory_space<vmem>>, vector<1x512xf32>
    %c0_7 = arith.constant 0 : index
    %c0_8 = arith.constant 0 : index
    %4 = vector.load %arg7[%c0_7, %c0_8] : memref<8x128xf32, #tpu.memory_space<vmem>>, vector<8x128xf32>
    %c0_9 = arith.constant 0 : index
    %c0_10 = arith.constant 0 : index
    %5 = vector.load %arg8[%c0_9, %c0_10] : memref<8x128xf32, #tpu.memory_space<vmem>>, vector<8x128xf32>
    %cst = arith.constant dense<0.000000e+00> : vector<8x512xf32>
    %6 = tpu.matmul %4, %0, %cst {dimension_numbers = #tpu.dot_dimension_numbers<[1], [0], [0], [1], [0, 0, 1, 1], [], []>} : vector<8x128xf32>, vector<128x512xf32>, vector<8x512xf32> -> vector<8x512xf32>
    %c0_11 = arith.constant 0 : index
    %c0_12 = arith.constant 0 : index
    %c0_13 = arith.constant 0 : index
    %7 = vector.load %arg0[%c0_11, %c0_12, %c0_13] : memref<8x8x512xf32, #tpu.memory_space<vmem>>, vector<1x8x512xf32>
    %8 = vector.shape_cast %7 : vector<1x8x512xf32> to vector<8x512xf32>
    %9 = arith.addf %6, %8 : vector<8x512xf32>
    %10 = vector.extract_strided_slice %9 {offsets = [0, 0], sizes = [8, 256], strides = [1, 1]} : vector<8x512xf32> to vector<8x256xf32>
    %11 = arith.negf %10 : vector<8x256xf32>
    %12 = math.exp %11 : vector<8x256xf32>
    %cst_14 = arith.constant 1.000000e+00 : f32
    %13 = vector.broadcast %cst_14 : f32 to vector<8x256xf32>
    %14 = arith.addf %13, %12 : vector<8x256xf32>
    %15 = arith.divf %13, %14 : vector<8x256xf32>
    %16 = vector.extract_strided_slice %9 {offsets = [0, 256], sizes = [8, 128], strides = [1, 1]} : vector<8x512xf32> to vector<8x128xf32>
    %17 = math.tanh %16 : vector<8x128xf32>
    %18 = vector.extract_strided_slice %9 {offsets = [0, 384], sizes = [8, 128], strides = [1, 1]} : vector<8x512xf32> to vector<8x128xf32>
    %19 = arith.negf %18 : vector<8x128xf32>
    %20 = math.exp %19 : vector<8x128xf32>
    %cst_15 = arith.constant 1.000000e+00 : f32
    %21 = vector.broadcast %cst_15 : f32 to vector<8x128xf32>
    %22 = arith.addf %21, %20 : vector<8x128xf32>
    %23 = arith.divf %21, %22 : vector<8x128xf32>
    %24 = vector.extract_strided_slice %15 {offsets = [0, 128], sizes = [8, 128], strides = [1, 1]} : vector<8x256xf32> to vector<8x128xf32>
    %25 = arith.mulf %24, %5 : vector<8x128xf32>
    %26 = vector.extract_strided_slice %15 {offsets = [0, 0], sizes = [8, 128], strides = [1, 1]} : vector<8x256xf32> to vector<8x128xf32>
    %27 = arith.mulf %26, %17 : vector<8x128xf32>
    %28 = arith.addf %25, %27 : vector<8x128xf32>
    %29 = math.tanh %28 : vector<8x128xf32>
    %30 = arith.mulf %23, %29 : vector<8x128xf32>
    %c0_16 = arith.constant 0 : index
    %c0_17 = arith.constant 0 : index
    %31 = vector.load %arg9[%c0_16, %c0_17] : memref<8x128xf32, #tpu.memory_space<vmem>>, vector<8x128xf32>
    %c0_18 = arith.constant 0 : index
    %c0_19 = arith.constant 0 : index
    %32 = vector.load %arg10[%c0_18, %c0_19] : memref<8x128xf32, #tpu.memory_space<vmem>>, vector<8x128xf32>
    %c1_i32 = arith.constant 1 : i32
    %cst_20 = arith.constant dense<0.000000e+00> : vector<8x512xf32>
    %33 = tpu.matmul %30, %0, %cst_20 {dimension_numbers = #tpu.dot_dimension_numbers<[1], [0], [0], [1], [0, 0, 1, 1], [], []>} : vector<8x128xf32>, vector<128x512xf32>, vector<8x512xf32> -> vector<8x512xf32>
    %34 = arith.index_cast %c1_i32 : i32 to index
    %c0_21 = arith.constant 0 : index
    %c0_22 = arith.constant 0 : index
    %35 = vector.load %arg0[%34, %c0_21, %c0_22] : memref<8x8x512xf32, #tpu.memory_space<vmem>>, vector<1x8x512xf32>
    %36 = vector.shape_cast %35 : vector<1x8x512xf32> to vector<8x512xf32>
    %37 = arith.addf %33, %36 : vector<8x512xf32>
    %38 = vector.extract_strided_slice %37 {offsets = [0, 0], sizes = [8, 256], strides = [1, 1]} : vector<8x512xf32> to vector<8x256xf32>
    %39 = arith.negf %38 : vector<8x256xf32>
    %40 = math.exp %39 : vector<8x256xf32>
    %cst_23 = arith.constant 1.000000e+00 : f32
    %41 = vector.broadcast %cst_23 : f32 to vector<8x256xf32>
    %42 = arith.addf %41, %40 : vector<8x256xf32>
    %43 = arith.divf %41, %42 : vector<8x256xf32>
    %44 = vector.extract_strided_slice %37 {offsets = [0, 256], sizes = [8, 128], strides = [1, 1]} : vector<8x512xf32> to vector<8x128xf32>
    %45 = math.tanh %44 : vector<8x128xf32>
    %46 = vector.extract_strided_slice %37 {offsets = [0, 384], sizes = [8, 128], strides = [1, 1]} : vector<8x512xf32> to vector<8x128xf32>
    %47 = arith.negf %46 : vector<8x128xf32>
    %48 = math.exp %47 : vector<8x128xf32>
    %cst_24 = arith.constant 1.000000e+00 : f32
    %49 = vector.broadcast %cst_24 : f32 to vector<8x128xf32>
    %50 = arith.addf %49, %48 : vector<8x128xf32>
    %51 = arith.divf %49, %50 : vector<8x128xf32>
    %52 = vector.extract_strided_slice %43 {offsets = [0, 128], sizes = [8, 128], strides = [1, 1]} : vector<8x256xf32> to vector<8x128xf32>
    %53 = arith.mulf %52, %28 : vector<8x128xf32>
    %54 = vector.extract_strided_slice %43 {offsets = [0, 0], sizes = [8, 128], strides = [1, 1]} : vector<8x256xf32> to vector<8x128xf32>
    %55 = arith.mulf %54, %45 : vector<8x128xf32>
    %56 = arith.addf %53, %55 : vector<8x128xf32>
    %57 = math.tanh %56 : vector<8x128xf32>
    %58 = arith.mulf %51, %57 : vector<8x128xf32>
    %cst_25 = arith.constant dense<0.000000e+00> : vector<8x512xf32>
    %59 = tpu.matmul %30, %1, %cst_25 {dimension_numbers = #tpu.dot_dimension_numbers<[1], [0], [0], [1], [0, 0, 1, 1], [], []>} : vector<8x128xf32>, vector<128x512xf32>, vector<8x512xf32> -> vector<8x512xf32>
    %cst_26 = arith.constant dense<0.000000e+00> : vector<8x512xf32>
    %60 = tpu.matmul %31, %2, %cst_26 {dimension_numbers = #tpu.dot_dimension_numbers<[1], [0], [0], [1], [0, 0, 1, 1], [], []>} : vector<8x128xf32>, vector<128x512xf32>, vector<8x512xf32> -> vector<8x512xf32>
    %61 = arith.addf %59, %60 : vector<8x512xf32>
    %62 = vector.broadcast %3 : vector<1x512xf32> to vector<8x512xf32>
    %63 = arith.addf %61, %62 : vector<8x512xf32>
    %64 = vector.extract_strided_slice %63 {offsets = [0, 0], sizes = [8, 256], strides = [1, 1]} : vector<8x512xf32> to vector<8x256xf32>
    %65 = arith.negf %64 : vector<8x256xf32>
    %66 = math.exp %65 : vector<8x256xf32>
    %cst_27 = arith.constant 1.000000e+00 : f32
    %67 = vector.broadcast %cst_27 : f32 to vector<8x256xf32>
    %68 = arith.addf %67, %66 : vector<8x256xf32>
    %69 = arith.divf %67, %68 : vector<8x256xf32>
    %70 = vector.extract_strided_slice %63 {offsets = [0, 256], sizes = [8, 128], strides = [1, 1]} : vector<8x512xf32> to vector<8x128xf32>
    %71 = math.tanh %70 : vector<8x128xf32>
    %72 = vector.extract_strided_slice %63 {offsets = [0, 384], sizes = [8, 128], strides = [1, 1]} : vector<8x512xf32> to vector<8x128xf32>
    %73 = arith.negf %72 : vector<8x128xf32>
    %74 = math.exp %73 : vector<8x128xf32>
    %cst_28 = arith.constant 1.000000e+00 : f32
    %75 = vector.broadcast %cst_28 : f32 to vector<8x128xf32>
    %76 = arith.addf %75, %74 : vector<8x128xf32>
    %77 = arith.divf %75, %76 : vector<8x128xf32>
    %78 = vector.extract_strided_slice %69 {offsets = [0, 128], sizes = [8, 128], strides = [1, 1]} : vector<8x256xf32> to vector<8x128xf32>
    %79 = arith.mulf %78, %32 : vector<8x128xf32>
    %80 = vector.extract_strided_slice %69 {offsets = [0, 0], sizes = [8, 128], strides = [1, 1]} : vector<8x256xf32> to vector<8x128xf32>
    %81 = arith.mulf %80, %71 : vector<8x128xf32>
    %82 = arith.addf %79, %81 : vector<8x128xf32>
    %83 = math.tanh %82 : vector<8x128xf32>
    %84 = arith.mulf %77, %83 : vector<8x128xf32>
    %c2_i32 = arith.constant 2 : i32
    %cst_29 = arith.constant dense<0.000000e+00> : vector<8x512xf32>
    %85 = tpu.matmul %58, %0, %cst_29 {dimension_numbers = #tpu.dot_dimension_numbers<[1], [0], [0], [1], [0, 0, 1, 1], [], []>} : vector<8x128xf32>, vector<128x512xf32>, vector<8x512xf32> -> vector<8x512xf32>
    %86 = arith.index_cast %c2_i32 : i32 to index
    %c0_30 = arith.constant 0 : index
    %c0_31 = arith.constant 0 : index
    %87 = vector.load %arg0[%86, %c0_30, %c0_31] : memref<8x8x512xf32, #tpu.memory_space<vmem>>, vector<1x8x512xf32>
    %88 = vector.shape_cast %87 : vector<1x8x512xf32> to vector<8x512xf32>
    %89 = arith.addf %85, %88 : vector<8x512xf32>
    %90 = vector.extract_strided_slice %89 {offsets = [0, 0], sizes = [8, 256], strides = [1, 1]} : vector<8x512xf32> to vector<8x256xf32>
    %91 = arith.negf %90 : vector<8x256xf32>
    %92 = math.exp %91 : vector<8x256xf32>
    %cst_32 = arith.constant 1.000000e+00 : f32
    %93 = vector.broadcast %cst_32 : f32 to vector<8x256xf32>
    %94 = arith.addf %93, %92 : vector<8x256xf32>
    %95 = arith.divf %93, %94 : vector<8x256xf32>
    %96 = vector.extract_strided_slice %89 {offsets = [0, 256], sizes = [8, 128], strides = [1, 1]} : vector<8x512xf32> to vector<8x128xf32>
    %97 = math.tanh %96 : vector<8x128xf32>
    %98 = vector.extract_strided_slice %89 {offsets = [0, 384], sizes = [8, 128], strides = [1, 1]} : vector<8x512xf32> to vector<8x128xf32>
    %99 = arith.negf %98 : vector<8x128xf32>
    %100 = math.exp %99 : vector<8x128xf32>
    %cst_33 = arith.constant 1.000000e+00 : f32
    %101 = vector.broadcast %cst_33 : f32 to vector<8x128xf32>
    %102 = arith.addf %101, %100 : vector<8x128xf32>
    %103 = arith.divf %101, %102 : vector<8x128xf32>
    %104 = vector.extract_strided_slice %95 {offsets = [0, 128], sizes = [8, 128], strides = [1, 1]} : vector<8x256xf32> to vector<8x128xf32>
    %105 = arith.mulf %104, %56 : vector<8x128xf32>
    %106 = vector.extract_strided_slice %95 {offsets = [0, 0], sizes = [8, 128], strides = [1, 1]} : vector<8x256xf32> to vector<8x128xf32>
    %107 = arith.mulf %106, %97 : vector<8x128xf32>
    %108 = arith.addf %105, %107 : vector<8x128xf32>
    %109 = math.tanh %108 : vector<8x128xf32>
    %110 = arith.mulf %103, %109 : vector<8x128xf32>
    %cst_34 = arith.constant dense<0.000000e+00> : vector<8x512xf32>
    %111 = tpu.matmul %58, %1, %cst_34 {dimension_numbers = #tpu.dot_dimension_numbers<[1], [0], [0], [1], [0, 0, 1, 1], [], []>} : vector<8x128xf32>, vector<128x512xf32>, vector<8x512xf32> -> vector<8x512xf32>
    %cst_35 = arith.constant dense<0.000000e+00> : vector<8x512xf32>
    %112 = tpu.matmul %84, %2, %cst_35 {dimension_numbers = #tpu.dot_dimension_numbers<[1], [0], [0], [1], [0, 0, 1, 1], [], []>} : vector<8x128xf32>, vector<128x512xf32>, vector<8x512xf32> -> vector<8x512xf32>
    %113 = arith.addf %111, %112 : vector<8x512xf32>
    %114 = vector.broadcast %3 : vector<1x512xf32> to vector<8x512xf32>
    %115 = arith.addf %113, %114 : vector<8x512xf32>
    %116 = vector.extract_strided_slice %115 {offsets = [0, 0], sizes = [8, 256], strides = [1, 1]} : vector<8x512xf32> to vector<8x256xf32>
    %117 = arith.negf %116 : vector<8x256xf32>
    %118 = math.exp %117 : vector<8x256xf32>
    %cst_36 = arith.constant 1.000000e+00 : f32
    %119 = vector.broadcast %cst_36 : f32 to vector<8x256xf32>
    %120 = arith.addf %119, %118 : vector<8x256xf32>
    %121 = arith.divf %119, %120 : vector<8x256xf32>
    %122 = vector.extract_strided_slice %115 {offsets = [0, 256], sizes = [8, 128], strides = [1, 1]} : vector<8x512xf32> to vector<8x128xf32>
    %123 = math.tanh %122 : vector<8x128xf32>
    %124 = vector.extract_strided_slice %115 {offsets = [0, 384], sizes = [8, 128], strides = [1, 1]} : vector<8x512xf32> to vector<8x128xf32>
    %125 = arith.negf %124 : vector<8x128xf32>
    %126 = math.exp %125 : vector<8x128xf32>
    %cst_37 = arith.constant 1.000000e+00 : f32
    %127 = vector.broadcast %cst_37 : f32 to vector<8x128xf32>
    %128 = arith.addf %127, %126 : vector<8x128xf32>
    %129 = arith.divf %127, %128 : vector<8x128xf32>
    %130 = vector.extract_strided_slice %121 {offsets = [0, 128], sizes = [8, 128], strides = [1, 1]} : vector<8x256xf32> to vector<8x128xf32>
    %131 = arith.mulf %130, %82 : vector<8x128xf32>
    %132 = vector.extract_strided_slice %121 {offsets = [0, 0], sizes = [8, 128], strides = [1, 1]} : vector<8x256xf32> to vector<8x128xf32>
    %133 = arith.mulf %132, %123 : vector<8x128xf32>
    %134 = arith.addf %131, %133 : vector<8x128xf32>
    %135 = math.tanh %134 : vector<8x128xf32>
    %136 = arith.mulf %129, %135 : vector<8x128xf32>
    %c3_i32 = arith.constant 3 : i32
    %cst_38 = arith.constant dense<0.000000e+00> : vector<8x512xf32>
    %137 = tpu.matmul %110, %0, %cst_38 {dimension_numbers = #tpu.dot_dimension_numbers<[1], [0], [0], [1], [0, 0, 1, 1], [], []>} : vector<8x128xf32>, vector<128x512xf32>, vector<8x512xf32> -> vector<8x512xf32>
    %138 = arith.index_cast %c3_i32 : i32 to index
    %c0_39 = arith.constant 0 : index
    %c0_40 = arith.constant 0 : index
    %139 = vector.load %arg0[%138, %c0_39, %c0_40] : memref<8x8x512xf32, #tpu.memory_space<vmem>>, vector<1x8x512xf32>
    %140 = vector.shape_cast %139 : vector<1x8x512xf32> to vector<8x512xf32>
    %141 = arith.addf %137, %140 : vector<8x512xf32>
    %142 = vector.extract_strided_slice %141 {offsets = [0, 0], sizes = [8, 256], strides = [1, 1]} : vector<8x512xf32> to vector<8x256xf32>
    %143 = arith.negf %142 : vector<8x256xf32>
    %144 = math.exp %143 : vector<8x256xf32>
    %cst_41 = arith.constant 1.000000e+00 : f32
    %145 = vector.broadcast %cst_41 : f32 to vector<8x256xf32>
    %146 = arith.addf %145, %144 : vector<8x256xf32>
    %147 = arith.divf %145, %146 : vector<8x256xf32>
    %148 = vector.extract_strided_slice %141 {offsets = [0, 256], sizes = [8, 128], strides = [1, 1]} : vector<8x512xf32> to vector<8x128xf32>
    %149 = math.tanh %148 : vector<8x128xf32>
    %150 = vector.extract_strided_slice %141 {offsets = [0, 384], sizes = [8, 128], strides = [1, 1]} : vector<8x512xf32> to vector<8x128xf32>
    %151 = arith.negf %150 : vector<8x128xf32>
    %152 = math.exp %151 : vector<8x128xf32>
    %cst_42 = arith.constant 1.000000e+00 : f32
    %153 = vector.broadcast %cst_42 : f32 to vector<8x128xf32>
    %154 = arith.addf %153, %152 : vector<8x128xf32>
    %155 = arith.divf %153, %154 : vector<8x128xf32>
    %156 = vector.extract_strided_slice %147 {offsets = [0, 128], sizes = [8, 128], strides = [1, 1]} : vector<8x256xf32> to vector<8x128xf32>
    %157 = arith.mulf %156, %108 : vector<8x128xf32>
    %158 = vector.extract_strided_slice %147 {offsets = [0, 0], sizes = [8, 128], strides = [1, 1]} : vector<8x256xf32> to vector<8x128xf32>
    %159 = arith.mulf %158, %149 : vector<8x128xf32>
    %160 = arith.addf %157, %159 : vector<8x128xf32>
    %161 = math.tanh %160 : vector<8x128xf32>
    %162 = arith.mulf %155, %161 : vector<8x128xf32>
    %cst_43 = arith.constant dense<0.000000e+00> : vector<8x512xf32>
    %163 = tpu.matmul %110, %1, %cst_43 {dimension_numbers = #tpu.dot_dimension_numbers<[1], [0], [0], [1], [0, 0, 1, 1], [], []>} : vector<8x128xf32>, vector<128x512xf32>, vector<8x512xf32> -> vector<8x512xf32>
    %cst_44 = arith.constant dense<0.000000e+00> : vector<8x512xf32>
    %164 = tpu.matmul %136, %2, %cst_44 {dimension_numbers = #tpu.dot_dimension_numbers<[1], [0], [0], [1], [0, 0, 1, 1], [], []>} : vector<8x128xf32>, vector<128x512xf32>, vector<8x512xf32> -> vector<8x512xf32>
    %165 = arith.addf %163, %164 : vector<8x512xf32>
    %166 = vector.broadcast %3 : vector<1x512xf32> to vector<8x512xf32>
    %167 = arith.addf %165, %166 : vector<8x512xf32>
    %168 = vector.extract_strided_slice %167 {offsets = [0, 0], sizes = [8, 256], strides = [1, 1]} : vector<8x512xf32> to vector<8x256xf32>
    %169 = arith.negf %168 : vector<8x256xf32>
    %170 = math.exp %169 : vector<8x256xf32>
    %cst_45 = arith.constant 1.000000e+00 : f32
    %171 = vector.broadcast %cst_45 : f32 to vector<8x256xf32>
    %172 = arith.addf %171, %170 : vector<8x256xf32>
    %173 = arith.divf %171, %172 : vector<8x256xf32>
    %174 = vector.extract_strided_slice %167 {offsets = [0, 256], sizes = [8, 128], strides = [1, 1]} : vector<8x512xf32> to vector<8x128xf32>
    %175 = math.tanh %174 : vector<8x128xf32>
    %176 = vector.extract_strided_slice %167 {offsets = [0, 384], sizes = [8, 128], strides = [1, 1]} : vector<8x512xf32> to vector<8x128xf32>
    %177 = arith.negf %176 : vector<8x128xf32>
    %178 = math.exp %177 : vector<8x128xf32>
    %cst_46 = arith.constant 1.000000e+00 : f32
    %179 = vector.broadcast %cst_46 : f32 to vector<8x128xf32>
    %180 = arith.addf %179, %178 : vector<8x128xf32>
    %181 = arith.divf %179, %180 : vector<8x128xf32>
    %182 = vector.extract_strided_slice %173 {offsets = [0, 128], sizes = [8, 128], strides = [1, 1]} : vector<8x256xf32> to vector<8x128xf32>
    %183 = arith.mulf %182, %134 : vector<8x128xf32>
    %184 = vector.extract_strided_slice %173 {offsets = [0, 0], sizes = [8, 128], strides = [1, 1]} : vector<8x256xf32> to vector<8x128xf32>
    %185 = arith.mulf %184, %175 : vector<8x128xf32>
    %186 = arith.addf %183, %185 : vector<8x128xf32>
    %187 = math.tanh %186 : vector<8x128xf32>
    %188 = arith.mulf %181, %187 : vector<8x128xf32>
    %c4_i32 = arith.constant 4 : i32
    %cst_47 = arith.constant dense<0.000000e+00> : vector<8x512xf32>
    %189 = tpu.matmul %162, %0, %cst_47 {dimension_numbers = #tpu.dot_dimension_numbers<[1], [0], [0], [1], [0, 0, 1, 1], [], []>} : vector<8x128xf32>, vector<128x512xf32>, vector<8x512xf32> -> vector<8x512xf32>
    %190 = arith.index_cast %c4_i32 : i32 to index
    %c0_48 = arith.constant 0 : index
    %c0_49 = arith.constant 0 : index
    %191 = vector.load %arg0[%190, %c0_48, %c0_49] : memref<8x8x512xf32, #tpu.memory_space<vmem>>, vector<1x8x512xf32>
    %192 = vector.shape_cast %191 : vector<1x8x512xf32> to vector<8x512xf32>
    %193 = arith.addf %189, %192 : vector<8x512xf32>
    %194 = vector.extract_strided_slice %193 {offsets = [0, 0], sizes = [8, 256], strides = [1, 1]} : vector<8x512xf32> to vector<8x256xf32>
    %195 = arith.negf %194 : vector<8x256xf32>
    %196 = math.exp %195 : vector<8x256xf32>
    %cst_50 = arith.constant 1.000000e+00 : f32
    %197 = vector.broadcast %cst_50 : f32 to vector<8x256xf32>
    %198 = arith.addf %197, %196 : vector<8x256xf32>
    %199 = arith.divf %197, %198 : vector<8x256xf32>
    %200 = vector.extract_strided_slice %193 {offsets = [0, 256], sizes = [8, 128], strides = [1, 1]} : vector<8x512xf32> to vector<8x128xf32>
    %201 = math.tanh %200 : vector<8x128xf32>
    %202 = vector.extract_strided_slice %193 {offsets = [0, 384], sizes = [8, 128], strides = [1, 1]} : vector<8x512xf32> to vector<8x128xf32>
    %203 = arith.negf %202 : vector<8x128xf32>
    %204 = math.exp %203 : vector<8x128xf32>
    %cst_51 = arith.constant 1.000000e+00 : f32
    %205 = vector.broadcast %cst_51 : f32 to vector<8x128xf32>
    %206 = arith.addf %205, %204 : vector<8x128xf32>
    %207 = arith.divf %205, %206 : vector<8x128xf32>
    %208 = vector.extract_strided_slice %199 {offsets = [0, 128], sizes = [8, 128], strides = [1, 1]} : vector<8x256xf32> to vector<8x128xf32>
    %209 = arith.mulf %208, %160 : vector<8x128xf32>
    %210 = vector.extract_strided_slice %199 {offsets = [0, 0], sizes = [8, 128], strides = [1, 1]} : vector<8x256xf32> to vector<8x128xf32>
    %211 = arith.mulf %210, %201 : vector<8x128xf32>
    %212 = arith.addf %209, %211 : vector<8x128xf32>
    %213 = math.tanh %212 : vector<8x128xf32>
    %214 = arith.mulf %207, %213 : vector<8x128xf32>
    %cst_52 = arith.constant dense<0.000000e+00> : vector<8x512xf32>
    %215 = tpu.matmul %162, %1, %cst_52 {dimension_numbers = #tpu.dot_dimension_numbers<[1], [0], [0], [1], [0, 0, 1, 1], [], []>} : vector<8x128xf32>, vector<128x512xf32>, vector<8x512xf32> -> vector<8x512xf32>
    %cst_53 = arith.constant dense<0.000000e+00> : vector<8x512xf32>
    %216 = tpu.matmul %188, %2, %cst_53 {dimension_numbers = #tpu.dot_dimension_numbers<[1], [0], [0], [1], [0, 0, 1, 1], [], []>} : vector<8x128xf32>, vector<128x512xf32>, vector<8x512xf32> -> vector<8x512xf32>
    %217 = arith.addf %215, %216 : vector<8x512xf32>
    %218 = vector.broadcast %3 : vector<1x512xf32> to vector<8x512xf32>
    %219 = arith.addf %217, %218 : vector<8x512xf32>
    %220 = vector.extract_strided_slice %219 {offsets = [0, 0], sizes = [8, 256], strides = [1, 1]} : vector<8x512xf32> to vector<8x256xf32>
    %221 = arith.negf %220 : vector<8x256xf32>
    %222 = math.exp %221 : vector<8x256xf32>
    %cst_54 = arith.constant 1.000000e+00 : f32
    %223 = vector.broadcast %cst_54 : f32 to vector<8x256xf32>
    %224 = arith.addf %223, %222 : vector<8x256xf32>
    %225 = arith.divf %223, %224 : vector<8x256xf32>
    %226 = vector.extract_strided_slice %219 {offsets = [0, 256], sizes = [8, 128], strides = [1, 1]} : vector<8x512xf32> to vector<8x128xf32>
    %227 = math.tanh %226 : vector<8x128xf32>
    %228 = vector.extract_strided_slice %219 {offsets = [0, 384], sizes = [8, 128], strides = [1, 1]} : vector<8x512xf32> to vector<8x128xf32>
    %229 = arith.negf %228 : vector<8x128xf32>
    %230 = math.exp %229 : vector<8x128xf32>
    %cst_55 = arith.constant 1.000000e+00 : f32
    %231 = vector.broadcast %cst_55 : f32 to vector<8x128xf32>
    %232 = arith.addf %231, %230 : vector<8x128xf32>
    %233 = arith.divf %231, %232 : vector<8x128xf32>
    %234 = vector.extract_strided_slice %225 {offsets = [0, 128], sizes = [8, 128], strides = [1, 1]} : vector<8x256xf32> to vector<8x128xf32>
    %235 = arith.mulf %234, %186 : vector<8x128xf32>
    %236 = vector.extract_strided_slice %225 {offsets = [0, 0], sizes = [8, 128], strides = [1, 1]} : vector<8x256xf32> to vector<8x128xf32>
    %237 = arith.mulf %236, %227 : vector<8x128xf32>
    %238 = arith.addf %235, %237 : vector<8x128xf32>
    %239 = math.tanh %238 : vector<8x128xf32>
    %240 = arith.mulf %233, %239 : vector<8x128xf32>
    %c5_i32 = arith.constant 5 : i32
    %cst_56 = arith.constant dense<0.000000e+00> : vector<8x512xf32>
    %241 = tpu.matmul %214, %0, %cst_56 {dimension_numbers = #tpu.dot_dimension_numbers<[1], [0], [0], [1], [0, 0, 1, 1], [], []>} : vector<8x128xf32>, vector<128x512xf32>, vector<8x512xf32> -> vector<8x512xf32>
    %242 = arith.index_cast %c5_i32 : i32 to index
    %c0_57 = arith.constant 0 : index
    %c0_58 = arith.constant 0 : index
    %243 = vector.load %arg0[%242, %c0_57, %c0_58] : memref<8x8x512xf32, #tpu.memory_space<vmem>>, vector<1x8x512xf32>
    %244 = vector.shape_cast %243 : vector<1x8x512xf32> to vector<8x512xf32>
    %245 = arith.addf %241, %244 : vector<8x512xf32>
    %246 = vector.extract_strided_slice %245 {offsets = [0, 0], sizes = [8, 256], strides = [1, 1]} : vector<8x512xf32> to vector<8x256xf32>
    %247 = arith.negf %246 : vector<8x256xf32>
    %248 = math.exp %247 : vector<8x256xf32>
    %cst_59 = arith.constant 1.000000e+00 : f32
    %249 = vector.broadcast %cst_59 : f32 to vector<8x256xf32>
    %250 = arith.addf %249, %248 : vector<8x256xf32>
    %251 = arith.divf %249, %250 : vector<8x256xf32>
    %252 = vector.extract_strided_slice %245 {offsets = [0, 256], sizes = [8, 128], strides = [1, 1]} : vector<8x512xf32> to vector<8x128xf32>
    %253 = math.tanh %252 : vector<8x128xf32>
    %254 = vector.extract_strided_slice %245 {offsets = [0, 384], sizes = [8, 128], strides = [1, 1]} : vector<8x512xf32> to vector<8x128xf32>
    %255 = arith.negf %254 : vector<8x128xf32>
    %256 = math.exp %255 : vector<8x128xf32>
    %cst_60 = arith.constant 1.000000e+00 : f32
    %257 = vector.broadcast %cst_60 : f32 to vector<8x128xf32>
    %258 = arith.addf %257, %256 : vector<8x128xf32>
    %259 = arith.divf %257, %258 : vector<8x128xf32>
    %260 = vector.extract_strided_slice %251 {offsets = [0, 128], sizes = [8, 128], strides = [1, 1]} : vector<8x256xf32> to vector<8x128xf32>
    %261 = arith.mulf %260, %212 : vector<8x128xf32>
    %262 = vector.extract_strided_slice %251 {offsets = [0, 0], sizes = [8, 128], strides = [1, 1]} : vector<8x256xf32> to vector<8x128xf32>
    %263 = arith.mulf %262, %253 : vector<8x128xf32>
    %264 = arith.addf %261, %263 : vector<8x128xf32>
    %265 = math.tanh %264 : vector<8x128xf32>
    %266 = arith.mulf %259, %265 : vector<8x128xf32>
    %cst_61 = arith.constant dense<0.000000e+00> : vector<8x512xf32>
    %267 = tpu.matmul %214, %1, %cst_61 {dimension_numbers = #tpu.dot_dimension_numbers<[1], [0], [0], [1], [0, 0, 1, 1], [], []>} : vector<8x128xf32>, vector<128x512xf32>, vector<8x512xf32> -> vector<8x512xf32>
    %cst_62 = arith.constant dense<0.000000e+00> : vector<8x512xf32>
    %268 = tpu.matmul %240, %2, %cst_62 {dimension_numbers = #tpu.dot_dimension_numbers<[1], [0], [0], [1], [0, 0, 1, 1], [], []>} : vector<8x128xf32>, vector<128x512xf32>, vector<8x512xf32> -> vector<8x512xf32>
    %269 = arith.addf %267, %268 : vector<8x512xf32>
    %270 = vector.broadcast %3 : vector<1x512xf32> to vector<8x512xf32>
    %271 = arith.addf %269, %270 : vector<8x512xf32>
    %272 = vector.extract_strided_slice %271 {offsets = [0, 0], sizes = [8, 256], strides = [1, 1]} : vector<8x512xf32> to vector<8x256xf32>
    %273 = arith.negf %272 : vector<8x256xf32>
    %274 = math.exp %273 : vector<8x256xf32>
    %cst_63 = arith.constant 1.000000e+00 : f32
    %275 = vector.broadcast %cst_63 : f32 to vector<8x256xf32>
    %276 = arith.addf %275, %274 : vector<8x256xf32>
    %277 = arith.divf %275, %276 : vector<8x256xf32>
    %278 = vector.extract_strided_slice %271 {offsets = [0, 256], sizes = [8, 128], strides = [1, 1]} : vector<8x512xf32> to vector<8x128xf32>
    %279 = math.tanh %278 : vector<8x128xf32>
    %280 = vector.extract_strided_slice %271 {offsets = [0, 384], sizes = [8, 128], strides = [1, 1]} : vector<8x512xf32> to vector<8x128xf32>
    %281 = arith.negf %280 : vector<8x128xf32>
    %282 = math.exp %281 : vector<8x128xf32>
    %cst_64 = arith.constant 1.000000e+00 : f32
    %283 = vector.broadcast %cst_64 : f32 to vector<8x128xf32>
    %284 = arith.addf %283, %282 : vector<8x128xf32>
    %285 = arith.divf %283, %284 : vector<8x128xf32>
    %286 = vector.extract_strided_slice %277 {offsets = [0, 128], sizes = [8, 128], strides = [1, 1]} : vector<8x256xf32> to vector<8x128xf32>
    %287 = arith.mulf %286, %238 : vector<8x128xf32>
    %288 = vector.extract_strided_slice %277 {offsets = [0, 0], sizes = [8, 128], strides = [1, 1]} : vector<8x256xf32> to vector<8x128xf32>
    %289 = arith.mulf %288, %279 : vector<8x128xf32>
    %290 = arith.addf %287, %289 : vector<8x128xf32>
    %291 = math.tanh %290 : vector<8x128xf32>
    %292 = arith.mulf %285, %291 : vector<8x128xf32>
    %c6_i32 = arith.constant 6 : i32
    %cst_65 = arith.constant dense<0.000000e+00> : vector<8x512xf32>
    %293 = tpu.matmul %266, %0, %cst_65 {dimension_numbers = #tpu.dot_dimension_numbers<[1], [0], [0], [1], [0, 0, 1, 1], [], []>} : vector<8x128xf32>, vector<128x512xf32>, vector<8x512xf32> -> vector<8x512xf32>
    %294 = arith.index_cast %c6_i32 : i32 to index
    %c0_66 = arith.constant 0 : index
    %c0_67 = arith.constant 0 : index
    %295 = vector.load %arg0[%294, %c0_66, %c0_67] : memref<8x8x512xf32, #tpu.memory_space<vmem>>, vector<1x8x512xf32>
    %296 = vector.shape_cast %295 : vector<1x8x512xf32> to vector<8x512xf32>
    %297 = arith.addf %293, %296 : vector<8x512xf32>
    %298 = vector.extract_strided_slice %297 {offsets = [0, 0], sizes = [8, 256], strides = [1, 1]} : vector<8x512xf32> to vector<8x256xf32>
    %299 = arith.negf %298 : vector<8x256xf32>
    %300 = math.exp %299 : vector<8x256xf32>
    %cst_68 = arith.constant 1.000000e+00 : f32
    %301 = vector.broadcast %cst_68 : f32 to vector<8x256xf32>
    %302 = arith.addf %301, %300 : vector<8x256xf32>
    %303 = arith.divf %301, %302 : vector<8x256xf32>
    %304 = vector.extract_strided_slice %297 {offsets = [0, 256], sizes = [8, 128], strides = [1, 1]} : vector<8x512xf32> to vector<8x128xf32>
    %305 = math.tanh %304 : vector<8x128xf32>
    %306 = vector.extract_strided_slice %297 {offsets = [0, 384], sizes = [8, 128], strides = [1, 1]} : vector<8x512xf32> to vector<8x128xf32>
    %307 = arith.negf %306 : vector<8x128xf32>
    %308 = math.exp %307 : vector<8x128xf32>
    %cst_69 = arith.constant 1.000000e+00 : f32
    %309 = vector.broadcast %cst_69 : f32 to vector<8x128xf32>
    %310 = arith.addf %309, %308 : vector<8x128xf32>
    %311 = arith.divf %309, %310 : vector<8x128xf32>
    %312 = vector.extract_strided_slice %303 {offsets = [0, 128], sizes = [8, 128], strides = [1, 1]} : vector<8x256xf32> to vector<8x128xf32>
    %313 = arith.mulf %312, %264 : vector<8x128xf32>
    %314 = vector.extract_strided_slice %303 {offsets = [0, 0], sizes = [8, 128], strides = [1, 1]} : vector<8x256xf32> to vector<8x128xf32>
    %315 = arith.mulf %314, %305 : vector<8x128xf32>
    %316 = arith.addf %313, %315 : vector<8x128xf32>
    %317 = math.tanh %316 : vector<8x128xf32>
    %318 = arith.mulf %311, %317 : vector<8x128xf32>
    %cst_70 = arith.constant dense<0.000000e+00> : vector<8x512xf32>
    %319 = tpu.matmul %266, %1, %cst_70 {dimension_numbers = #tpu.dot_dimension_numbers<[1], [0], [0], [1], [0, 0, 1, 1], [], []>} : vector<8x128xf32>, vector<128x512xf32>, vector<8x512xf32> -> vector<8x512xf32>
    %cst_71 = arith.constant dense<0.000000e+00> : vector<8x512xf32>
    %320 = tpu.matmul %292, %2, %cst_71 {dimension_numbers = #tpu.dot_dimension_numbers<[1], [0], [0], [1], [0, 0, 1, 1], [], []>} : vector<8x128xf32>, vector<128x512xf32>, vector<8x512xf32> -> vector<8x512xf32>
    %321 = arith.addf %319, %320 : vector<8x512xf32>
    %322 = vector.broadcast %3 : vector<1x512xf32> to vector<8x512xf32>
    %323 = arith.addf %321, %322 : vector<8x512xf32>
    %324 = vector.extract_strided_slice %323 {offsets = [0, 0], sizes = [8, 256], strides = [1, 1]} : vector<8x512xf32> to vector<8x256xf32>
    %325 = arith.negf %324 : vector<8x256xf32>
    %326 = math.exp %325 : vector<8x256xf32>
    %cst_72 = arith.constant 1.000000e+00 : f32
    %327 = vector.broadcast %cst_72 : f32 to vector<8x256xf32>
    %328 = arith.addf %327, %326 : vector<8x256xf32>
    %329 = arith.divf %327, %328 : vector<8x256xf32>
    %330 = vector.extract_strided_slice %323 {offsets = [0, 256], sizes = [8, 128], strides = [1, 1]} : vector<8x512xf32> to vector<8x128xf32>
    %331 = math.tanh %330 : vector<8x128xf32>
    %332 = vector.extract_strided_slice %323 {offsets = [0, 384], sizes = [8, 128], strides = [1, 1]} : vector<8x512xf32> to vector<8x128xf32>
    %333 = arith.negf %332 : vector<8x128xf32>
    %334 = math.exp %333 : vector<8x128xf32>
    %cst_73 = arith.constant 1.000000e+00 : f32
    %335 = vector.broadcast %cst_73 : f32 to vector<8x128xf32>
    %336 = arith.addf %335, %334 : vector<8x128xf32>
    %337 = arith.divf %335, %336 : vector<8x128xf32>
    %338 = vector.extract_strided_slice %329 {offsets = [0, 128], sizes = [8, 128], strides = [1, 1]} : vector<8x256xf32> to vector<8x128xf32>
    %339 = arith.mulf %338, %290 : vector<8x128xf32>
    %340 = vector.extract_strided_slice %329 {offsets = [0, 0], sizes = [8, 128], strides = [1, 1]} : vector<8x256xf32> to vector<8x128xf32>
    %341 = arith.mulf %340, %331 : vector<8x128xf32>
    %342 = arith.addf %339, %341 : vector<8x128xf32>
    %343 = math.tanh %342 : vector<8x128xf32>
    %344 = arith.mulf %337, %343 : vector<8x128xf32>
    %c7_i32 = arith.constant 7 : i32
    %cst_74 = arith.constant dense<0.000000e+00> : vector<8x512xf32>
    %345 = tpu.matmul %318, %0, %cst_74 {dimension_numbers = #tpu.dot_dimension_numbers<[1], [0], [0], [1], [0, 0, 1, 1], [], []>} : vector<8x128xf32>, vector<128x512xf32>, vector<8x512xf32> -> vector<8x512xf32>
    %346 = arith.index_cast %c7_i32 : i32 to index
    %c0_75 = arith.constant 0 : index
    %c0_76 = arith.constant 0 : index
    %347 = vector.load %arg0[%346, %c0_75, %c0_76] : memref<8x8x512xf32, #tpu.memory_space<vmem>>, vector<1x8x512xf32>
    %348 = vector.shape_cast %347 : vector<1x8x512xf32> to vector<8x512xf32>
    %349 = arith.addf %345, %348 : vector<8x512xf32>
    %350 = vector.extract_strided_slice %349 {offsets = [0, 0], sizes = [8, 256], strides = [1, 1]} : vector<8x512xf32> to vector<8x256xf32>
    %351 = arith.negf %350 : vector<8x256xf32>
    %352 = math.exp %351 : vector<8x256xf32>
    %cst_77 = arith.constant 1.000000e+00 : f32
    %353 = vector.broadcast %cst_77 : f32 to vector<8x256xf32>
    %354 = arith.addf %353, %352 : vector<8x256xf32>
    %355 = arith.divf %353, %354 : vector<8x256xf32>
    %356 = vector.extract_strided_slice %349 {offsets = [0, 256], sizes = [8, 128], strides = [1, 1]} : vector<8x512xf32> to vector<8x128xf32>
    %357 = math.tanh %356 : vector<8x128xf32>
    %358 = vector.extract_strided_slice %349 {offsets = [0, 384], sizes = [8, 128], strides = [1, 1]} : vector<8x512xf32> to vector<8x128xf32>
    %359 = arith.negf %358 : vector<8x128xf32>
    %360 = math.exp %359 : vector<8x128xf32>
    %cst_78 = arith.constant 1.000000e+00 : f32
    %361 = vector.broadcast %cst_78 : f32 to vector<8x128xf32>
    %362 = arith.addf %361, %360 : vector<8x128xf32>
    %363 = arith.divf %361, %362 : vector<8x128xf32>
    %364 = vector.extract_strided_slice %355 {offsets = [0, 128], sizes = [8, 128], strides = [1, 1]} : vector<8x256xf32> to vector<8x128xf32>
    %365 = arith.mulf %364, %316 : vector<8x128xf32>
    %366 = vector.extract_strided_slice %355 {offsets = [0, 0], sizes = [8, 128], strides = [1, 1]} : vector<8x256xf32> to vector<8x128xf32>
    %367 = arith.mulf %366, %357 : vector<8x128xf32>
    %368 = arith.addf %365, %367 : vector<8x128xf32>
    %369 = math.tanh %368 : vector<8x128xf32>
    %370 = arith.mulf %363, %369 : vector<8x128xf32>
    %cst_79 = arith.constant dense<0.000000e+00> : vector<8x512xf32>
    %371 = tpu.matmul %318, %1, %cst_79 {dimension_numbers = #tpu.dot_dimension_numbers<[1], [0], [0], [1], [0, 0, 1, 1], [], []>} : vector<8x128xf32>, vector<128x512xf32>, vector<8x512xf32> -> vector<8x512xf32>
    %cst_80 = arith.constant dense<0.000000e+00> : vector<8x512xf32>
    %372 = tpu.matmul %344, %2, %cst_80 {dimension_numbers = #tpu.dot_dimension_numbers<[1], [0], [0], [1], [0, 0, 1, 1], [], []>} : vector<8x128xf32>, vector<128x512xf32>, vector<8x512xf32> -> vector<8x512xf32>
    %373 = arith.addf %371, %372 : vector<8x512xf32>
    %374 = vector.broadcast %3 : vector<1x512xf32> to vector<8x512xf32>
    %375 = arith.addf %373, %374 : vector<8x512xf32>
    %376 = vector.extract_strided_slice %375 {offsets = [0, 0], sizes = [8, 256], strides = [1, 1]} : vector<8x512xf32> to vector<8x256xf32>
    %377 = arith.negf %376 : vector<8x256xf32>
    %378 = math.exp %377 : vector<8x256xf32>
    %cst_81 = arith.constant 1.000000e+00 : f32
    %379 = vector.broadcast %cst_81 : f32 to vector<8x256xf32>
    %380 = arith.addf %379, %378 : vector<8x256xf32>
    %381 = arith.divf %379, %380 : vector<8x256xf32>
    %382 = vector.extract_strided_slice %375 {offsets = [0, 256], sizes = [8, 128], strides = [1, 1]} : vector<8x512xf32> to vector<8x128xf32>
    %383 = math.tanh %382 : vector<8x128xf32>
    %384 = vector.extract_strided_slice %375 {offsets = [0, 384], sizes = [8, 128], strides = [1, 1]} : vector<8x512xf32> to vector<8x128xf32>
    %385 = arith.negf %384 : vector<8x128xf32>
    %386 = math.exp %385 : vector<8x128xf32>
    %cst_82 = arith.constant 1.000000e+00 : f32
    %387 = vector.broadcast %cst_82 : f32 to vector<8x128xf32>
    %388 = arith.addf %387, %386 : vector<8x128xf32>
    %389 = arith.divf %387, %388 : vector<8x128xf32>
    %390 = vector.extract_strided_slice %381 {offsets = [0, 128], sizes = [8, 128], strides = [1, 1]} : vector<8x256xf32> to vector<8x128xf32>
    %391 = arith.mulf %390, %342 : vector<8x128xf32>
    %392 = vector.extract_strided_slice %381 {offsets = [0, 0], sizes = [8, 128], strides = [1, 1]} : vector<8x256xf32> to vector<8x128xf32>
    %393 = arith.mulf %392, %383 : vector<8x128xf32>
    %394 = arith.addf %391, %393 : vector<8x128xf32>
    %395 = math.tanh %394 : vector<8x128xf32>
    %396 = arith.mulf %389, %395 : vector<8x128xf32>
    %c7_i32_83 = arith.constant 7 : i32
    %cst_84 = arith.constant dense<0.000000e+00> : vector<8x512xf32>
    %397 = tpu.matmul %370, %1, %cst_84 {dimension_numbers = #tpu.dot_dimension_numbers<[1], [0], [0], [1], [0, 0, 1, 1], [], []>} : vector<8x128xf32>, vector<128x512xf32>, vector<8x512xf32> -> vector<8x512xf32>
    %cst_85 = arith.constant dense<0.000000e+00> : vector<8x512xf32>
    %398 = tpu.matmul %396, %2, %cst_85 {dimension_numbers = #tpu.dot_dimension_numbers<[1], [0], [0], [1], [0, 0, 1, 1], [], []>} : vector<8x128xf32>, vector<128x512xf32>, vector<8x512xf32> -> vector<8x512xf32>
    %399 = arith.addf %397, %398 : vector<8x512xf32>
    %400 = vector.broadcast %3 : vector<1x512xf32> to vector<8x512xf32>
    %401 = arith.addf %399, %400 : vector<8x512xf32>
    %402 = vector.extract_strided_slice %401 {offsets = [0, 0], sizes = [8, 256], strides = [1, 1]} : vector<8x512xf32> to vector<8x256xf32>
    %403 = arith.negf %402 : vector<8x256xf32>
    %404 = math.exp %403 : vector<8x256xf32>
    %cst_86 = arith.constant 1.000000e+00 : f32
    %405 = vector.broadcast %cst_86 : f32 to vector<8x256xf32>
    %406 = arith.addf %405, %404 : vector<8x256xf32>
    %407 = arith.divf %405, %406 : vector<8x256xf32>
    %408 = vector.extract_strided_slice %401 {offsets = [0, 256], sizes = [8, 128], strides = [1, 1]} : vector<8x512xf32> to vector<8x128xf32>
    %409 = math.tanh %408 : vector<8x128xf32>
    %410 = vector.extract_strided_slice %401 {offsets = [0, 384], sizes = [8, 128], strides = [1, 1]} : vector<8x512xf32> to vector<8x128xf32>
    %411 = arith.negf %410 : vector<8x128xf32>
    %412 = math.exp %411 : vector<8x128xf32>
    %cst_87 = arith.constant 1.000000e+00 : f32
    %413 = vector.broadcast %cst_87 : f32 to vector<8x128xf32>
    %414 = arith.addf %413, %412 : vector<8x128xf32>
    %415 = arith.divf %413, %414 : vector<8x128xf32>
    %416 = vector.extract_strided_slice %407 {offsets = [0, 128], sizes = [8, 128], strides = [1, 1]} : vector<8x256xf32> to vector<8x128xf32>
    %417 = arith.mulf %416, %394 : vector<8x128xf32>
    %418 = vector.extract_strided_slice %407 {offsets = [0, 0], sizes = [8, 128], strides = [1, 1]} : vector<8x256xf32> to vector<8x128xf32>
    %419 = arith.mulf %418, %409 : vector<8x128xf32>
    %420 = arith.addf %417, %419 : vector<8x128xf32>
    %421 = math.tanh %420 : vector<8x128xf32>
    %422 = arith.mulf %415, %421 : vector<8x128xf32>
    %c0_88 = arith.constant 0 : index
    %c0_89 = arith.constant 0 : index
    %423 = vector.load %arg12[%c0_88, %c0_89] : memref<8x128xf32, #tpu.memory_space<vmem>>, vector<8x128xf32>
    tpu.vector_store %arg12[%c0_88, %c0_89], %370 {strides = array<i32>} : memref<8x128xf32, #tpu.memory_space<vmem>>, vector<8x128xf32>,
    %c0_90 = arith.constant 0 : index
    %c0_91 = arith.constant 0 : index
    %424 = vector.load %arg13[%c0_90, %c0_91] : memref<8x128xf32, #tpu.memory_space<vmem>>, vector<8x128xf32>
    tpu.vector_store %arg13[%c0_90, %c0_91], %368 {strides = array<i32>} : memref<8x128xf32, #tpu.memory_space<vmem>>, vector<8x128xf32>,
    %c0_92 = arith.constant 0 : index
    %c0_93 = arith.constant 0 : index
    %425 = vector.load %arg14[%c0_92, %c0_93] : memref<8x128xf32, #tpu.memory_space<vmem>>, vector<8x128xf32>
    tpu.vector_store %arg14[%c0_92, %c0_93], %422 {strides = array<i32>} : memref<8x128xf32, #tpu.memory_space<vmem>>, vector<8x128xf32>,
    %c0_94 = arith.constant 0 : index
    %c0_95 = arith.constant 0 : index
    %426 = vector.load %arg15[%c0_94, %c0_95] : memref<8x128xf32, #tpu.memory_space<vmem>>, vector<8x128xf32>
    tpu.vector_store %arg15[%c0_94, %c0_95], %420 {strides = array<i32>} : memref<8x128xf32, #tpu.memory_space<vmem>>, vector<8x128xf32>,
    %c0_96 = arith.constant 0 : index
    %c0_97 = arith.constant 0 : index
    %427 = vector.load %arg5[%c0_96, %c0_97] : memref<128x128xf32, #tpu.memory_space<vmem>>, vector<128x128xf32>
    %cst_98 = arith.constant dense<0.000000e+00> : vector<8x128xf32>
    %428 = tpu.matmul %422, %427, %cst_98 {dimension_numbers = #tpu.dot_dimension_numbers<[1], [0], [0], [1], [0, 0, 1, 1], [], []>} : vector<8x128xf32>, vector<128x128xf32>, vector<8x128xf32> -> vector<8x128xf32>
    %c0_99 = arith.constant 0 : index
    %c0_100 = arith.constant 0 : index
    %429 = vector.load %arg6[%c0_99, %c0_100] : memref<1x128xf32, #tpu.memory_space<vmem>>, vector<1x128xf32>
    %430 = vector.broadcast %429 : vector<1x128xf32> to vector<8x128xf32>
    %431 = arith.addf %428, %430 : vector<8x128xf32>
    %432 = arith.negf %431 : vector<8x128xf32>
    %433 = math.exp %432 : vector<8x128xf32>
    %cst_101 = arith.constant 1.000000e+00 : f32
    %434 = vector.broadcast %cst_101 : f32 to vector<8x128xf32>
    %435 = arith.addf %434, %433 : vector<8x128xf32>
    %436 = arith.divf %434, %435 : vector<8x128xf32>
    %c0_102 = arith.constant 0 : index
    %c0_103 = arith.constant 0 : index
    %437 = vector.load %arg11[%c0_102, %c0_103] : memref<8x128xf32, #tpu.memory_space<vmem>>, vector<8x128xf32>
    tpu.vector_store %arg11[%c0_102, %c0_103], %436 {strides = array<i32>} : memref<8x128xf32, #tpu.memory_space<vmem>>, vector<8x128xf32>,
    return
  }
}

</mosaic_0001>

<llo_original>
// kernel: tpu_custom_call.1
$region0: #{tpu_custom_call.1}
  #allocation0 [shape = 'u32[]', space=smem, size = 0x4, offset = 0x4, fixed_abs, tag = 'smem constant byte address 0x4 - core index']
  #allocation1 [shape = 'u32[144,128]{1,0:T(1,128)}', space=vmem, size = 0x12000, scoped, tag = 'internal scratch']
  %s0 = inlined_call_operand.hbm [shape: f32[8,8,512], index: 0, kind: input, shape index: {}]
  %s1 = inlined_call_operand.hbm [shape: f32[128,512], index: 1, kind: input, shape index: {}]
  %s2 = inlined_call_operand.hbm [shape: f32[128,512], index: 2, kind: input, shape index: {}]
  %s3 = inlined_call_operand.hbm [shape: f32[128,512], index: 3, kind: input, shape index: {}]
  %s4 = inlined_call_operand.vmem [shape: f32[1,512], index: 4, kind: input, shape index: {}]
  %s5 = inlined_call_operand.hbm [shape: f32[128,128], index: 5, kind: input, shape index: {}]
  %s6 = inlined_call_operand.vmem [shape: f32[1,128], index: 6, kind: input, shape index: {}]
  %s7 = inlined_call_operand.hbm [shape: f32[8,128], index: 7, kind: input, shape index: {}, may-alias: {7,12}]
  %s8 = inlined_call_operand.hbm [shape: f32[8,128], index: 8, kind: input, shape index: {}, may-alias: {8,13}]
  %s9 = inlined_call_operand.hbm [shape: f32[8,128], index: 9, kind: input, shape index: {}, may-alias: {9,14}]
  %s10 = inlined_call_operand.hbm [shape: f32[8,128], index: 10, kind: input, shape index: {}, may-alias: {10,15}]
  %s11 = inlined_call_operand.hbm [shape: f32[8,128], index: 11, kind: output, shape index: {0}]
  %s12 = inlined_call_operand.hbm [shape: f32[8,128], index: 12, kind: output, shape index: {1}, may-alias: {7,12}]
  %s13 = inlined_call_operand.hbm [shape: f32[8,128], index: 13, kind: output, shape index: {2}, may-alias: {8,13}]
  %s14 = inlined_call_operand.hbm [shape: f32[8,128], index: 14, kind: output, shape index: {3}, may-alias: {9,14}]
  %s15 = inlined_call_operand.hbm [shape: f32[8,128], index: 15, kind: output, shape index: {4}, may-alias: {10,15}]
  %16 = xla_tuple %s11, %s12, %s13, %s14, %s15
  %s17 = sld [smem:[#allocation0]]
  $region122: #{tpu_custom_call.1} parent=0
    _
  %s19 = ssub.s32 1, %s17
  %s20 = scalar_select 0, %s19, %s17
  $region1: #{tpu_custom_call.1} parent=0
    #allocation2 [shape = 'u8[131072]{0}', space=vmem, size = 0x20000, scoped, tag = 'input window, operand 0, single buffered']
    #allocation3 [shape = 's32[1]{0}', space=sflag, size = 0x4, scoped, tag = 'scoped memory for tpu_custom_call.1']
    #allocation4 [shape = 's32[1]{0}', space=sflag, size = 0x4, scoped, tag = 'scoped memory for tpu_custom_call.1']
    #allocation5 [shape = 'u8[262144]{0}', space=vmem, size = 0x40000, scoped, tag = 'input window, operand 1, single buffered']
    #allocation6 [shape = 's32[1]{0}', space=sflag, size = 0x4, scoped, tag = 'scoped memory for tpu_custom_call.1']
    #allocation7 [shape = 'u8[262144]{0}', space=vmem, size = 0x40000, scoped, tag = 'input window, operand 2, single buffered']
    #allocation8 [shape = 'u8[262144]{0}', space=vmem, size = 0x40000, scoped, tag = 'input window, operand 3, single buffered']
    #allocation9 [shape = 's32[1]{0}', space=sflag, size = 0x4, scoped, tag = 'scoped memory for tpu_custom_call.1']
    #allocation10 [shape = 'u8[65536]{0}', space=vmem, size = 0x10000, scoped, tag = 'input window, operand 5, single buffered']
    #allocation11 [shape = 'u8[4096]{0}', space=vmem, size = 0x1000, scoped, tag = 'input window, operand 7, single buffered']
    #allocation12 [shape = 's32[1]{0}', space=sflag, size = 0x4, scoped, tag = 'scoped memory for tpu_custom_call.1']
    #allocation13 [shape = 'u8[4096]{0}', space=vmem, size = 0x1000, scoped, tag = 'input window, operand 8, single buffered']
    #allocation14 [shape = 'u8[4096]{0}', space=vmem, size = 0x1000, scoped, tag = 'input window, operand 9, single buffered']
    #allocation15 [shape = 's32[1]{0}', space=sflag, size = 0x4, scoped, tag = 'scoped memory for tpu_custom_call.1']
    #allocation16 [shape = 'u8[4096]{0}', space=vmem, size = 0x1000, scoped, tag = 'input window, operand 10, single buffered']
    #allocation17 [shape = 'u8[4096]{0}', space=vmem, size = 0x1000, scoped, tag = 'output window, operand 0, single buffered']
    #allocation18 [shape = 'u8[4096]{0}', space=vmem, size = 0x1000, scoped, tag = 'output window, operand 1, single buffered']
    #allocation19 [shape = 's32[1]{0}', space=sflag, size = 0x4, scoped, tag = 'scoped memory for tpu_custom_call.1']
    #allocation20 [shape = 'u8[4096]{0}', space=vmem, size = 0x1000, scoped, tag = 'output window, operand 2, single buffered']
    #allocation21 [shape = 'u8[4096]{0}', space=vmem, size = 0x1000, scoped, tag = 'output window, operand 3, single buffered']
    #allocation22 [shape = 's32[1]{0}', space=sflag, size = 0x4, scoped, tag = 'scoped memory for tpu_custom_call.1']
    #allocation23 [shape = 'u8[4096]{0}', space=vmem, size = 0x1000, scoped, tag = 'output window, operand 4, single buffered']
    %21 = vsyncpa [#allocation3], 0
    %22 = vsyncpa [#allocation6], 0
    %23 = vsyncpa [#allocation9], 0
    %24 = vsyncpa [#allocation12], 0
    %25 = vsyncpa [#allocation15], 0
    %26 = vsyncpa [#allocation4], 0
    %27 = vsyncpa [#allocation19], 0
    %28 = vsyncpa [#allocation22], 0
    // Predicated region
    $region2: #{tpu_custom_call.1} parent=1 // pred_check
      _
    $region3: #{tpu_custom_call.1} parent=1 // pred_check_branch
      %30 = sbr.rel (0) target = $region5
    $region4: #{tpu_custom_call.1} parent=1 // pred_region
      %s32 = ssub.s32 4096, 4096
      %33 = vsyncadd [#allocation3], %s32
      %s34 = sshll.u32 [#allocation2], 4
      %s35 = int_to_ptr.vmem [resolvable:$true] %s34
      %40 = dma.hbm_to_vmem [thread:$0]  %s0, 4096, %s35, [#allocation3], 512, 512, 32
    $region5: #{tpu_custom_call.1} parent=1 // pred_fallthru
      _
    // Predicated region
    $region6: #{tpu_custom_call.1} parent=1 // pred_check
      _
    $region7: #{tpu_custom_call.1} parent=1 // pred_check_branch
      %42 = sbr.rel (0) target = $region9
    $region8: #{tpu_custom_call.1} parent=1 // pred_region
      %s44 = ssub.s32 8192, 8192
      %45 = vsyncadd [#allocation6], %s44
      %s46 = sshll.u32 [#allocation5], 4
      %s47 = int_to_ptr.vmem [resolvable:$true] %s46
      %52 = dma.hbm_to_vmem [thread:$0]  %s1, 8192, %s47, [#allocation6], 512, 512, 32
    $region9: #{tpu_custom_call.1} parent=1 // pred_fallthru
      _
    // Predicated region
    $region10: #{tpu_custom_call.1} parent=1 // pred_check
      _
    $region11: #{tpu_custom_call.1} parent=1 // pred_check_branch
      %54 = sbr.rel (0) target = $region13
    $region12: #{tpu_custom_call.1} parent=1 // pred_region
      %s56 = ssub.s32 8192, 8192
      %57 = vsyncadd [#allocation6], %s56
      %s58 = sshll.u32 [#allocation7], 4
      %s59 = int_to_ptr.vmem [resolvable:$true] %s58
      %64 = dma.hbm_to_vmem [thread:$0]  %s2, 8192, %s59, [#allocation6], 512, 512, 32
    $region13: #{tpu_custom_call.1} parent=1 // pred_fallthru
      _
    // Predicated region
    $region14: #{tpu_custom_call.1} parent=1 // pred_check
      _
    $region15: #{tpu_custom_call.1} parent=1 // pred_check_branch
      %66 = sbr.rel (0) target = $region17
    $region16: #{tpu_custom_call.1} parent=1 // pred_region
      %s68 = ssub.s32 8192, 8192
      %69 = vsyncadd [#allocation9], %s68
      %s70 = sshll.u32 [#allocation8], 4
      %s71 = int_to_ptr.vmem [resolvable:$true] %s70
      %76 = dma.hbm_to_vmem [thread:$0]  %s3, 8192, %s71, [#allocation9], 512, 512, 32
    $region17: #{tpu_custom_call.1} parent=1 // pred_fallthru
      _
    // Predicated region
    $region18: #{tpu_custom_call.1} parent=1 // pred_check
      _
    $region19: #{tpu_custom_call.1} parent=1 // pred_check_branch
      %78 = sbr.rel (0) target = $region21
    $region20: #{tpu_custom_call.1} parent=1 // pred_region
      _
    $region21: #{tpu_custom_call.1} parent=1 // pred_fallthru
      _
    // Predicated region
    $region22: #{tpu_custom_call.1} parent=1 // pred_check
      _
    $region23: #{tpu_custom_call.1} parent=1 // pred_check_branch
      %80 = sbr.rel (0) target = $region25
    $region24: #{tpu_custom_call.1} parent=1 // pred_region
      %s82 = ssub.s32 2048, 2048
      %83 = vsyncadd [#allocation9], %s82
      %s84 = sshll.u32 [#allocation10], 4
      %s85 = int_to_ptr.vmem [resolvable:$true] %s84
      %90 = dma.hbm_to_vmem [thread:$0]  %s5, 2048, %s85, [#allocation9], 128, 128, 8
    $region25: #{tpu_custom_call.1} parent=1 // pred_fallthru
      _
    // Predicated region
    $region26: #{tpu_custom_call.1} parent=1 // pred_check
      _
    $region27: #{tpu_custom_call.1} parent=1 // pred_check_branch
      %92 = sbr.rel (0) target = $region29
    $region28: #{tpu_custom_call.1} parent=1 // pred_region
      _
    $region29: #{tpu_custom_call.1} parent=1 // pred_fallthru
      _
    // Predicated region
    $region30: #{tpu_custom_call.1} parent=1 // pred_check
      _
    $region31: #{tpu_custom_call.1} parent=1 // pred_check_branch
      %94 = sbr.rel (0) target = $region33
    $region32: #{tpu_custom_call.1} parent=1 // pred_region
      %s96 = ssub.s32 128, 128
      %97 = vsyncadd [#allocation12], %s96
      %s99 = sshll.u32 [#allocation11], 4
      %s100 = int_to_ptr.vmem [resolvable:$true] %s99
      %102 = dma.hbm_to_vmem [thread:$0]  %s7, 128, %s100, [#allocation12]
    $region33: #{tpu_custom_call.1} parent=1 // pred_fallthru
      _
    // Predicated region
    $region34: #{tpu_custom_call.1} parent=1 // pred_check
      _
    $region35: #{tpu_custom_call.1} parent=1 // pred_check_branch
      %104 = sbr.rel (0) target = $region37
    $region36: #{tpu_custom_call.1} parent=1 // pred_region
      %s106 = ssub.s32 128, 128
      %107 = vsyncadd [#allocation12], %s106
      %s109 = sshll.u32 [#allocation13], 4
      %s110 = int_to_ptr.vmem [resolvable:$true] %s109
      %112 = dma.hbm_to_vmem [thread:$0]  %s8, 128, %s110, [#allocation12]
    $region37: #{tpu_custom_call.1} parent=1 // pred_fallthru
      _
    // Predicated region
    $region38: #{tpu_custom_call.1} parent=1 // pred_check
      _
    $region39: #{tpu_custom_call.1} parent=1 // pred_check_branch
      %114 = sbr.rel (0) target = $region41
    $region40: #{tpu_custom_call.1} parent=1 // pred_region
      %s116 = ssub.s32 128, 128
      %117 = vsyncadd [#allocation15], %s116
      %s119 = sshll.u32 [#allocation14], 4
      %s120 = int_to_ptr.vmem [resolvable:$true] %s119
      %122 = dma.hbm_to_vmem [thread:$0]  %s9, 128, %s120, [#allocation15]
    $region41: #{tpu_custom_call.1} parent=1 // pred_fallthru
      _
    // Predicated region
    $region42: #{tpu_custom_call.1} parent=1 // pred_check
      _
    $region43: #{tpu_custom_call.1} parent=1 // pred_check_branch
      %124 = sbr.rel (0) target = $region45
    $region44: #{tpu_custom_call.1} parent=1 // pred_region
      %s126 = ssub.s32 128, 128
      %127 = vsyncadd [#allocation15], %s126
      %s129 = sshll.u32 [#allocation16], 4
      %s130 = int_to_ptr.vmem [resolvable:$true] %s129
      %132 = dma.hbm_to_vmem [thread:$0]  %s10, 128, %s130, [#allocation15]
    $region45: #{tpu_custom_call.1} parent=1 // pred_fallthru
      _
    // Predicated region
    $region46: #{tpu_custom_call.1} parent=1 // pred_check
      _
    $region47: #{tpu_custom_call.1} parent=1 // pred_check_branch
      %134 = sbr.rel (0) target = $region49
    $region48: #{tpu_custom_call.1} parent=1 // pred_region
      %135 = dma.done [#allocation3], 4096
    $region49: #{tpu_custom_call.1} parent=1 // pred_fallthru
      _
    // Predicated region
    $region50: #{tpu_custom_call.1} parent=1 // pred_check
      _
    $region51: #{tpu_custom_call.1} parent=1 // pred_check_branch
      %137 = sbr.rel (0) target = $region53
    $region52: #{tpu_custom_call.1} parent=1 // pred_region
      %138 = dma.done [#allocation6], 8192
    $region53: #{tpu_custom_call.1} parent=1 // pred_fallthru
      _
    // Predicated region
    $region54: #{tpu_custom_call.1} parent=1 // pred_check
      _
    $region55: #{tpu_custom_call.1} parent=1 // pred_check_branch
      %140 = sbr.rel (0) target = $region57
    $region56: #{tpu_custom_call.1} parent=1 // pred_region
      %141 = dma.done [#allocation6], 8192
    $region57: #{tpu_custom_call.1} parent=1 // pred_fallthru
      _
    // Predicated region
    $region58: #{tpu_custom_call.1} parent=1 // pred_check
      _
    $region59: #{tpu_custom_call.1} parent=1 // pred_check_branch
      %143 = sbr.rel (0) target = $region61
    $region60: #{tpu_custom_call.1} parent=1 // pred_region
      %144 = dma.done [#allocation9], 8192
    $region61: #{tpu_custom_call.1} parent=1 // pred_fallthru
      _
    // Predicated region
    $region62: #{tpu_custom_call.1} parent=1 // pred_check
      _
    $region63: #{tpu_custom_call.1} parent=1 // pred_check_branch
      %146 = sbr.rel (0) target = $region65
    $region64: #{tpu_custom_call.1} parent=1 // pred_region
      %147 = dma.done [#allocation9], 2048
    $region65: #{tpu_custom_call.1} parent=1 // pred_fallthru
      _
    // Predicated region
    $region66: #{tpu_custom_call.1} parent=1 // pred_check
      _
    $region67: #{tpu_custom_call.1} parent=1 // pred_check_branch
      %149 = sbr.rel (0) target = $region69
    $region68: #{tpu_custom_call.1} parent=1 // pred_region
      %150 = dma.done [#allocation12], 128
    $region69: #{tpu_custom_call.1} parent=1 // pred_fallthru
      _
    // Predicated region
    $region70: #{tpu_custom_call.1} parent=1 // pred_check
      _
    $region71: #{tpu_custom_call.1} parent=1 // pred_check_branch
      %152 = sbr.rel (0) target = $region73
    $region72: #{tpu_custom_call.1} parent=1 // pred_region
      %153 = dma.done [#allocation12], 128
    $region73: #{tpu_custom_call.1} parent=1 // pred_fallthru
      _
    // Predicated region
    $region74: #{tpu_custom_call.1} parent=1 // pred_check
      _
    $region75: #{tpu_custom_call.1} parent=1 // pred_check_branch
      %155 = sbr.rel (0) target = $region77
    $region76: #{tpu_custom_call.1} parent=1 // pred_region
      %156 = dma.done [#allocation15], 128
    $region77: #{tpu_custom_call.1} parent=1 // pred_fallthru
      _
    // Predicated region
    $region78: #{tpu_custom_call.1} parent=1 // pred_check
      _
    $region79: #{tpu_custom_call.1} parent=1 // pred_check_branch
      %158 = sbr.rel (0) target = $region81
    $region80: #{tpu_custom_call.1} parent=1 // pred_region
      %159 = dma.done [#allocation15], 128
    $region81: #{tpu_custom_call.1} parent=1 // pred_fallthru
      _
    %v160 = vld [vmem:[#allocation5] sm:$0xff]
    %v161 = vld [vmem:[#allocation5 + $0x8] sm:$0xff]
    %v162 = vld [vmem:[#allocation5 + $0x10] sm:$0xff]
    %v163 = vld [vmem:[#allocation5 + $0x18] sm:$0xff]
    %v164 = vld [vmem:[#allocation5 + $0x20] sm:$0xff]
    %v165 = vld [vmem:[#allocation5 + $0x28] sm:$0xff]
    %v166 = vld [vmem:[#allocation5 + $0x30] sm:$0xff]
    %v167 = vld [vmem:[#allocation5 + $0x38] sm:$0xff]
    %v168 = vld [vmem:[#allocation5 + $0x40] sm:$0xff]
    %v169 = vld [vmem:[#allocation5 + $0x48] sm:$0xff]
    %v170 = vld [vmem:[#allocation5 + $0x50] sm:$0xff]
    %v171 = vld [vmem:[#allocation5 + $0x58] sm:$0xff]
    %v172 = vld [vmem:[#allocation5 + $0x60] sm:$0xff]
    %v173 = vld [vmem:[#allocation5 + $0x68] sm:$0xff]
    %v174 = vld [vmem:[#allocation5 + $0x70] sm:$0xff]
    %v175 = vld [vmem:[#allocation5 + $0x78] sm:$0xff]
    %v176 = vld [vmem:[#allocation5 + $0x80] sm:$0xff]
    %v177 = vld [vmem:[#allocation5 + $0x88] sm:$0xff]
    %v178 = vld [vmem:[#allocation5 + $0x90] sm:$0xff]
    %v179 = vld [vmem:[#allocation5 + $0x98] sm:$0xff]
    %v180 = vld [vmem:[#allocation5 + $0xa0] sm:$0xff]
    %v181 = vld [vmem:[#allocation5 + $0xa8] sm:$0xff]
    %v182 = vld [vmem:[#allocation5 + $0xb0] sm:$0xff]
    %v183 = vld [vmem:[#allocation5 + $0xb8] sm:$0xff]
    %v184 = vld [vmem:[#allocation5 + $0xc0] sm:$0xff]
    %v185 = vld [vmem:[#allocation5 + $0xc8] sm:$0xff]
    %v186 = vld [vmem:[#allocation5 + $0xd0] sm:$0xff]
    %v187 = vld [vmem:[#allocation5 + $0xd8] sm:$0xff]
    %v188 = vld [vmem:[#allocation5 + $0xe0] sm:$0xff]
    %v189 = vld [vmem:[#allocation5 + $0xe8] sm:$0xff]
    %v190 = vld [vmem:[#allocation5 + $0xf0] sm:$0xff]
    %v191 = vld [vmem:[#allocation5 + $0xf8] sm:$0xff]
    %v192 = vld [vmem:[#allocation5 + $0x100] sm:$0xff]
    %v193 = vld [vmem:[#allocation5 + $0x108] sm:$0xff]
    %v194 = vld [vmem:[#allocation5 + $0x110] sm:$0xff]
    %v195 = vld [vmem:[#allocation5 + $0x118] sm:$0xff]
    %v196 = vld [vmem:[#allocation5 + $0x120] sm:$0xff]
    %v197 = vld [vmem:[#allocation5 + $0x128] sm:$0xff]
    %v198 = vld [vmem:[#allocation5 + $0x130] sm:$0xff]
    %v199 = vld [vmem:[#allocation5 + $0x138] sm:$0xff]
    %v200 = vld [vmem:[#allocation5 + $0x140] sm:$0xff]
    %v201 = vld [vmem:[#allocation5 + $0x148] sm:$0xff]
    %v202 = vld [vmem:[#allocation5 + $0x150] sm:$0xff]
    %v203 = vld [vmem:[#allocation5 + $0x158] sm:$0xff]
    %v204 = vld [vmem:[#allocation5 + $0x160] sm:$0xff]
    %v205 = vld [vmem:[#allocation5 + $0x168] sm:$0xff]
    %v206 = vld [vmem:[#allocation5 + $0x170] sm:$0xff]
    %v207 = vld [vmem:[#allocation5 + $0x178] sm:$0xff]
    %v208 = vld [vmem:[#allocation5 + $0x180] sm:$0xff]
    %v209 = vld [vmem:[#allocation5 + $0x188] sm:$0xff]
    %v210 = vld [vmem:[#allocation5 + $0x190] sm:$0xff]
    %v211 = vld [vmem:[#allocation5 + $0x198] sm:$0xff]
    %v212 = vld [vmem:[#allocation5 + $0x1a0] sm:$0xff]
    %v213 = vld [vmem:[#allocation5 + $0x1a8] sm:$0xff]
    %v214 = vld [vmem:[#allocation5 + $0x1b0] sm:$0xff]
    %v215 = vld [vmem:[#allocation5 + $0x1b8] sm:$0xff]
    %v216 = vld [vmem:[#allocation5 + $0x1c0] sm:$0xff]
    %v217 = vld [vmem:[#allocation5 + $0x1c8] sm:$0xff]
    %v218 = vld [vmem:[#allocation5 + $0x1d0] sm:$0xff]
    %v219 = vld [vmem:[#allocation5 + $0x1d8] sm:$0xff]
    %v220 = vld [vmem:[#allocation5 + $0x1e0] sm:$0xff]
    %v221 = vld [vmem:[#allocation5 + $0x1e8] sm:$0xff]
    %v222 = vld [vmem:[#allocation5 + $0x1f0] sm:$0xff]
    %v223 = vld [vmem:[#allocation5 + $0x1f8] sm:$0xff]
    %v224 = vld [vmem:[#allocation7] sm:$0xff]
    %v225 = vld [vmem:[#allocation7 + $0x8] sm:$0xff]
    %v226 = vld [vmem:[#allocation7 + $0x10] sm:$0xff]
    %v227 = vld [vmem:[#allocation7 + $0x18] sm:$0xff]
    %v228 = vld [vmem:[#allocation7 + $0x20] sm:$0xff]
    %v229 = vld [vmem:[#allocation7 + $0x28] sm:$0xff]
    %v230 = vld [vmem:[#allocation7 + $0x30] sm:$0xff]
    %v231 = vld [vmem:[#allocation7 + $0x38] sm:$0xff]
    %v232 = vld [vmem:[#allocation7 + $0x40] sm:$0xff]
    %v233 = vld [vmem:[#allocation7 + $0x48] sm:$0xff]
    %v234 = vld [vmem:[#allocation7 + $0x50] sm:$0xff]
    %v235 = vld [vmem:[#allocation7 + $0x58] sm:$0xff]
    %v236 = vld [vmem:[#allocation7 + $0x60] sm:$0xff]
    %v237 = vld [vmem:[#allocation7 + $0x68] sm:$0xff]
    %v238 = vld [vmem:[#allocation7 + $0x70] sm:$0xff]
    %v239 = vld [vmem:[#allocation7 + $0x78] sm:$0xff]
    %v240 = vld [vmem:[#allocation7 + $0x80] sm:$0xff]
    %v241 = vld [vmem:[#allocation7 + $0x88] sm:$0xff]
    %v242 = vld [vmem:[#allocation7 + $0x90] sm:$0xff]
    %v243 = vld [vmem:[#allocation7 + $0x98] sm:$0xff]
    %v244 = vld [vmem:[#allocation7 + $0xa0] sm:$0xff]
    %v245 = vld [vmem:[#allocation7 + $0xa8] sm:$0xff]
    %v246 = vld [vmem:[#allocation7 + $0xb0] sm:$0xff]
    %v247 = vld [vmem:[#allocation7 + $0xb8] sm:$0xff]
    %v248 = vld [vmem:[#allocation7 + $0xc0] sm:$0xff]
    %v249 = vld [vmem:[#allocation7 + $0xc8] sm:$0xff]
    %v250 = vld [vmem:[#allocation7 + $0xd0] sm:$0xff]
    %v251 = vld [vmem:[#allocation7 + $0xd8] sm:$0xff]
    %v252 = vld [vmem:[#allocation7 + $0xe0] sm:$0xff]
    %v253 = vld [vmem:[#allocation7 + $0xe8] sm:$0xff]
    %v254 = vld [vmem:[#allocation7 + $0xf0] sm:$0xff]
    %v255 = vld [vmem:[#allocation7 + $0xf8] sm:$0xff]
    %v256 = vld [vmem:[#allocation7 + $0x100] sm:$0xff]
    %v257 = vld [vmem:[#allocation7 + $0x108] sm:$0xff]
    %v258 = vld [vmem:[#allocation7 + $0x110] sm:$0xff]
    %v259 = vld [vmem:[#allocation7 + $0x118] sm:$0xff]
    %v260 = vld [vmem:[#allocation7 + $0x120] sm:$0xff]
    %v261 = vld [vmem:[#allocation7 + $0x128] sm:$0xff]
    %v262 = vld [vmem:[#allocation7 + $0x130] sm:$0xff]
    %v263 = vld [vmem:[#allocation7 + $0x138] sm:$0xff]
    %v264 = vld [vmem:[#allocation7 + $0x140] sm:$0xff]
    %v265 = vld [vmem:[#allocation7 + $0x148] sm:$0xff]
    %v266 = vld [vmem:[#allocation7 + $0x150] sm:$0xff]
    %v267 = vld [vmem:[#allocation7 + $0x158] sm:$0xff]
    %v268 = vld [vmem:[#allocation7 + $0x160] sm:$0xff]
    %v269 = vld [vmem:[#allocation7 + $0x168] sm:$0xff]
    %v270 = vld [vmem:[#allocation7 + $0x170] sm:$0xff]
    %v271 = vld [vmem:[#allocation7 + $0x178] sm:$0xff]
    %v272 = vld [vmem:[#allocation7 + $0x180] sm:$0xff]
    %v273 = vld [vmem:[#allocation7 + $0x188] sm:$0xff]
    %v274 = vld [vmem:[#allocation7 + $0x190] sm:$0xff]
    %v275 = vld [vmem:[#allocation7 + $0x198] sm:$0xff]
    %v276 = vld [vmem:[#allocation7 + $0x1a0] sm:$0xff]
    %v277 = vld [vmem:[#allocation7 + $0x1a8] sm:$0xff]
    %v278 = vld [vmem:[#allocation7 + $0x1b0] sm:$0xff]
    %v279 = vld [vmem:[#allocation7 + $0x1b8] sm:$0xff]
    %v280 = vld [vmem:[#allocation7 + $0x1c0] sm:$0xff]
    %v281 = vld [vmem:[#allocation7 + $0x1c8] sm:$0xff]
    %v282 = vld [vmem:[#allocation7 + $0x1d0] sm:$0xff]
    %v283 = vld [vmem:[#allocation7 + $0x1d8] sm:$0xff]
    %v284 = vld [vmem:[#allocation7 + $0x1e0] sm:$0xff]
    %v285 = vld [vmem:[#allocation7 + $0x1e8] sm:$0xff]
    %v286 = vld [vmem:[#allocation7 + $0x1f0] sm:$0xff]
    %v287 = vld [vmem:[#allocation7 + $0x1f8] sm:$0xff]
    %v288 = vld [vmem:[#allocation8] sm:$0xff]
    %v289 = vld [vmem:[#allocation8 + $0x8] sm:$0xff]
    %v290 = vld [vmem:[#allocation8 + $0x10] sm:$0xff]
    %v291 = vld [vmem:[#allocation8 + $0x18] sm:$0xff]
    %v292 = vld [vmem:[#allocation8 + $0x20] sm:$0xff]
    %v293 = vld [vmem:[#allocation8 + $0x28] sm:$0xff]
    %v294 = vld [vmem:[#allocation8 + $0x30] sm:$0xff]
    %v295 = vld [vmem:[#allocation8 + $0x38] sm:$0xff]
    %v296 = vld [vmem:[#allocation8 + $0x40] sm:$0xff]
    %v297 = vld [vmem:[#allocation8 + $0x48] sm:$0xff]
    %v298 = vld [vmem:[#allocation8 + $0x50] sm:$0xff]
    %v299 = vld [vmem:[#allocation8 + $0x58] sm:$0xff]
    %v300 = vld [vmem:[#allocation8 + $0x60] sm:$0xff]
    %v301 = vld [vmem:[#allocation8 + $0x68] sm:$0xff]
    %v302 = vld [vmem:[#allocation8 + $0x70] sm:$0xff]
    %v303 = vld [vmem:[#allocation8 + $0x78] sm:$0xff]
    %v304 = vld [vmem:[#allocation8 + $0x80] sm:$0xff]
    %v305 = vld [vmem:[#allocation8 + $0x88] sm:$0xff]
    %v306 = vld [vmem:[#allocation8 + $0x90] sm:$0xff]
    %v307 = vld [vmem:[#allocation8 + $0x98] sm:$0xff]
    %v308 = vld [vmem:[#allocation8 + $0xa0] sm:$0xff]
    %v309 = vld [vmem:[#allocation8 + $0xa8] sm:$0xff]
    %v310 = vld [vmem:[#allocation8 + $0xb0] sm:$0xff]
    %v311 = vld [vmem:[#allocation8 + $0xb8] sm:$0xff]
    %v312 = vld [vmem:[#allocation8 + $0xc0] sm:$0xff]
    %v313 = vld [vmem:[#allocation8 + $0xc8] sm:$0xff]
    %v314 = vld [vmem:[#allocation8 + $0xd0] sm:$0xff]
    %v315 = vld [vmem:[#allocation8 + $0xd8] sm:$0xff]
    %v316 = vld [vmem:[#allocation8 + $0xe0] sm:$0xff]
    %v317 = vld [vmem:[#allocation8 + $0xe8] sm:$0xff]
    %v318 = vld [vmem:[#allocation8 + $0xf0] sm:$0xff]
    %v319 = vld [vmem:[#allocation8 + $0xf8] sm:$0xff]
    %v320 = vld [vmem:[#allocation8 + $0x100] sm:$0xff]
    %v321 = vld [vmem:[#allocation8 + $0x108] sm:$0xff]
    %v322 = vld [vmem:[#allocation8 + $0x110] sm:$0xff]
    %v323 = vld [vmem:[#allocation8 + $0x118] sm:$0xff]
    %v324 = vld [vmem:[#allocation8 + $0x120] sm:$0xff]
    %v325 = vld [vmem:[#allocation8 + $0x128] sm:$0xff]
    %v326 = vld [vmem:[#allocation8 + $0x130] sm:$0xff]
    %v327 = vld [vmem:[#allocation8 + $0x138] sm:$0xff]
    %v328 = vld [vmem:[#allocation8 + $0x140] sm:$0xff]
    %v329 = vld [vmem:[#allocation8 + $0x148] sm:$0xff]
    %v330 = vld [vmem:[#allocation8 + $0x150] sm:$0xff]
    %v331 = vld [vmem:[#allocation8 + $0x158] sm:$0xff]
    %v332 = vld [vmem:[#allocation8 + $0x160] sm:$0xff]
    %v333 = vld [vmem:[#allocation8 + $0x168] sm:$0xff]
    %v334 = vld [vmem:[#allocation8 + $0x170] sm:$0xff]
    %v335 = vld [vmem:[#allocation8 + $0x178] sm:$0xff]
    %v336 = vld [vmem:[#allocation8 + $0x180] sm:$0xff]
    %v337 = vld [vmem:[#allocation8 + $0x188] sm:$0xff]
    %v338 = vld [vmem:[#allocation8 + $0x190] sm:$0xff]
    %v339 = vld [vmem:[#allocation8 + $0x198] sm:$0xff]
    %v340 = vld [vmem:[#allocation8 + $0x1a0] sm:$0xff]
    %v341 = vld [vmem:[#allocation8 + $0x1a8] sm:$0xff]
    %v342 = vld [vmem:[#allocation8 + $0x1b0] sm:$0xff]
    %v343 = vld [vmem:[#allocation8 + $0x1b8] sm:$0xff]
    %v344 = vld [vmem:[#allocation8 + $0x1c0] sm:$0xff]
    %v345 = vld [vmem:[#allocation8 + $0x1c8] sm:$0xff]
    %v346 = vld [vmem:[#allocation8 + $0x1d0] sm:$0xff]
    %v347 = vld [vmem:[#allocation8 + $0x1d8] sm:$0xff]
    %v348 = vld [vmem:[#allocation8 + $0x1e0] sm:$0xff]
    %v349 = vld [vmem:[#allocation8 + $0x1e8] sm:$0xff]
    %v350 = vld [vmem:[#allocation8 + $0x1f0] sm:$0xff]
    %v351 = vld [vmem:[#allocation8 + $0x1f8] sm:$0xff]
    %v352 = vld [vmem:[%s4] sm:$0xf]
    %v353 = vld [vmem:[#allocation11] sm:$0xff]
    %v354 = vld [vmem:[#allocation13] sm:$0xff]
    %v355 = vld [vmem:[#allocation2] sm:$0xff]
    %v356 = vld [vmem:[#allocation2 + $0x8] sm:$0xff]
    %v357 = vld [vmem:[#allocation2 + $0x10] sm:$0xff]
    %v358 = vld [vmem:[#allocation2 + $0x18] sm:$0xff]
    %359 = vmatprep.subr.mxu0 %v161
    %360 = vmatpush1.msra.mxu0 %v160
    %361 = vmatprep.subr.mxu0 %v165
    %362 = vmatpush1.msra.mxu0 %v164
    %363 = vmatprep.subr.mxu0 %v169
    %364 = vmatpush1.msra.mxu0 %v168
    %365 = vmatprep.subr.mxu0 %v173
    %366 = vmatpush1.msra.mxu0 %v172
    %367 = vmatprep.subr.mxu0 %v177
    %368 = vmatpush1.msra.mxu0 %v176
    %369 = vmatprep.subr.mxu0 %v181
    %370 = vmatpush1.msra.mxu0 %v180
    %371 = vmatprep.subr.mxu0 %v185
    %372 = vmatpush1.msra.mxu0 %v184
    %373 = vmatprep.subr.mxu0 %v189
    %374 = vmatpush1.msra.mxu0 %v188
    %375 = vmatprep.subr.mxu0 %v193
    %376 = vmatpush1.msra.mxu0 %v192
    %377 = vmatprep.subr.mxu0 %v197
    %378 = vmatpush1.msra.mxu0 %v196
    %379 = vmatprep.subr.mxu0 %v201
    %380 = vmatpush1.msra.mxu0 %v200
    %381 = vmatprep.subr.mxu0 %v205
    %382 = vmatpush1.msra.mxu0 %v204
    %383 = vmatprep.subr.mxu0 %v209
    %384 = vmatpush1.msra.mxu0 %v208
    %385 = vmatprep.subr.mxu0 %v213
    %386 = vmatpush1.msra.mxu0 %v212
    %387 = vmatprep.subr.mxu0 %v217
    %388 = vmatpush1.msra.mxu0 %v216
    %389 = vmatprep.subr.mxu0 %v221
    %390 = vmatpush1.msra.mxu0 %v220
    %391 = vmatprep.subr.mxu0 0.0
    %392 = vmatpush1.msra.mxu0 0.0
    %393 = vmatprep.subr.mxu0 0.0
    %394 = vmatpush1.msra.mxu0 0.0
    %395 = vmatprep.subr.mxu0 0.0
    %396 = vmatpush1.msra.mxu0 0.0
    %397 = vmatprep.subr.mxu0 0.0
    %398 = vmatpush1.msra.mxu0 0.0
    %399 = vmatprep.subr.mxu0 0.0
    %400 = vmatpush1.msra.mxu0 0.0
    %401 = vmatprep.subr.mxu0 0.0
    %402 = vmatpush1.msra.mxu0 0.0
    %403 = vmatprep.subr.mxu0 0.0
    %404 = vmatpush1.msra.mxu0 0.0
    %405 = vmatprep.subr.mxu0 0.0
    %406 = vmatpush1.msra.mxu0 0.0
    %407 = vmatprep.subr.mxu0 0.0
    %408 = vmatpush1.msra.mxu0 0.0
    %409 = vmatprep.subr.mxu0 0.0
    %410 = vmatpush1.msra.mxu0 0.0
    %411 = vmatprep.subr.mxu0 0.0
    %412 = vmatpush1.msra.mxu0 0.0
    %413 = vmatprep.subr.mxu0 0.0
    %414 = vmatpush1.msra.mxu0 0.0
    %415 = vmatprep.subr.mxu0 0.0
    %416 = vmatpush1.msra.mxu0 0.0
    %417 = vmatprep.subr.mxu0 0.0
    %418 = vmatpush1.msra.mxu0 0.0
    %419 = vmatprep.subr.mxu0 0.0
    %420 = vmatpush1.msra.mxu0 0.0
    %421 = vmatprep.subr.mxu0 0.0
    %422 = vmatpush1.msra.mxu0 0.0
    %423 = vmatprep.mubr.f32.mxu0 0.0
    %424 = vmatmul.mubr.f32.gmra.mrb[0].mxu0 %v353
    %v425 = vpop.f32.mrb[0].mxu0
    %v426 = vadd.f32 %v355, %v425
    %v427 = vpop.f32.mrb[0].mxu0
    %v428 = vadd.f32 %v356, %v427
    %429 = vdwg.mxu0
    %430 = vmatprep.subr.mxu0 %v163
    %431 = vmatpush1.msra.mxu0 %v162
    %432 = vmatprep.subr.mxu0 %v167
    %433 = vmatpush1.msra.mxu0 %v166
    %434 = vmatprep.subr.mxu0 %v171
    %435 = vmatpush1.msra.mxu0 %v170
    %436 = vmatprep.subr.mxu0 %v175
    %437 = vmatpush1.msra.mxu0 %v174
    %438 = vmatprep.subr.mxu0 %v179
    %439 = vmatpush1.msra.mxu0 %v178
    %440 = vmatprep.subr.mxu0 %v183
    %441 = vmatpush1.msra.mxu0 %v182
    %442 = vmatprep.subr.mxu0 %v187
    %443 = vmatpush1.msra.mxu0 %v186
    %444 = vmatprep.subr.mxu0 %v191
    %445 = vmatpush1.msra.mxu0 %v190
    %446 = vmatprep.subr.mxu0 %v195
    %447 = vmatpush1.msra.mxu0 %v194
    %448 = vmatprep.subr.mxu0 %v199
    %449 = vmatpush1.msra.mxu0 %v198
    %450 = vmatprep.subr.mxu0 %v203
    %451 = vmatpush1.msra.mxu0 %v202
    %452 = vmatprep.subr.mxu0 %v207
    %453 = vmatpush1.msra.mxu0 %v206
    %454 = vmatprep.subr.mxu0 %v211
    %455 = vmatpush1.msra.mxu0 %v210
    %456 = vmatprep.subr.mxu0 %v215
    %457 = vmatpush1.msra.mxu0 %v214
    %458 = vmatprep.subr.mxu0 %v219
    %459 = vmatpush1.msra.mxu0 %v218
    %460 = vmatprep.subr.mxu0 %v223
    %461 = vmatpush1.msra.mxu0 %v222
    %462 = vmatprep.subr.mxu0 0.0
    %463 = vmatpush1.msra.mxu0 0.0
    %464 = vmatprep.subr.mxu0 0.0
    %465 = vmatpush1.msra.mxu0 0.0
    %466 = vmatprep.subr.mxu0 0.0
    %467 = vmatpush1.msra.mxu0 0.0
    %468 = vmatprep.subr.mxu0 0.0
    %469 = vmatpush1.msra.mxu0 0.0
    %470 = vmatprep.subr.mxu0 0.0
    %471 = vmatpush1.msra.mxu0 0.0
    %472 = vmatprep.subr.mxu0 0.0
    %473 = vmatpush1.msra.mxu0 0.0
    %474 = vmatprep.subr.mxu0 0.0
    %475 = vmatpush1.msra.mxu0 0.0
    %476 = vmatprep.subr.mxu0 0.0
    %477 = vmatpush1.msra.mxu0 0.0
    %478 = vmatprep.subr.mxu0 0.0
    %479 = vmatpush1.msra.mxu0 0.0
    %480 = vmatprep.subr.mxu0 0.0
    %481 = vmatpush1.msra.mxu0 0.0
    %482 = vmatprep.subr.mxu0 0.0
    %483 = vmatpush1.msra.mxu0 0.0
    %484 = vmatprep.subr.mxu0 0.0
    %485 = vmatpush1.msra.mxu0 0.0
    %486 = vmatprep.subr.mxu0 0.0
    %487 = vmatpush1.msra.mxu0 0.0
    %488 = vmatprep.subr.mxu0 0.0
    %489 = vmatpush1.msra.mxu0 0.0
    %490 = vmatprep.subr.mxu0 0.0
    %491 = vmatpush1.msra.mxu0 0.0
    %492 = vmatprep.subr.mxu0 0.0
    %493 = vmatpush1.msra.mxu0 0.0
    %494 = vmatprep.mubr.f32.mxu0 0.0
    %495 = vmatmul.mubr.f32.gmra.mrb[0].mxu0 %v353
    %v496 = vpop.f32.mrb[0].mxu0
    %v497 = vadd.f32 %v357, %v496
    %v498 = vpop.f32.mrb[0].mxu0
    %v499 = vadd.f32 %v358, %v498
    %500 = vdwg.mxu0
    %v501 = vxor.u32 %v426, 2147483648
    %v502 = vxor.u32 %v428, 2147483648
    %v503 = vmul.f32 %v501, 1.442695
    %v504 = vpow.pop %v503
    %v505 = vmul.f32 %v502, 1.442695
    %v506 = vpow.pop %v505
    %v507 = vadd.f32 %v504, 1.0
    %v508 = vadd.f32 %v506, 1.0
    %v509 = vrcp.pop %v507
    %v510 = vmul.f32 1.0, %v509
    %v511 = vrcp.pop %v508
    %v512 = vmul.f32 1.0, %v511
    %v513 = vtanh.pop %v497
    %v514 = vxor.u32 %v499, 2147483648
    %v515 = vmul.f32 %v514, 1.442695
    %v516 = vpow.pop %v515
    %v517 = vadd.f32 %v516, 1.0
    %v518 = vrcp.pop %v517
    %v519 = vmul.f32 1.0, %v518
    %v520 = vmul.f32 %v512, %v354
    %v521 = vmul.f32 %v510, %v513
    %v522 = vadd.f32 %v520, %v521
    %v523 = vtanh.pop %v522
    %v524 = vmul.f32 %v519, %v523
    %v525 = vld [vmem:[#allocation14] sm:$0xff]
    %v526 = vld [vmem:[#allocation16] sm:$0xff]
    %s527 = scalar_lea.vmem [#allocation2], 32
    %v528 = vld [vmem:[%s527] sm:$0xff]
    %v529 = vld [vmem:[%s527 + $0x8] sm:$0xff]
    %v530 = vld [vmem:[%s527 + $0x10] sm:$0xff]
    %v531 = vld [vmem:[%s527 + $0x18] sm:$0xff]
    %532 = vmatprep.subr.mxu0 %v161
    %533 = vmatpush1.msra.mxu0 %v160
    %534 = vmatprep.subr.mxu0 %v165
    %535 = vmatpush1.msra.mxu0 %v164
    %536 = vmatprep.subr.mxu0 %v169
    %537 = vmatpush1.msra.mxu0 %v168
    %538 = vmatprep.subr.mxu0 %v173
    %539 = vmatpush1.msra.mxu0 %v172
    %540 = vmatprep.subr.mxu0 %v177
    %541 = vmatpush1.msra.mxu0 %v176
    %542 = vmatprep.subr.mxu0 %v181
    %543 = vmatpush1.msra.mxu0 %v180
    %544 = vmatprep.subr.mxu0 %v185
    %545 = vmatpush1.msra.mxu0 %v184
    %546 = vmatprep.subr.mxu0 %v189
    %547 = vmatpush1.msra.mxu0 %v188
    %548 = vmatprep.subr.mxu0 %v193
    %549 = vmatpush1.msra.mxu0 %v192
    %550 = vmatprep.subr.mxu0 %v197
    %551 = vmatpush1.msra.mxu0 %v196
    %552 = vmatprep.subr.mxu0 %v201
    %553 = vmatpush1.msra.mxu0 %v200
    %554 = vmatprep.subr.mxu0 %v205
    %555 = vmatpush1.msra.mxu0 %v204
    %556 = vmatprep.subr.mxu0 %v209
    %557 = vmatpush1.msra.mxu0 %v208
    %558 = vmatprep.subr.mxu0 %v213
    %559 = vmatpush1.msra.mxu0 %v212
    %560 = vmatprep.subr.mxu0 %v217
    %561 = vmatpush1.msra.mxu0 %v216
    %562 = vmatprep.subr.mxu0 %v221
    %563 = vmatpush1.msra.mxu0 %v220
    %564 = vmatprep.subr.mxu0 0.0
    %565 = vmatpush1.msra.mxu0 0.0
    %566 = vmatprep.subr.mxu0 0.0
    %567 = vmatpush1.msra.mxu0 0.0
    %568 = vmatprep.subr.mxu0 0.0
    %569 = vmatpush1.msra.mxu0 0.0
    %570 = vmatprep.subr.mxu0 0.0
    %571 = vmatpush1.msra.mxu0 0.0
    %572 = vmatprep.subr.mxu0 0.0
    %573 = vmatpush1.msra.mxu0 0.0
    %574 = vmatprep.subr.mxu0 0.0
    %575 = vmatpush1.msra.mxu0 0.0
    %576 = vmatprep.subr.mxu0 0.0
    %577 = vmatpush1.msra.mxu0 0.0
    %578 = vmatprep.subr.mxu0 0.0
    %579 = vmatpush1.msra.mxu0 0.0
    %580 = vmatprep.subr.mxu0 0.0
    %581 = vmatpush1.msra.mxu0 0.0
    %582 = vmatprep.subr.mxu0 0.0
    %583 = vmatpush1.msra.mxu0 0.0
    %584 = vmatprep.subr.mxu0 0.0
    %585 = vmatpush1.msra.mxu0 0.0
    %586 = vmatprep.subr.mxu0 0.0
    %587 = vmatpush1.msra.mxu0 0.0
    %588 = vmatprep.subr.mxu0 0.0
    %589 = vmatpush1.msra.mxu0 0.0
    %590 = vmatprep.subr.mxu0 0.0
    %591 = vmatpush1.msra.mxu0 0.0
    %592 = vmatprep.subr.mxu0 0.0
    %593 = vmatpush1.msra.mxu0 0.0
    %594 = vmatprep.subr.mxu0 0.0
    %595 = vmatpush1.msra.mxu0 0.0
    %596 = vmatprep.mubr.f32.mxu0 0.0
    %597 = vmatmul.mubr.f32.gmra.mrb[0].mxu0 %v524
    %v598 = vpop.f32.mrb[0].mxu0
    %v599 = vadd.f32 %v528, %v598
    %v600 = vpop.f32.mrb[0].mxu0
    %v601 = vadd.f32 %v529, %v600
    %602 = vdwg.mxu0
    %603 = vmatprep.subr.mxu0 %v163
    %604 = vmatpush1.msra.mxu0 %v162
    %605 = vmatprep.subr.mxu0 %v167
    %606 = vmatpush1.msra.mxu0 %v166
    %607 = vmatprep.subr.mxu0 %v171
    %608 = vmatpush1.msra.mxu0 %v170
    %609 = vmatprep.subr.mxu0 %v175
    %610 = vmatpush1.msra.mxu0 %v174
    %611 = vmatprep.subr.mxu0 %v179
    %612 = vmatpush1.msra.mxu0 %v178
    %613 = vmatprep.subr.mxu0 %v183
    %614 = vmatpush1.msra.mxu0 %v182
    %615 = vmatprep.subr.mxu0 %v187
    %616 = vmatpush1.msra.mxu0 %v186
    %617 = vmatprep.subr.mxu0 %v191
    %618 = vmatpush1.msra.mxu0 %v190
    %619 = vmatprep.subr.mxu0 %v195
    %620 = vmatpush1.msra.mxu0 %v194
    %621 = vmatprep.subr.mxu0 %v199
    %622 = vmatpush1.msra.mxu0 %v198
    %623 = vmatprep.subr.mxu0 %v203
    %624 = vmatpush1.msra.mxu0 %v202
    %625 = vmatprep.subr.mxu0 %v207
    %626 = vmatpush1.msra.mxu0 %v206
    %627 = vmatprep.subr.mxu0 %v211
    %628 = vmatpush1.msra.mxu0 %v210
    %629 = vmatprep.subr.mxu0 %v215
    %630 = vmatpush1.msra.mxu0 %v214
    %631 = vmatprep.subr.mxu0 %v219
    %632 = vmatpush1.msra.mxu0 %v218
    %633 = vmatprep.subr.mxu0 %v223
    %634 = vmatpush1.msra.mxu0 %v222
    %635 = vmatprep.subr.mxu0 0.0
    %636 = vmatpush1.msra.mxu0 0.0
    %637 = vmatprep.subr.mxu0 0.0
    %638 = vmatpush1.msra.mxu0 0.0
    %639 = vmatprep.subr.mxu0 0.0
    %640 = vmatpush1.msra.mxu0 0.0
    %641 = vmatprep.subr.mxu0 0.0
    %642 = vmatpush1.msra.mxu0 0.0
    %643 = vmatprep.subr.mxu0 0.0
    %644 = vmatpush1.msra.mxu0 0.0
    %645 = vmatprep.subr.mxu0 0.0
    %646 = vmatpush1.msra.mxu0 0.0
    %647 = vmatprep.subr.mxu0 0.0
    %648 = vmatpush1.msra.mxu0 0.0
    %649 = vmatprep.subr.mxu0 0.0
    %650 = vmatpush1.msra.mxu0 0.0
    %651 = vmatprep.subr.mxu0 0.0
    %652 = vmatpush1.msra.mxu0 0.0
    %653 = vmatprep.subr.mxu0 0.0
    %654 = vmatpush1.msra.mxu0 0.0
    %655 = vmatprep.subr.mxu0 0.0
    %656 = vmatpush1.msra.mxu0 0.0
    %657 = vmatprep.subr.mxu0 0.0
    %658 = vmatpush1.msra.mxu0 0.0
    %659 = vmatprep.subr.mxu0 0.0
    %660 = vmatpush1.msra.mxu0 0.0
    %661 = vmatprep.subr.mxu0 0.0
    %662 = vmatpush1.msra.mxu0 0.0
    %663 = vmatprep.subr.mxu0 0.0
    %664 = vmatpush1.msra.mxu0 0.0
    %665 = vmatprep.subr.mxu0 0.0
    %666 = vmatpush1.msra.mxu0 0.0
    %667 = vmatprep.mubr.f32.mxu0 0.0
    %668 = vmatmul.mubr.f32.gmra.mrb[0].mxu0 %v524
    %v669 = vpop.f32.mrb[0].mxu0
    %v670 = vadd.f32 %v530, %v669
    %v671 = vpop.f32.mrb[0].mxu0
    %v672 = vadd.f32 %v531, %v671
    %673 = vdwg.mxu0
    %v674 = vxor.u32 %v599, 2147483648
    %v675 = vxor.u32 %v601, 2147483648
    %v676 = vmul.f32 %v674, 1.442695
    %v677 = vpow.pop %v676
    %v678 = vmul.f32 %v675, 1.442695
    %v679 = vpow.pop %v678
    %v680 = vadd.f32 %v677, 1.0
    %v681 = vadd.f32 %v679, 1.0
    %v682 = vrcp.pop %v680
    %v683 = vmul.f32 1.0, %v682
    %v684 = vrcp.pop %v681
    %v685 = vmul.f32 1.0, %v684
    %v686 = vtanh.pop %v670
    %v687 = vxor.u32 %v672, 2147483648
    %v688 = vmul.f32 %v687, 1.442695
    %v689 = vpow.pop %v688
    %v690 = vadd.f32 %v689, 1.0
    %v691 = vrcp.pop %v690
    %v692 = vmul.f32 1.0, %v691
    %v693 = vmul.f32 %v685, %v522
    %v694 = vmul.f32 %v683, %v686
    %v695 = vadd.f32 %v693, %v694
    %v696 = vtanh.pop %v695
    %v697 = vmul.f32 %v692, %v696
    %698 = vmatprep.subr.mxu0 %v289
    %699 = vmatpush1.msra.mxu0 %v288
    %700 = vmatprep.subr.mxu0 %v293
    %701 = vmatpush1.msra.mxu0 %v292
    %702 = vmatprep.subr.mxu0 %v297
    %703 = vmatpush1.msra.mxu0 %v296
    %704 = vmatprep.subr.mxu0 %v301
    %705 = vmatpush1.msra.mxu0 %v300
    %706 = vmatprep.subr.mxu0 %v305
    %707 = vmatpush1.msra.mxu0 %v304
    %708 = vmatprep.subr.mxu0 %v309
    %709 = vmatpush1.msra.mxu0 %v308
    %710 = vmatprep.subr.mxu0 %v313
    %711 = vmatpush1.msra.mxu0 %v312
    %712 = vmatprep.subr.mxu0 %v317
    %713 = vmatpush1.msra.mxu0 %v316
    %714 = vmatprep.subr.mxu0 %v321
    %715 = vmatpush1.msra.mxu0 %v320
    %716 = vmatprep.subr.mxu0 %v325
    %717 = vmatpush1.msra.mxu0 %v324
    %718 = vmatprep.subr.mxu0 %v329
    %719 = vmatpush1.msra.mxu0 %v328
    %720 = vmatprep.subr.mxu0 %v333
    %721 = vmatpush1.msra.mxu0 %v332
    %722 = vmatprep.subr.mxu0 %v337
    %723 = vmatpush1.msra.mxu0 %v336
    %724 = vmatprep.subr.mxu0 %v341
    %725 = vmatpush1.msra.mxu0 %v340
    %726 = vmatprep.subr.mxu0 %v345
    %727 = vmatpush1.msra.mxu0 %v344
    %728 = vmatprep.subr.mxu0 %v349
    %729 = vmatpush1.msra.mxu0 %v348
    %730 = vmatprep.subr.mxu0 0.0
    %731 = vmatpush1.msra.mxu0 0.0
    %732 = vmatprep.subr.mxu0 0.0
    %733 = vmatpush1.msra.mxu0 0.0
    %734 = vmatprep.subr.mxu0 0.0
    %735 = vmatpush1.msra.mxu0 0.0
    %736 = vmatprep.subr.mxu0 0.0
    %737 = vmatpush1.msra.mxu0 0.0
    %738 = vmatprep.subr.mxu0 0.0
    %739 = vmatpush1.msra.mxu0 0.0
    %740 = vmatprep.subr.mxu0 0.0
    %741 = vmatpush1.msra.mxu0 0.0
    %742 = vmatprep.subr.mxu0 0.0
    %743 = vmatpush1.msra.mxu0 0.0
    %744 = vmatprep.subr.mxu0 0.0
    %745 = vmatpush1.msra.mxu0 0.0
    %746 = vmatprep.subr.mxu0 0.0
    %747 = vmatpush1.msra.mxu0 0.0
    %748 = vmatprep.subr.mxu0 0.0
    %749 = vmatpush1.msra.mxu0 0.0
    %750 = vmatprep.subr.mxu0 0.0
    %751 = vmatpush1.msra.mxu0 0.0
    %752 = vmatprep.subr.mxu0 0.0
    %753 = vmatpush1.msra.mxu0 0.0
    %754 = vmatprep.subr.mxu0 0.0
    %755 = vmatpush1.msra.mxu0 0.0
    %756 = vmatprep.subr.mxu0 0.0
    %757 = vmatpush1.msra.mxu0 0.0
    %758 = vmatprep.subr.mxu0 0.0
    %759 = vmatpush1.msra.mxu0 0.0
    %760 = vmatprep.subr.mxu0 0.0
    %761 = vmatpush1.msra.mxu0 0.0
    %762 = vmatprep.mubr.f32.mxu0 0.0
    %763 = vmatmul.mubr.f32.gmra.mrb[0].mxu0 %v525
    %v764 = vpop.f32.mrb[0].mxu0
    %v765 = vadd.f32 0.0, %v764
    %v766 = vpop.f32.mrb[0].mxu0
    %v767 = vadd.f32 0.0, %v766
    %768 = vdwg.mxu0
    %769 = vmatprep.subr.mxu0 %v291
    %770 = vmatpush1.msra.mxu0 %v290
    %771 = vmatprep.subr.mxu0 %v295
    %772 = vmatpush1.msra.mxu0 %v294
    %773 = vmatprep.subr.mxu0 %v299
    %774 = vmatpush1.msra.mxu0 %v298
    %775 = vmatprep.subr.mxu0 %v303
    %776 = vmatpush1.msra.mxu0 %v302
    %777 = vmatprep.subr.mxu0 %v307
    %778 = vmatpush1.msra.mxu0 %v306
    %779 = vmatprep.subr.mxu0 %v311
    %780 = vmatpush1.msra.mxu0 %v310
    %781 = vmatprep.subr.mxu0 %v315
    %782 = vmatpush1.msra.mxu0 %v314
    %783 = vmatprep.subr.mxu0 %v319
    %784 = vmatpush1.msra.mxu0 %v318
    %785 = vmatprep.subr.mxu0 %v323
    %786 = vmatpush1.msra.mxu0 %v322
    %787 = vmatprep.subr.mxu0 %v327
    %788 = vmatpush1.msra.mxu0 %v326
    %789 = vmatprep.subr.mxu0 %v331
    %790 = vmatpush1.msra.mxu0 %v330
    %791 = vmatprep.subr.mxu0 %v335
    %792 = vmatpush1.msra.mxu0 %v334
    %793 = vmatprep.subr.mxu0 %v339
    %794 = vmatpush1.msra.mxu0 %v338
    %795 = vmatprep.subr.mxu0 %v343
    %796 = vmatpush1.msra.mxu0 %v342
    %797 = vmatprep.subr.mxu0 %v347
    %798 = vmatpush1.msra.mxu0 %v346
    %799 = vmatprep.subr.mxu0 %v351
    %800 = vmatpush1.msra.mxu0 %v350
    %801 = vmatprep.subr.mxu0 0.0
    %802 = vmatpush1.msra.mxu0 0.0
    %803 = vmatprep.subr.mxu0 0.0
    %804 = vmatpush1.msra.mxu0 0.0
    %805 = vmatprep.subr.mxu0 0.0
    %806 = vmatpush1.msra.mxu0 0.0
    %807 = vmatprep.subr.mxu0 0.0
    %808 = vmatpush1.msra.mxu0 0.0
    %809 = vmatprep.subr.mxu0 0.0
    %810 = vmatpush1.msra.mxu0 0.0
    %811 = vmatprep.subr.mxu0 0.0
    %812 = vmatpush1.msra.mxu0 0.0
    %813 = vmatprep.subr.mxu0 0.0
    %814 = vmatpush1.msra.mxu0 0.0
    %815 = vmatprep.subr.mxu0 0.0
    %816 = vmatpush1.msra.mxu0 0.0
    %817 = vmatprep.subr.mxu0 0.0
    %818 = vmatpush1.msra.mxu0 0.0
    %819 = vmatprep.subr.mxu0 0.0
    %820 = vmatpush1.msra.mxu0 0.0
    %821 = vmatprep.subr.mxu0 0.0
    %822 = vmatpush1.msra.mxu0 0.0
    %823 = vmatprep.subr.mxu0 0.0
    %824 = vmatpush1.msra.mxu0 0.0
    %825 = vmatprep.subr.mxu0 0.0
    %826 = vmatpush1.msra.mxu0 0.0
    %827 = vmatprep.subr.mxu0 0.0
    %828 = vmatpush1.msra.mxu0 0.0
    %829 = vmatprep.subr.mxu0 0.0
    %830 = vmatpush1.msra.mxu0 0.0
    %831 = vmatprep.subr.mxu0 0.0
    %832 = vmatpush1.msra.mxu0 0.0
    %833 = vmatprep.mubr.f32.mxu0 0.0
    %834 = vmatmul.mubr.f32.gmra.mrb[0].mxu0 %v525
    %v835 = vpop.f32.mrb[0].mxu0
    %v836 = vadd.f32 0.0, %v835
    %v837 = vpop.f32.mrb[0].mxu0
    %v838 = vadd.f32 0.0, %v837
    %839 = vdwg.mxu0
    %840 = vmatprep.subr.mxu0 %v225
    %841 = vmatpush1.msra.mxu0 %v224
    %842 = vmatprep.subr.mxu0 %v229
    %843 = vmatpush1.msra.mxu0 %v228
    %844 = vmatprep.subr.mxu0 %v233
    %845 = vmatpush1.msra.mxu0 %v232
    %846 = vmatprep.subr.mxu0 %v237
    %847 = vmatpush1.msra.mxu0 %v236
    %848 = vmatprep.subr.mxu0 %v241
    %849 = vmatpush1.msra.mxu0 %v240
    %850 = vmatprep.subr.mxu0 %v245
    %851 = vmatpush1.msra.mxu0 %v244
    %852 = vmatprep.subr.mxu0 %v249
    %853 = vmatpush1.msra.mxu0 %v248
    %854 = vmatprep.subr.mxu0 %v253
    %855 = vmatpush1.msra.mxu0 %v252
    %856 = vmatprep.subr.mxu0 %v257
    %857 = vmatpush1.msra.mxu0 %v256
    %858 = vmatprep.subr.mxu0 %v261
    %859 = vmatpush1.msra.mxu0 %v260
    %860 = vmatprep.subr.mxu0 %v265
    %861 = vmatpush1.msra.mxu0 %v264
    %862 = vmatprep.subr.mxu0 %v269
    %863 = vmatpush1.msra.mxu0 %v268
    %864 = vmatprep.subr.mxu0 %v273
    %865 = vmatpush1.msra.mxu0 %v272
    %866 = vmatprep.subr.mxu0 %v277
    %867 = vmatpush1.msra.mxu0 %v276
    %868 = vmatprep.subr.mxu0 %v281
    %869 = vmatpush1.msra.mxu0 %v280
    %870 = vmatprep.subr.mxu0 %v285
    %871 = vmatpush1.msra.mxu0 %v284
    %872 = vmatprep.subr.mxu0 0.0
    %873 = vmatpush1.msra.mxu0 0.0
    %874 = vmatprep.subr.mxu0 0.0
    %875 = vmatpush1.msra.mxu0 0.0
    %876 = vmatprep.subr.mxu0 0.0
    %877 = vmatpush1.msra.mxu0 0.0
    %878 = vmatprep.subr.mxu0 0.0
    %879 = vmatpush1.msra.mxu0 0.0
    %880 = vmatprep.subr.mxu0 0.0
    %881 = vmatpush1.msra.mxu0 0.0
    %882 = vmatprep.subr.mxu0 0.0
    %883 = vmatpush1.msra.mxu0 0.0
    %884 = vmatprep.subr.mxu0 0.0
    %885 = vmatpush1.msra.mxu0 0.0
    %886 = vmatprep.subr.mxu0 0.0
    %887 = vmatpush1.msra.mxu0 0.0
    %888 = vmatprep.subr.mxu0 0.0
    %889 = vmatpush1.msra.mxu0 0.0
    %890 = vmatprep.subr.mxu0 0.0
    %891 = vmatpush1.msra.mxu0 0.0
    %892 = vmatprep.subr.mxu0 0.0
    %893 = vmatpush1.msra.mxu0 0.0
    %894 = vmatprep.subr.mxu0 0.0
    %895 = vmatpush1.msra.mxu0 0.0
    %896 = vmatprep.subr.mxu0 0.0
    %897 = vmatpush1.msra.mxu0 0.0
    %898 = vmatprep.subr.mxu0 0.0
    %899 = vmatpush1.msra.mxu0 0.0
    %900 = vmatprep.subr.mxu0 0.0
    %901 = vmatpush1.msra.mxu0 0.0
    %902 = vmatprep.subr.mxu0 0.0
    %903 = vmatpush1.msra.mxu0 0.0
    %904 = vmatprep.mubr.f32.mxu0 0.0
    %905 = vmatmul.mubr.f32.gmra.mrb[0].mxu0 %v524
    %v906 = vpop.f32.mrb[0].mxu0
    %v907 = vadd.f32 %v765, %v906
    %v908 = vpop.f32.mrb[0].mxu0
    %v909 = vadd.f32 %v767, %v908
    %910 = vdwg.mxu0
    %911 = vmatprep.subr.mxu0 %v227
    %912 = vmatpush1.msra.mxu0 %v226
    %913 = vmatprep.subr.mxu0 %v231
    %914 = vmatpush1.msra.mxu0 %v230
    %915 = vmatprep.subr.mxu0 %v235
    %916 = vmatpush1.msra.mxu0 %v234
    %917 = vmatprep.subr.mxu0 %v239
    %918 = vmatpush1.msra.mxu0 %v238
    %919 = vmatprep.subr.mxu0 %v243
    %920 = vmatpush1.msra.mxu0 %v242
    %921 = vmatprep.subr.mxu0 %v247
    %922 = vmatpush1.msra.mxu0 %v246
    %923 = vmatprep.subr.mxu0 %v251
    %924 = vmatpush1.msra.mxu0 %v250
    %925 = vmatprep.subr.mxu0 %v255
    %926 = vmatpush1.msra.mxu0 %v254
    %927 = vmatprep.subr.mxu0 %v259
    %928 = vmatpush1.msra.mxu0 %v258
    %929 = vmatprep.subr.mxu0 %v263
    %930 = vmatpush1.msra.mxu0 %v262
    %931 = vmatprep.subr.mxu0 %v267
    %932 = vmatpush1.msra.mxu0 %v266
    %933 = vmatprep.subr.mxu0 %v271
    %934 = vmatpush1.msra.mxu0 %v270
    %935 = vmatprep.subr.mxu0 %v275
    %936 = vmatpush1.msra.mxu0 %v274
    %937 = vmatprep.subr.mxu0 %v279
    %938 = vmatpush1.msra.mxu0 %v278
    %939 = vmatprep.subr.mxu0 %v283
    %940 = vmatpush1.msra.mxu0 %v282
    %941 = vmatprep.subr.mxu0 %v287
    %942 = vmatpush1.msra.mxu0 %v286
    %943 = vmatprep.subr.mxu0 0.0
    %944 = vmatpush1.msra.mxu0 0.0
    %945 = vmatprep.subr.mxu0 0.0
    %946 = vmatpush1.msra.mxu0 0.0
    %947 = vmatprep.subr.mxu0 0.0
    %948 = vmatpush1.msra.mxu0 0.0
    %949 = vmatprep.subr.mxu0 0.0
    %950 = vmatpush1.msra.mxu0 0.0
    %951 = vmatprep.subr.mxu0 0.0
    %952 = vmatpush1.msra.mxu0 0.0
    %953 = vmatprep.subr.mxu0 0.0
    %954 = vmatpush1.msra.mxu0 0.0
    %955 = vmatprep.subr.mxu0 0.0
    %956 = vmatpush1.msra.mxu0 0.0
    %957 = vmatprep.subr.mxu0 0.0
    %958 = vmatpush1.msra.mxu0 0.0
    %959 = vmatprep.subr.mxu0 0.0
    %960 = vmatpush1.msra.mxu0 0.0
    %961 = vmatprep.subr.mxu0 0.0
    %962 = vmatpush1.msra.mxu0 0.0
    %963 = vmatprep.subr.mxu0 0.0
    %964 = vmatpush1.msra.mxu0 0.0
    %965 = vmatprep.subr.mxu0 0.0
    %966 = vmatpush1.msra.mxu0 0.0
    %967 = vmatprep.subr.mxu0 0.0
    %968 = vmatpush1.msra.mxu0 0.0
    %969 = vmatprep.subr.mxu0 0.0
    %970 = vmatpush1.msra.mxu0 0.0
    %971 = vmatprep.subr.mxu0 0.0
    %972 = vmatpush1.msra.mxu0 0.0
    %973 = vmatprep.subr.mxu0 0.0
    %974 = vmatpush1.msra.mxu0 0.0
    %975 = vmatprep.mubr.f32.mxu0 0.0
    %976 = vmatmul.mubr.f32.gmra.mrb[0].mxu0 %v524
    %v977 = vpop.f32.mrb[0].mxu0
    %v978 = vadd.f32 %v836, %v977
    %v979 = vpop.f32.mrb[0].mxu0
    %v980 = vadd.f32 %v838, %v979
    %981 = vdwg.mxu0
    %v983 = vlaneseq
    %v984 = vshrl.u32 %v983, 7
    %v985 = vsub.s32 0, %v984
    %v986 = vrot.slane %v352, %v985
    %v987 = vlaneseq
    %v988 = vshrl.u32 %v987, 7
    %v989 = vsub.s32 1, %v988
    %v990 = vrot.slane %v352, %v989
    %v991 = vlaneseq
    %v992 = vshrl.u32 %v991, 7
    %v993 = vsub.s32 2, %v992
    %v994 = vrot.slane %v352, %v993
    %v995 = vlaneseq
    %v996 = vshrl.u32 %v995, 7
    %v997 = vsub.s32 3, %v996
    %v998 = vrot.slane %v352, %v997
    %v1003 = vadd.f32 %v907, %v986
    %v1004 = vadd.f32 %v909, %v990
    %v1005 = vadd.f32 %v978, %v994
    %v1006 = vadd.f32 %v980, %v998
    %v1007 = vxor.u32 %v1003, 2147483648
    %v1008 = vxor.u32 %v1004, 2147483648
    %v1009 = vmul.f32 %v1007, 1.442695
    %v1010 = vpow.pop %v1009
    %v1011 = vmul.f32 %v1008, 1.442695
    %v1012 = vpow.pop %v1011
    %v1013 = vadd.f32 %v1010, 1.0
    %v1014 = vadd.f32 %v1012, 1.0
    %v1015 = vrcp.pop %v1013
    %v1016 = vmul.f32 1.0, %v1015
    %v1017 = vrcp.pop %v1014
    %v1018 = vmul.f32 1.0, %v1017
    %v1019 = vtanh.pop %v1005
    %v1020 = vxor.u32 %v1006, 2147483648
    %v1021 = vmul.f32 %v1020, 1.442695
    %v1022 = vpow.pop %v1021
    %v1023 = vadd.f32 %v1022, 1.0
    %v1024 = vrcp.pop %v1023
    %v1025 = vmul.f32 1.0, %v1024
    %v1026 = vmul.f32 %v1018, %v526
    %v1027 = vmul.f32 %v1016, %v1019
    %v1028 = vadd.f32 %v1026, %v1027
    %v1029 = vtanh.pop %v1028
    %v1030 = vmul.f32 %v1025, %v1029
    %s1031 = scalar_lea.vmem [#allocation2], 64
    %v1032 = vld [vmem:[%s1031] sm:$0xff]
    %v1033 = vld [vmem:[%s1031 + $0x8] sm:$0xff]
    %v1034 = vld [vmem:[%s1031 + $0x10] sm:$0xff]
    %v1035 = vld [vmem:[%s1031 + $0x18] sm:$0xff]
    %1036 = vmatprep.subr.mxu0 %v161
    %1037 = vmatpush1.msra.mxu0 %v160
    %1038 = vmatprep.subr.mxu0 %v165
    %1039 = vmatpush1.msra.mxu0 %v164
    %1040 = vmatprep.subr.mxu0 %v169
    %1041 = vmatpush1.msra.mxu0 %v168
    %1042 = vmatprep.subr.mxu0 %v173
    %1043 = vmatpush1.msra.mxu0 %v172
    %1044 = vmatprep.subr.mxu0 %v177
    %1045 = vmatpush1.msra.mxu0 %v176
    %1046 = vmatprep.subr.mxu0 %v181
    %1047 = vmatpush1.msra.mxu0 %v180
    %1048 = vmatprep.subr.mxu0 %v185
    %1049 = vmatpush1.msra.mxu0 %v184
    %1050 = vmatprep.subr.mxu0 %v189
    %1051 = vmatpush1.msra.mxu0 %v188
    %1052 = vmatprep.subr.mxu0 %v193
    %1053 = vmatpush1.msra.mxu0 %v192
    %1054 = vmatprep.subr.mxu0 %v197
    %1055 = vmatpush1.msra.mxu0 %v196
    %1056 = vmatprep.subr.mxu0 %v201
    %1057 = vmatpush1.msra.mxu0 %v200
    %1058 = vmatprep.subr.mxu0 %v205
    %1059 = vmatpush1.msra.mxu0 %v204
    %1060 = vmatprep.subr.mxu0 %v209
    %1061 = vmatpush1.msra.mxu0 %v208
    %1062 = vmatprep.subr.mxu0 %v213
    %1063 = vmatpush1.msra.mxu0 %v212
    %1064 = vmatprep.subr.mxu0 %v217
    %1065 = vmatpush1.msra.mxu0 %v216
    %1066 = vmatprep.subr.mxu0 %v221
    %1067 = vmatpush1.msra.mxu0 %v220
    %1068 = vmatprep.subr.mxu0 0.0
    %1069 = vmatpush1.msra.mxu0 0.0
    %1070 = vmatprep.subr.mxu0 0.0
    %1071 = vmatpush1.msra.mxu0 0.0
    %1072 = vmatprep.subr.mxu0 0.0
    %1073 = vmatpush1.msra.mxu0 0.0
    %1074 = vmatprep.subr.mxu0 0.0
    %1075 = vmatpush1.msra.mxu0 0.0
    %1076 = vmatprep.subr.mxu0 0.0
    %1077 = vmatpush1.msra.mxu0 0.0
    %1078 = vmatprep.subr.mxu0 0.0
    %1079 = vmatpush1.msra.mxu0 0.0
    %1080 = vmatprep.subr.mxu0 0.0
    %1081 = vmatpush1.msra.mxu0 0.0
    %1082 = vmatprep.subr.mxu0 0.0
    %1083 = vmatpush1.msra.mxu0 0.0
    %1084 = vmatprep.subr.mxu0 0.0
    %1085 = vmatpush1.msra.mxu0 0.0
    %1086 = vmatprep.subr.mxu0 0.0
    %1087 = vmatpush1.msra.mxu0 0.0
    %1088 = vmatprep.subr.mxu0 0.0
    %1089 = vmatpush1.msra.mxu0 0.0
    %1090 = vmatprep.subr.mxu0 0.0
    %1091 = vmatpush1.msra.mxu0 0.0
    %1092 = vmatprep.subr.mxu0 0.0
    %1093 = vmatpush1.msra.mxu0 0.0
    %1094 = vmatprep.subr.mxu0 0.0
    %1095 = vmatpush1.msra.mxu0 0.0
    %1096 = vmatprep.subr.mxu0 0.0
    %1097 = vmatpush1.msra.mxu0 0.0
    %1098 = vmatprep.subr.mxu0 0.0
    %1099 = vmatpush1.msra.mxu0 0.0
    %1100 = vmatprep.mubr.f32.mxu0 0.0
    %1101 = vmatmul.mubr.f32.gmra.mrb[0].mxu0 %v697
    %v1102 = vpop.f32.mrb[0].mxu0
    %v1103 = vadd.f32 %v1032, %v1102
    %v1104 = vpop.f32.mrb[0].mxu0
    %v1105 = vadd.f32 %v1033, %v1104
    %1106 = vdwg.mxu0
    %1107 = vmatprep.subr.mxu0 %v163
    %1108 = vmatpush1.msra.mxu0 %v162
    %1109 = vmatprep.subr.mxu0 %v167
    %1110 = vmatpush1.msra.mxu0 %v166
    %1111 = vmatprep.subr.mxu0 %v171
    %1112 = vmatpush1.msra.mxu0 %v170
    %1113 = vmatprep.subr.mxu0 %v175
    %1114 = vmatpush1.msra.mxu0 %v174
    %1115 = vmatprep.subr.mxu0 %v179
    %1116 = vmatpush1.msra.mxu0 %v178
    %1117 = vmatprep.subr.mxu0 %v183
    %1118 = vmatpush1.msra.mxu0 %v182
    %1119 = vmatprep.subr.mxu0 %v187
    %1120 = vmatpush1.msra.mxu0 %v186
    %1121 = vmatprep.subr.mxu0 %v191
    %1122 = vmatpush1.msra.mxu0 %v190
    %1123 = vmatprep.subr.mxu0 %v195
    %1124 = vmatpush1.msra.mxu0 %v194
    %1125 = vmatprep.subr.mxu0 %v199
    %1126 = vmatpush1.msra.mxu0 %v198
    %1127 = vmatprep.subr.mxu0 %v203
    %1128 = vmatpush1.msra.mxu0 %v202
    %1129 = vmatprep.subr.mxu0 %v207
    %1130 = vmatpush1.msra.mxu0 %v206
    %1131 = vmatprep.subr.mxu0 %v211
    %1132 = vmatpush1.msra.mxu0 %v210
    %1133 = vmatprep.subr.mxu0 %v215
    %1134 = vmatpush1.msra.mxu0 %v214
    %1135 = vmatprep.subr.mxu0 %v219
    %1136 = vmatpush1.msra.mxu0 %v218
    %1137 = vmatprep.subr.mxu0 %v223
    %1138 = vmatpush1.msra.mxu0 %v222
    %1139 = vmatprep.subr.mxu0 0.0
    %1140 = vmatpush1.msra.mxu0 0.0
    %1141 = vmatprep.subr.mxu0 0.0
    %1142 = vmatpush1.msra.mxu0 0.0
    %1143 = vmatprep.subr.mxu0 0.0
    %1144 = vmatpush1.msra.mxu0 0.0
    %1145 = vmatprep.subr.mxu0 0.0
    %1146 = vmatpush1.msra.mxu0 0.0
    %1147 = vmatprep.subr.mxu0 0.0
    %1148 = vmatpush1.msra.mxu0 0.0
    %1149 = vmatprep.subr.mxu0 0.0
    %1150 = vmatpush1.msra.mxu0 0.0
    %1151 = vmatprep.subr.mxu0 0.0
    %1152 = vmatpush1.msra.mxu0 0.0
    %1153 = vmatprep.subr.mxu0 0.0
    %1154 = vmatpush1.msra.mxu0 0.0
    %1155 = vmatprep.subr.mxu0 0.0
    %1156 = vmatpush1.msra.mxu0 0.0
    %1157 = vmatprep.subr.mxu0 0.0
    %1158 = vmatpush1.msra.mxu0 0.0
    %1159 = vmatprep.subr.mxu0 0.0
    %1160 = vmatpush1.msra.mxu0 0.0
    %1161 = vmatprep.subr.mxu0 0.0
    %1162 = vmatpush1.msra.mxu0 0.0
    %1163 = vmatprep.subr.mxu0 0.0
    %1164 = vmatpush1.msra.mxu0 0.0
    %1165 = vmatprep.subr.mxu0 0.0
    %1166 = vmatpush1.msra.mxu0 0.0
    %1167 = vmatprep.subr.mxu0 0.0
    %1168 = vmatpush1.msra.mxu0 0.0
    %1169 = vmatprep.subr.mxu0 0.0
    %1170 = vmatpush1.msra.mxu0 0.0
    %1171 = vmatprep.mubr.f32.mxu0 0.0
    %1172 = vmatmul.mubr.f32.gmra.mrb[0].mxu0 %v697
    %v1173 = vpop.f32.mrb[0].mxu0
    %v1174 = vadd.f32 %v1034, %v1173
    %v1175 = vpop.f32.mrb[0].mxu0
    %v1176 = vadd.f32 %v1035, %v1175
    %1177 = vdwg.mxu0
    %v1178 = vxor.u32 %v1103, 2147483648
    %v1179 = vxor.u32 %v1105, 2147483648
    %v1180 = vmul.f32 %v1178, 1.442695
    %v1181 = vpow.pop %v1180
    %v1182 = vmul.f32 %v1179, 1.442695
    %v1183 = vpow.pop %v1182
    %v1184 = vadd.f32 %v1181, 1.0
    %v1185 = vadd.f32 %v1183, 1.0
    %v1186 = vrcp.pop %v1184
    %v1187 = vmul.f32 1.0, %v1186
    %v1188 = vrcp.pop %v1185
    %v1189 = vmul.f32 1.0, %v1188
    %v1190 = vtanh.pop %v1174
    %v1191 = vxor.u32 %v1176, 2147483648
    %v1192 = vmul.f32 %v1191, 1.442695
    %v1193 = vpow.pop %v1192
    %v1194 = vadd.f32 %v1193, 1.0
    %v1195 = vrcp.pop %v1194
    %v1196 = vmul.f32 1.0, %v1195
    %v1197 = vmul.f32 %v1189, %v695
    %v1198 = vmul.f32 %v1187, %v1190
    %v1199 = vadd.f32 %v1197, %v1198
    %v1200 = vtanh.pop %v1199
    %v1201 = vmul.f32 %v1196, %v1200
    %1202 = vmatprep.subr.mxu0 %v289
    %1203 = vmatpush1.msra.mxu0 %v288
    %1204 = vmatprep.subr.mxu0 %v293
    %1205 = vmatpush1.msra.mxu0 %v292
    %1206 = vmatprep.subr.mxu0 %v297
    %1207 = vmatpush1.msra.mxu0 %v296
    %1208 = vmatprep.subr.mxu0 %v301
    %1209 = vmatpush1.msra.mxu0 %v300
    %1210 = vmatprep.subr.mxu0 %v305
    %1211 = vmatpush1.msra.mxu0 %v304
    %1212 = vmatprep.subr.mxu0 %v309
    %1213 = vmatpush1.msra.mxu0 %v308
    %1214 = vmatprep.subr.mxu0 %v313
    %1215 = vmatpush1.msra.mxu0 %v312
    %1216 = vmatprep.subr.mxu0 %v317
    %1217 = vmatpush1.msra.mxu0 %v316
    %1218 = vmatprep.subr.mxu0 %v321
    %1219 = vmatpush1.msra.mxu0 %v320
    %1220 = vmatprep.subr.mxu0 %v325
    %1221 = vmatpush1.msra.mxu0 %v324
    %1222 = vmatprep.subr.mxu0 %v329
    %1223 = vmatpush1.msra.mxu0 %v328
    %1224 = vmatprep.subr.mxu0 %v333
    %1225 = vmatpush1.msra.mxu0 %v332
    %1226 = vmatprep.subr.mxu0 %v337
    %1227 = vmatpush1.msra.mxu0 %v336
    %1228 = vmatprep.subr.mxu0 %v341
    %1229 = vmatpush1.msra.mxu0 %v340
    %1230 = vmatprep.subr.mxu0 %v345
    %1231 = vmatpush1.msra.mxu0 %v344
    %1232 = vmatprep.subr.mxu0 %v349
    %1233 = vmatpush1.msra.mxu0 %v348
    %1234 = vmatprep.subr.mxu0 0.0
    %1235 = vmatpush1.msra.mxu0 0.0
    %1236 = vmatprep.subr.mxu0 0.0
    %1237 = vmatpush1.msra.mxu0 0.0
    %1238 = vmatprep.subr.mxu0 0.0
    %1239 = vmatpush1.msra.mxu0 0.0
    %1240 = vmatprep.subr.mxu0 0.0
    %1241 = vmatpush1.msra.mxu0 0.0
    %1242 = vmatprep.subr.mxu0 0.0
    %1243 = vmatpush1.msra.mxu0 0.0
    %1244 = vmatprep.subr.mxu0 0.0
    %1245 = vmatpush1.msra.mxu0 0.0
    %1246 = vmatprep.subr.mxu0 0.0
    %1247 = vmatpush1.msra.mxu0 0.0
    %1248 = vmatprep.subr.mxu0 0.0
    %1249 = vmatpush1.msra.mxu0 0.0
    %1250 = vmatprep.subr.mxu0 0.0
    %1251 = vmatpush1.msra.mxu0 0.0
    %1252 = vmatprep.subr.mxu0 0.0
    %1253 = vmatpush1.msra.mxu0 0.0
    %1254 = vmatprep.subr.mxu0 0.0
    %1255 = vmatpush1.msra.mxu0 0.0
    %1256 = vmatprep.subr.mxu0 0.0
    %1257 = vmatpush1.msra.mxu0 0.0
    %1258 = vmatprep.subr.mxu0 0.0
    %1259 = vmatpush1.msra.mxu0 0.0
    %1260 = vmatprep.subr.mxu0 0.0
    %1261 = vmatpush1.msra.mxu0 0.0
    %1262 = vmatprep.subr.mxu0 0.0
    %1263 = vmatpush1.msra.mxu0 0.0
    %1264 = vmatprep.subr.mxu0 0.0
    %1265 = vmatpush1.msra.mxu0 0.0
    %1266 = vmatprep.mubr.f32.mxu0 0.0
    %1267 = vmatmul.mubr.f32.gmra.mrb[0].mxu0 %v1030
    %v1268 = vpop.f32.mrb[0].mxu0
    %v1269 = vadd.f32 0.0, %v1268
    %v1270 = vpop.f32.mrb[0].mxu0
    %v1271 = vadd.f32 0.0, %v1270
    %1272 = vdwg.mxu0
    %1273 = vmatprep.subr.mxu0 %v291
    %1274 = vmatpush1.msra.mxu0 %v290
    %1275 = vmatprep.subr.mxu0 %v295
    %1276 = vmatpush1.msra.mxu0 %v294
    %1277 = vmatprep.subr.mxu0 %v299
    %1278 = vmatpush1.msra.mxu0 %v298
    %1279 = vmatprep.subr.mxu0 %v303
    %1280 = vmatpush1.msra.mxu0 %v302
    %1281 = vmatprep.subr.mxu0 %v307
    %1282 = vmatpush1.msra.mxu0 %v306
    %1283 = vmatprep.subr.mxu0 %v311
    %1284 = vmatpush1.msra.mxu0 %v310
    %1285 = vmatprep.subr.mxu0 %v315
    %1286 = vmatpush1.msra.mxu0 %v314
    %1287 = vmatprep.subr.mxu0 %v319
    %1288 = vmatpush1.msra.mxu0 %v318
    %1289 = vmatprep.subr.mxu0 %v323
    %1290 = vmatpush1.msra.mxu0 %v322
    %1291 = vmatprep.subr.mxu0 %v327
    %1292 = vmatpush1.msra.mxu0 %v326
    %1293 = vmatprep.subr.mxu0 %v331
    %1294 = vmatpush1.msra.mxu0 %v330
    %1295 = vmatprep.subr.mxu0 %v335
    %1296 = vmatpush1.msra.mxu0 %v334
    %1297 = vmatprep.subr.mxu0 %v339
    %1298 = vmatpush1.msra.mxu0 %v338
    %1299 = vmatprep.subr.mxu0 %v343
    %1300 = vmatpush1.msra.mxu0 %v342
    %1301 = vmatprep.subr.mxu0 %v347
    %1302 = vmatpush1.msra.mxu0 %v346
    %1303 = vmatprep.subr.mxu0 %v351
    %1304 = vmatpush1.msra.mxu0 %v350
    %1305 = vmatprep.subr.mxu0 0.0
    %1306 = vmatpush1.msra.mxu0 0.0
    %1307 = vmatprep.subr.mxu0 0.0
    %1308 = vmatpush1.msra.mxu0 0.0
    %1309 = vmatprep.subr.mxu0 0.0
    %1310 = vmatpush1.msra.mxu0 0.0
    %1311 = vmatprep.subr.mxu0 0.0
    %1312 = vmatpush1.msra.mxu0 0.0
    %1313 = vmatprep.subr.mxu0 0.0
    %1314 = vmatpush1.msra.mxu0 0.0
    %1315 = vmatprep.subr.mxu0 0.0
    %1316 = vmatpush1.msra.mxu0 0.0
    %1317 = vmatprep.subr.mxu0 0.0
    %1318 = vmatpush1.msra.mxu0 0.0
    %1319 = vmatprep.subr.mxu0 0.0
    %1320 = vmatpush1.msra.mxu0 0.0
    %1321 = vmatprep.subr.mxu0 0.0
    %1322 = vmatpush1.msra.mxu0 0.0
    %1323 = vmatprep.subr.mxu0 0.0
    %1324 = vmatpush1.msra.mxu0 0.0
    %1325 = vmatprep.subr.mxu0 0.0
    %1326 = vmatpush1.msra.mxu0 0.0
    %1327 = vmatprep.subr.mxu0 0.0
    %1328 = vmatpush1.msra.mxu0 0.0
    %1329 = vmatprep.subr.mxu0 0.0
    %1330 = vmatpush1.msra.mxu0 0.0
    %1331 = vmatprep.subr.mxu0 0.0
    %1332 = vmatpush1.msra.mxu0 0.0
    %1333 = vmatprep.subr.mxu0 0.0
    %1334 = vmatpush1.msra.mxu0 0.0
    %1335 = vmatprep.subr.mxu0 0.0
    %1336 = vmatpush1.msra.mxu0 0.0
    %1337 = vmatprep.mubr.f32.mxu0 0.0
    %1338 = vmatmul.mubr.f32.gmra.mrb[0].mxu0 %v1030
    %v1339 = vpop.f32.mrb[0].mxu0
    %v1340 = vadd.f32 0.0, %v1339
    %v1341 = vpop.f32.mrb[0].mxu0
    %v1342 = vadd.f32 0.0, %v1341
    %1343 = vdwg.mxu0
    %1344 = vmatprep.subr.mxu0 %v225
    %1345 = vmatpush1.msra.mxu0 %v224
    %1346 = vmatprep.subr.mxu0 %v229
    %1347 = vmatpush1.msra.mxu0 %v228
    %1348 = vmatprep.subr.mxu0 %v233
    %1349 = vmatpush1.msra.mxu0 %v232
    %1350 = vmatprep.subr.mxu0 %v237
    %1351 = vmatpush1.msra.mxu0 %v236
    %1352 = vmatprep.subr.mxu0 %v241
    %1353 = vmatpush1.msra.mxu0 %v240
    %1354 = vmatprep.subr.mxu0 %v245
    %1355 = vmatpush1.msra.mxu0 %v244
    %1356 = vmatprep.subr.mxu0 %v249
    %1357 = vmatpush1.msra.mxu0 %v248
    %1358 = vmatprep.subr.mxu0 %v253
    %1359 = vmatpush1.msra.mxu0 %v252
    %1360 = vmatprep.subr.mxu0 %v257
    %1361 = vmatpush1.msra.mxu0 %v256
    %1362 = vmatprep.subr.mxu0 %v261
    %1363 = vmatpush1.msra.mxu0 %v260
    %1364 = vmatprep.subr.mxu0 %v265
    %1365 = vmatpush1.msra.mxu0 %v264
    %1366 = vmatprep.subr.mxu0 %v269
    %1367 = vmatpush1.msra.mxu0 %v268
    %1368 = vmatprep.subr.mxu0 %v273
    %1369 = vmatpush1.msra.mxu0 %v272
    %1370 = vmatprep.subr.mxu0 %v277
    %1371 = vmatpush1.msra.mxu0 %v276
    %1372 = vmatprep.subr.mxu0 %v281
    %1373 = vmatpush1.msra.mxu0 %v280
    %1374 = vmatprep.subr.mxu0 %v285
    %1375 = vmatpush1.msra.mxu0 %v284
    %1376 = vmatprep.subr.mxu0 0.0
    %1377 = vmatpush1.msra.mxu0 0.0
    %1378 = vmatprep.subr.mxu0 0.0
    %1379 = vmatpush1.msra.mxu0 0.0
    %1380 = vmatprep.subr.mxu0 0.0
    %1381 = vmatpush1.msra.mxu0 0.0
    %1382 = vmatprep.subr.mxu0 0.0
    %1383 = vmatpush1.msra.mxu0 0.0
    %1384 = vmatprep.subr.mxu0 0.0
    %1385 = vmatpush1.msra.mxu0 0.0
    %1386 = vmatprep.subr.mxu0 0.0
    %1387 = vmatpush1.msra.mxu0 0.0
    %1388 = vmatprep.subr.mxu0 0.0
    %1389 = vmatpush1.msra.mxu0 0.0
    %1390 = vmatprep.subr.mxu0 0.0
    %1391 = vmatpush1.msra.mxu0 0.0
    %1392 = vmatprep.subr.mxu0 0.0
    %1393 = vmatpush1.msra.mxu0 0.0
    %1394 = vmatprep.subr.mxu0 0.0
    %1395 = vmatpush1.msra.mxu0 0.0
    %1396 = vmatprep.subr.mxu0 0.0
    %1397 = vmatpush1.msra.mxu0 0.0
    %1398 = vmatprep.subr.mxu0 0.0
    %1399 = vmatpush1.msra.mxu0 0.0
    %1400 = vmatprep.subr.mxu0 0.0
    %1401 = vmatpush1.msra.mxu0 0.0
    %1402 = vmatprep.subr.mxu0 0.0
    %1403 = vmatpush1.msra.mxu0 0.0
    %1404 = vmatprep.subr.mxu0 0.0
    %1405 = vmatpush1.msra.mxu0 0.0
    %1406 = vmatprep.subr.mxu0 0.0
    %1407 = vmatpush1.msra.mxu0 0.0
    %1408 = vmatprep.mubr.f32.mxu0 0.0
    %1409 = vmatmul.mubr.f32.gmra.mrb[0].mxu0 %v697
    %v1410 = vpop.f32.mrb[0].mxu0
    %v1411 = vadd.f32 %v1269, %v1410
    %v1412 = vpop.f32.mrb[0].mxu0
    %v1413 = vadd.f32 %v1271, %v1412
    %1414 = vdwg.mxu0
    %1415 = vmatprep.subr.mxu0 %v227
    %1416 = vmatpush1.msra.mxu0 %v226
    %1417 = vmatprep.subr.mxu0 %v231
    %1418 = vmatpush1.msra.mxu0 %v230
    %1419 = vmatprep.subr.mxu0 %v235
    %1420 = vmatpush1.msra.mxu0 %v234
    %1421 = vmatprep.subr.mxu0 %v239
    %1422 = vmatpush1.msra.mxu0 %v238
    %1423 = vmatprep.subr.mxu0 %v243
    %1424 = vmatpush1.msra.mxu0 %v242
    %1425 = vmatprep.subr.mxu0 %v247
    %1426 = vmatpush1.msra.mxu0 %v246
    %1427 = vmatprep.subr.mxu0 %v251
    %1428 = vmatpush1.msra.mxu0 %v250
    %1429 = vmatprep.subr.mxu0 %v255
    %1430 = vmatpush1.msra.mxu0 %v254
    %1431 = vmatprep.subr.mxu0 %v259
    %1432 = vmatpush1.msra.mxu0 %v258
    %1433 = vmatprep.subr.mxu0 %v263
    %1434 = vmatpush1.msra.mxu0 %v262
    %1435 = vmatprep.subr.mxu0 %v267
    %1436 = vmatpush1.msra.mxu0 %v266
    %1437 = vmatprep.subr.mxu0 %v271
    %1438 = vmatpush1.msra.mxu0 %v270
    %1439 = vmatprep.subr.mxu0 %v275
    %1440 = vmatpush1.msra.mxu0 %v274
    %1441 = vmatprep.subr.mxu0 %v279
    %1442 = vmatpush1.msra.mxu0 %v278
    %1443 = vmatprep.subr.mxu0 %v283
    %1444 = vmatpush1.msra.mxu0 %v282
    %1445 = vmatprep.subr.mxu0 %v287
    %1446 = vmatpush1.msra.mxu0 %v286
    %1447 = vmatprep.subr.mxu0 0.0
    %1448 = vmatpush1.msra.mxu0 0.0
    %1449 = vmatprep.subr.mxu0 0.0
    %1450 = vmatpush1.msra.mxu0 0.0
    %1451 = vmatprep.subr.mxu0 0.0
    %1452 = vmatpush1.msra.mxu0 0.0
    %1453 = vmatprep.subr.mxu0 0.0
    %1454 = vmatpush1.msra.mxu0 0.0
    %1455 = vmatprep.subr.mxu0 0.0
    %1456 = vmatpush1.msra.mxu0 0.0
    %1457 = vmatprep.subr.mxu0 0.0
    %1458 = vmatpush1.msra.mxu0 0.0
    %1459 = vmatprep.subr.mxu0 0.0
    %1460 = vmatpush1.msra.mxu0 0.0
    %1461 = vmatprep.subr.mxu0 0.0
    %1462 = vmatpush1.msra.mxu0 0.0
    %1463 = vmatprep.subr.mxu0 0.0
    %1464 = vmatpush1.msra.mxu0 0.0
    %1465 = vmatprep.subr.mxu0 0.0
    %1466 = vmatpush1.msra.mxu0 0.0
    %1467 = vmatprep.subr.mxu0 0.0
    %1468 = vmatpush1.msra.mxu0 0.0
    %1469 = vmatprep.subr.mxu0 0.0
    %1470 = vmatpush1.msra.mxu0 0.0
    %1471 = vmatprep.subr.mxu0 0.0
    %1472 = vmatpush1.msra.mxu0 0.0
    %1473 = vmatprep.subr.mxu0 0.0
    %1474 = vmatpush1.msra.mxu0 0.0
    %1475 = vmatprep.subr.mxu0 0.0
    %1476 = vmatpush1.msra.mxu0 0.0
    %1477 = vmatprep.subr.mxu0 0.0
    %1478 = vmatpush1.msra.mxu0 0.0
    %1479 = vmatprep.mubr.f32.mxu0 0.0
    %1480 = vmatmul.mubr.f32.gmra.mrb[0].mxu0 %v697
    %v1481 = vpop.f32.mrb[0].mxu0
    %v1482 = vadd.f32 %v1340, %v1481
    %v1483 = vpop.f32.mrb[0].mxu0
    %v1484 = vadd.f32 %v1342, %v1483
    %1485 = vdwg.mxu0
    %v1486 = vadd.f32 %v1411, %v986
    %v1487 = vadd.f32 %v1413, %v990
    %v1488 = vadd.f32 %v1482, %v994
    %v1489 = vadd.f32 %v1484, %v998
    %v1490 = vxor.u32 %v1486, 2147483648
    %v1491 = vxor.u32 %v1487, 2147483648
    %v1492 = vmul.f32 %v1490, 1.442695
    %v1493 = vpow.pop %v1492
    %v1494 = vmul.f32 %v1491, 1.442695
    %v1495 = vpow.pop %v1494
    %v1496 = vadd.f32 %v1493, 1.0
    %v1497 = vadd.f32 %v1495, 1.0
    %v1498 = vrcp.pop %v1496
    %v1499 = vmul.f32 1.0, %v1498
    %v1500 = vrcp.pop %v1497
    %v1501 = vmul.f32 1.0, %v1500
    %v1502 = vtanh.pop %v1488
    %v1503 = vxor.u32 %v1489, 2147483648
    %v1504 = vmul.f32 %v1503, 1.442695
    %v1505 = vpow.pop %v1504
    %v1506 = vadd.f32 %v1505, 1.0
    %v1507 = vrcp.pop %v1506
    %v1508 = vmul.f32 1.0, %v1507
    %v1509 = vmul.f32 %v1501, %v1028
    %v1510 = vmul.f32 %v1499, %v1502
    %v1511 = vadd.f32 %v1509, %v1510
    %v1512 = vtanh.pop %v1511
    %v1513 = vmul.f32 %v1508, %v1512
    %s1514 = scalar_lea.vmem [#allocation2], 96
    %v1515 = vld [vmem:[%s1514] sm:$0xff]
    %v1516 = vld [vmem:[%s1514 + $0x8] sm:$0xff]
    %v1517 = vld [vmem:[%s1514 + $0x10] sm:$0xff]
    %v1518 = vld [vmem:[%s1514 + $0x18] sm:$0xff]
    %1519 = vmatprep.subr.mxu0 %v161
    %1520 = vmatpush1.msra.mxu0 %v160
    %1521 = vmatprep.subr.mxu0 %v165
    %1522 = vmatpush1.msra.mxu0 %v164
    %1523 = vmatprep.subr.mxu0 %v169
    %1524 = vmatpush1.msra.mxu0 %v168
    %1525 = vmatprep.subr.mxu0 %v173
    %1526 = vmatpush1.msra.mxu0 %v172
    %1527 = vmatprep.subr.mxu0 %v177
    %1528 = vmatpush1.msra.mxu0 %v176
    %1529 = vmatprep.subr.mxu0 %v181
    %1530 = vmatpush1.msra.mxu0 %v180
    %1531 = vmatprep.subr.mxu0 %v185
    %1532 = vmatpush1.msra.mxu0 %v184
    %1533 = vmatprep.subr.mxu0 %v189
    %1534 = vmatpush1.msra.mxu0 %v188
    %1535 = vmatprep.subr.mxu0 %v193
    %1536 = vmatpush1.msra.mxu0 %v192
    %1537 = vmatprep.subr.mxu0 %v197
    %1538 = vmatpush1.msra.mxu0 %v196
    %1539 = vmatprep.subr.mxu0 %v201
    %1540 = vmatpush1.msra.mxu0 %v200
    %1541 = vmatprep.subr.mxu0 %v205
    %1542 = vmatpush1.msra.mxu0 %v204
    %1543 = vmatprep.subr.mxu0 %v209
    %1544 = vmatpush1.msra.mxu0 %v208
    %1545 = vmatprep.subr.mxu0 %v213
    %1546 = vmatpush1.msra.mxu0 %v212
    %1547 = vmatprep.subr.mxu0 %v217
    %1548 = vmatpush1.msra.mxu0 %v216
    %1549 = vmatprep.subr.mxu0 %v221
    %1550 = vmatpush1.msra.mxu0 %v220
    %1551 = vmatprep.subr.mxu0 0.0
    %1552 = vmatpush1.msra.mxu0 0.0
    %1553 = vmatprep.subr.mxu0 0.0
    %1554 = vmatpush1.msra.mxu0 0.0
    %1555 = vmatprep.subr.mxu0 0.0
    %1556 = vmatpush1.msra.mxu0 0.0
    %1557 = vmatprep.subr.mxu0 0.0
    %1558 = vmatpush1.msra.mxu0 0.0
    %1559 = vmatprep.subr.mxu0 0.0
    %1560 = vmatpush1.msra.mxu0 0.0
    %1561 = vmatprep.subr.mxu0 0.0
    %1562 = vmatpush1.msra.mxu0 0.0
    %1563 = vmatprep.subr.mxu0 0.0
    %1564 = vmatpush1.msra.mxu0 0.0
    %1565 = vmatprep.subr.mxu0 0.0
    %1566 = vmatpush1.msra.mxu0 0.0
    %1567 = vmatprep.subr.mxu0 0.0
    %1568 = vmatpush1.msra.mxu0 0.0
    %1569 = vmatprep.subr.mxu0 0.0
    %1570 = vmatpush1.msra.mxu0 0.0
    %1571 = vmatprep.subr.mxu0 0.0
    %1572 = vmatpush1.msra.mxu0 0.0
    %1573 = vmatprep.subr.mxu0 0.0
    %1574 = vmatpush1.msra.mxu0 0.0
    %1575 = vmatprep.subr.mxu0 0.0
    %1576 = vmatpush1.msra.mxu0 0.0
    %1577 = vmatprep.subr.mxu0 0.0
    %1578 = vmatpush1.msra.mxu0 0.0
    %1579 = vmatprep.subr.mxu0 0.0
    %1580 = vmatpush1.msra.mxu0 0.0
    %1581 = vmatprep.subr.mxu0 0.0
    %1582 = vmatpush1.msra.mxu0 0.0
    %1583 = vmatprep.mubr.f32.mxu0 0.0
    %1584 = vmatmul.mubr.f32.gmra.mrb[0].mxu0 %v1201
    %v1585 = vpop.f32.mrb[0].mxu0
    %v1586 = vadd.f32 %v1515, %v1585
    %v1587 = vpop.f32.mrb[0].mxu0
    %v1588 = vadd.f32 %v1516, %v1587
    %1589 = vdwg.mxu0
    %1590 = vmatprep.subr.mxu0 %v163
    %1591 = vmatpush1.msra.mxu0 %v162
    %1592 = vmatprep.subr.mxu0 %v167
    %1593 = vmatpush1.msra.mxu0 %v166
    %1594 = vmatprep.subr.mxu0 %v171
    %1595 = vmatpush1.msra.mxu0 %v170
    %1596 = vmatprep.subr.mxu0 %v175
    %1597 = vmatpush1.msra.mxu0 %v174
    %1598 = vmatprep.subr.mxu0 %v179
    %1599 = vmatpush1.msra.mxu0 %v178
    %1600 = vmatprep.subr.mxu0 %v183
    %1601 = vmatpush1.msra.mxu0 %v182
    %1602 = vmatprep.subr.mxu0 %v187
    %1603 = vmatpush1.msra.mxu0 %v186
    %1604 = vmatprep.subr.mxu0 %v191
    %1605 = vmatpush1.msra.mxu0 %v190
    %1606 = vmatprep.subr.mxu0 %v195
    %1607 = vmatpush1.msra.mxu0 %v194
    %1608 = vmatprep.subr.mxu0 %v199
    %1609 = vmatpush1.msra.mxu0 %v198
    %1610 = vmatprep.subr.mxu0 %v203
    %1611 = vmatpush1.msra.mxu0 %v202
    %1612 = vmatprep.subr.mxu0 %v207
    %1613 = vmatpush1.msra.mxu0 %v206
    %1614 = vmatprep.subr.mxu0 %v211
    %1615 = vmatpush1.msra.mxu0 %v210
    %1616 = vmatprep.subr.mxu0 %v215
    %1617 = vmatpush1.msra.mxu0 %v214
    %1618 = vmatprep.subr.mxu0 %v219
    %1619 = vmatpush1.msra.mxu0 %v218
    %1620 = vmatprep.subr.mxu0 %v223
    %1621 = vmatpush1.msra.mxu0 %v222
    %1622 = vmatprep.subr.mxu0 0.0
    %1623 = vmatpush1.msra.mxu0 0.0
    %1624 = vmatprep.subr.mxu0 0.0
    %1625 = vmatpush1.msra.mxu0 0.0
    %1626 = vmatprep.subr.mxu0 0.0
    %1627 = vmatpush1.msra.mxu0 0.0
    %1628 = vmatprep.subr.mxu0 0.0
    %1629 = vmatpush1.msra.mxu0 0.0
    %1630 = vmatprep.subr.mxu0 0.0
    %1631 = vmatpush1.msra.mxu0 0.0
    %1632 = vmatprep.subr.mxu0 0.0
    %1633 = vmatpush1.msra.mxu0 0.0
    %1634 = vmatprep.subr.mxu0 0.0
    %1635 = vmatpush1.msra.mxu0 0.0
    %1636 = vmatprep.subr.mxu0 0.0
    %1637 = vmatpush1.msra.mxu0 0.0
    %1638 = vmatprep.subr.mxu0 0.0
    %1639 = vmatpush1.msra.mxu0 0.0
    %1640 = vmatprep.subr.mxu0 0.0
    %1641 = vmatpush1.msra.mxu0 0.0
    %1642 = vmatprep.subr.mxu0 0.0
    %1643 = vmatpush1.msra.mxu0 0.0
    %1644 = vmatprep.subr.mxu0 0.0
    %1645 = vmatpush1.msra.mxu0 0.0
    %1646 = vmatprep.subr.mxu0 0.0
    %1647 = vmatpush1.msra.mxu0 0.0
    %1648 = vmatprep.subr.mxu0 0.0
    %1649 = vmatpush1.msra.mxu0 0.0
    %1650 = vmatprep.subr.mxu0 0.0
    %1651 = vmatpush1.msra.mxu0 0.0
    %1652 = vmatprep.subr.mxu0 0.0
    %1653 = vmatpush1.msra.mxu0 0.0
    %1654 = vmatprep.mubr.f32.mxu0 0.0
    %1655 = vmatmul.mubr.f32.gmra.mrb[0].mxu0 %v1201
    %v1656 = vpop.f32.mrb[0].mxu0
    %v1657 = vadd.f32 %v1517, %v1656
    %v1658 = vpop.f32.mrb[0].mxu0
    %v1659 = vadd.f32 %v1518, %v1658
    %1660 = vdwg.mxu0
    %v1661 = vxor.u32 %v1586, 2147483648
    %v1662 = vxor.u32 %v1588, 2147483648
    %v1663 = vmul.f32 %v1661, 1.442695
    %v1664 = vpow.pop %v1663
    %v1665 = vmul.f32 %v1662, 1.442695
    %v1666 = vpow.pop %v1665
    %v1667 = vadd.f32 %v1664, 1.0
    %v1668 = vadd.f32 %v1666, 1.0
    %v1669 = vrcp.pop %v1667
    %v1670 = vmul.f32 1.0, %v1669
    %v1671 = vrcp.pop %v1668
    %v1672 = vmul.f32 1.0, %v1671
    %v1673 = vtanh.pop %v1657
    %v1674 = vxor.u32 %v1659, 2147483648
    %v1675 = vmul.f32 %v1674, 1.442695
    %v1676 = vpow.pop %v1675
    %v1677 = vadd.f32 %v1676, 1.0
    %v1678 = vrcp.pop %v1677
    %v1679 = vmul.f32 1.0, %v1678
    %v1680 = vmul.f32 %v1672, %v1199
    %v1681 = vmul.f32 %v1670, %v1673
    %v1682 = vadd.f32 %v1680, %v1681
    %v1683 = vtanh.pop %v1682
    %v1684 = vmul.f32 %v1679, %v1683
    %1685 = vmatprep.subr.mxu0 %v289
    %1686 = vmatpush1.msra.mxu0 %v288
    %1687 = vmatprep.subr.mxu0 %v293
    %1688 = vmatpush1.msra.mxu0 %v292
    %1689 = vmatprep.subr.mxu0 %v297
    %1690 = vmatpush1.msra.mxu0 %v296
    %1691 = vmatprep.subr.mxu0 %v301
    %1692 = vmatpush1.msra.mxu0 %v300
    %1693 = vmatprep.subr.mxu0 %v305
    %1694 = vmatpush1.msra.mxu0 %v304
    %1695 = vmatprep.subr.mxu0 %v309
    %1696 = vmatpush1.msra.mxu0 %v308
    %1697 = vmatprep.subr.mxu0 %v313
    %1698 = vmatpush1.msra.mxu0 %v312
    %1699 = vmatprep.subr.mxu0 %v317
    %1700 = vmatpush1.msra.mxu0 %v316
    %1701 = vmatprep.subr.mxu0 %v321
    %1702 = vmatpush1.msra.mxu0 %v320
    %1703 = vmatprep.subr.mxu0 %v325
    %1704 = vmatpush1.msra.mxu0 %v324
    %1705 = vmatprep.subr.mxu0 %v329
    %1706 = vmatpush1.msra.mxu0 %v328
    %1707 = vmatprep.subr.mxu0 %v333
    %1708 = vmatpush1.msra.mxu0 %v332
    %1709 = vmatprep.subr.mxu0 %v337
    %1710 = vmatpush1.msra.mxu0 %v336
    %1711 = vmatprep.subr.mxu0 %v341
    %1712 = vmatpush1.msra.mxu0 %v340
    %1713 = vmatprep.subr.mxu0 %v345
    %1714 = vmatpush1.msra.mxu0 %v344
    %1715 = vmatprep.subr.mxu0 %v349
    %1716 = vmatpush1.msra.mxu0 %v348
    %1717 = vmatprep.subr.mxu0 0.0
    %1718 = vmatpush1.msra.mxu0 0.0
    %1719 = vmatprep.subr.mxu0 0.0
    %1720 = vmatpush1.msra.mxu0 0.0
    %1721 = vmatprep.subr.mxu0 0.0
    %1722 = vmatpush1.msra.mxu0 0.0
    %1723 = vmatprep.subr.mxu0 0.0
    %1724 = vmatpush1.msra.mxu0 0.0
    %1725 = vmatprep.subr.mxu0 0.0
    %1726 = vmatpush1.msra.mxu0 0.0
    %1727 = vmatprep.subr.mxu0 0.0
    %1728 = vmatpush1.msra.mxu0 0.0
    %1729 = vmatprep.subr.mxu0 0.0
    %1730 = vmatpush1.msra.mxu0 0.0
    %1731 = vmatprep.subr.mxu0 0.0
    %1732 = vmatpush1.msra.mxu0 0.0
    %1733 = vmatprep.subr.mxu0 0.0
    %1734 = vmatpush1.msra.mxu0 0.0
    %1735 = vmatprep.subr.mxu0 0.0
    %1736 = vmatpush1.msra.mxu0 0.0
    %1737 = vmatprep.subr.mxu0 0.0
    %1738 = vmatpush1.msra.mxu0 0.0
    %1739 = vmatprep.subr.mxu0 0.0
    %1740 = vmatpush1.msra.mxu0 0.0
    %1741 = vmatprep.subr.mxu0 0.0
    %1742 = vmatpush1.msra.mxu0 0.0
    %1743 = vmatprep.subr.mxu0 0.0
    %1744 = vmatpush1.msra.mxu0 0.0
    %1745 = vmatprep.subr.mxu0 0.0
    %1746 = vmatpush1.msra.mxu0 0.0
    %1747 = vmatprep.subr.mxu0 0.0
    %1748 = vmatpush1.msra.mxu0 0.0
    %1749 = vmatprep.mubr.f32.mxu0 0.0
    %1750 = vmatmul.mubr.f32.gmra.mrb[0].mxu0 %v1513
    %v1751 = vpop.f32.mrb[0].mxu0
    %v1752 = vadd.f32 0.0, %v1751
    %v1753 = vpop.f32.mrb[0].mxu0
    %v1754 = vadd.f32 0.0, %v1753
    %1755 = vdwg.mxu0
    %1756 = vmatprep.subr.mxu0 %v291
    %1757 = vmatpush1.msra.mxu0 %v290
    %1758 = vmatprep.subr.mxu0 %v295
    %1759 = vmatpush1.msra.mxu0 %v294
    %1760 = vmatprep.subr.mxu0 %v299
    %1761 = vmatpush1.msra.mxu0 %v298
    %1762 = vmatprep.subr.mxu0 %v303
    %1763 = vmatpush1.msra.mxu0 %v302
    %1764 = vmatprep.subr.mxu0 %v307
    %1765 = vmatpush1.msra.mxu0 %v306
    %1766 = vmatprep.subr.mxu0 %v311
    %1767 = vmatpush1.msra.mxu0 %v310
    %1768 = vmatprep.subr.mxu0 %v315
    %1769 = vmatpush1.msra.mxu0 %v314
    %1770 = vmatprep.subr.mxu0 %v319
    %1771 = vmatpush1.msra.mxu0 %v318
    %1772 = vmatprep.subr.mxu0 %v323
    %1773 = vmatpush1.msra.mxu0 %v322
    %1774 = vmatprep.subr.mxu0 %v327
    %1775 = vmatpush1.msra.mxu0 %v326
    %1776 = vmatprep.subr.mxu0 %v331
    %1777 = vmatpush1.msra.mxu0 %v330
    %1778 = vmatprep.subr.mxu0 %v335
    %1779 = vmatpush1.msra.mxu0 %v334
    %1780 = vmatprep.subr.mxu0 %v339
    %1781 = vmatpush1.msra.mxu0 %v338
    %1782 = vmatprep.subr.mxu0 %v343
    %1783 = vmatpush1.msra.mxu0 %v342
    %1784 = vmatprep.subr.mxu0 %v347
    %1785 = vmatpush1.msra.mxu0 %v346
    %1786 = vmatprep.subr.mxu0 %v351
    %1787 = vmatpush1.msra.mxu0 %v350
    %1788 = vmatprep.subr.mxu0 0.0
    %1789 = vmatpush1.msra.mxu0 0.0
    %1790 = vmatprep.subr.mxu0 0.0
    %1791 = vmatpush1.msra.mxu0 0.0
    %1792 = vmatprep.subr.mxu0 0.0
    %1793 = vmatpush1.msra.mxu0 0.0
    %1794 = vmatprep.subr.mxu0 0.0
    %1795 = vmatpush1.msra.mxu0 0.0
    %1796 = vmatprep.subr.mxu0 0.0
    %1797 = vmatpush1.msra.mxu0 0.0
    %1798 = vmatprep.subr.mxu0 0.0
    %1799 = vmatpush1.msra.mxu0 0.0
    %1800 = vmatprep.subr.mxu0 0.0
    %1801 = vmatpush1.msra.mxu0 0.0
    %1802 = vmatprep.subr.mxu0 0.0
    %1803 = vmatpush1.msra.mxu0 0.0
    %1804 = vmatprep.subr.mxu0 0.0
    %1805 = vmatpush1.msra.mxu0 0.0
    %1806 = vmatprep.subr.mxu0 0.0
    %1807 = vmatpush1.msra.mxu0 0.0
    %1808 = vmatprep.subr.mxu0 0.0
    %1809 = vmatpush1.msra.mxu0 0.0
    %1810 = vmatprep.subr.mxu0 0.0
    %1811 = vmatpush1.msra.mxu0 0.0
    %1812 = vmatprep.subr.mxu0 0.0
    %1813 = vmatpush1.msra.mxu0 0.0
    %1814 = vmatprep.subr.mxu0 0.0
    %1815 = vmatpush1.msra.mxu0 0.0
    %1816 = vmatprep.subr.mxu0 0.0
    %1817 = vmatpush1.msra.mxu0 0.0
    %1818 = vmatprep.subr.mxu0 0.0
    %1819 = vmatpush1.msra.mxu0 0.0
    %1820 = vmatprep.mubr.f32.mxu0 0.0
    %1821 = vmatmul.mubr.f32.gmra.mrb[0].mxu0 %v1513
    %v1822 = vpop.f32.mrb[0].mxu0
    %v1823 = vadd.f32 0.0, %v1822
    %v1824 = vpop.f32.mrb[0].mxu0
    %v1825 = vadd.f32 0.0, %v1824
    %1826 = vdwg.mxu0
    %1827 = vmatprep.subr.mxu0 %v225
    %1828 = vmatpush1.msra.mxu0 %v224
    %1829 = vmatprep.subr.mxu0 %v229
    %1830 = vmatpush1.msra.mxu0 %v228
    %1831 = vmatprep.subr.mxu0 %v233
    %1832 = vmatpush1.msra.mxu0 %v232
    %1833 = vmatprep.subr.mxu0 %v237
    %1834 = vmatpush1.msra.mxu0 %v236
    %1835 = vmatprep.subr.mxu0 %v241
    %1836 = vmatpush1.msra.mxu0 %v240
    %1837 = vmatprep.subr.mxu0 %v245
    %1838 = vmatpush1.msra.mxu0 %v244
    %1839 = vmatprep.subr.mxu0 %v249
    %1840 = vmatpush1.msra.mxu0 %v248
    %1841 = vmatprep.subr.mxu0 %v253
    %1842 = vmatpush1.msra.mxu0 %v252
    %1843 = vmatprep.subr.mxu0 %v257
    %1844 = vmatpush1.msra.mxu0 %v256
    %1845 = vmatprep.subr.mxu0 %v261
    %1846 = vmatpush1.msra.mxu0 %v260
    %1847 = vmatprep.subr.mxu0 %v265
    %1848 = vmatpush1.msra.mxu0 %v264
    %1849 = vmatprep.subr.mxu0 %v269
    %1850 = vmatpush1.msra.mxu0 %v268
    %1851 = vmatprep.subr.mxu0 %v273
    %1852 = vmatpush1.msra.mxu0 %v272
    %1853 = vmatprep.subr.mxu0 %v277
    %1854 = vmatpush1.msra.mxu0 %v276
    %1855 = vmatprep.subr.mxu0 %v281
    %1856 = vmatpush1.msra.mxu0 %v280
    %1857 = vmatprep.subr.mxu0 %v285
    %1858 = vmatpush1.msra.mxu0 %v284
    %1859 = vmatprep.subr.mxu0 0.0
    %1860 = vmatpush1.msra.mxu0 0.0
    %1861 = vmatprep.subr.mxu0 0.0
    %1862 = vmatpush1.msra.mxu0 0.0
    %1863 = vmatprep.subr.mxu0 0.0
    %1864 = vmatpush1.msra.mxu0 0.0
    %1865 = vmatprep.subr.mxu0 0.0
    %1866 = vmatpush1.msra.mxu0 0.0
    %1867 = vmatprep.subr.mxu0 0.0
    %1868 = vmatpush1.msra.mxu0 0.0
    %1869 = vmatprep.subr.mxu0 0.0
    %1870 = vmatpush1.msra.mxu0 0.0
    %1871 = vmatprep.subr.mxu0 0.0
    %1872 = vmatpush1.msra.mxu0 0.0
    %1873 = vmatprep.subr.mxu0 0.0
    %1874 = vmatpush1.msra.mxu0 0.0
    %1875 = vmatprep.subr.mxu0 0.0
    %1876 = vmatpush1.msra.mxu0 0.0
    %1877 = vmatprep.subr.mxu0 0.0
    %1878 = vmatpush1.msra.mxu0 0.0
    %1879 = vmatprep.subr.mxu0 0.0
    %1880 = vmatpush1.msra.mxu0 0.0
    %1881 = vmatprep.subr.mxu0 0.0
    %1882 = vmatpush1.msra.mxu0 0.0
    %1883 = vmatprep.subr.mxu0 0.0
    %1884 = vmatpush1.msra.mxu0 0.0
    %1885 = vmatprep.subr.mxu0 0.0
    %1886 = vmatpush1.msra.mxu0 0.0
    %1887 = vmatprep.subr.mxu0 0.0
    %1888 = vmatpush1.msra.mxu0 0.0
    %1889 = vmatprep.subr.mxu0 0.0
    %1890 = vmatpush1.msra.mxu0 0.0
    %1891 = vmatprep.mubr.f32.mxu0 0.0
    %1892 = vmatmul.mubr.f32.gmra.mrb[0].mxu0 %v1201
    %v1893 = vpop.f32.mrb[0].mxu0
    %v1894 = vadd.f32 %v1752, %v1893
    %v1895 = vpop.f32.mrb[0].mxu0
    %v1896 = vadd.f32 %v1754, %v1895
    %1897 = vdwg.mxu0
    %1898 = vmatprep.subr.mxu0 %v227
    %1899 = vmatpush1.msra.mxu0 %v226
    %1900 = vmatprep.subr.mxu0 %v231
    %1901 = vmatpush1.msra.mxu0 %v230
    %1902 = vmatprep.subr.mxu0 %v235
    %1903 = vmatpush1.msra.mxu0 %v234
    %1904 = vmatprep.subr.mxu0 %v239
    %1905 = vmatpush1.msra.mxu0 %v238
    %1906 = vmatprep.subr.mxu0 %v243
    %1907 = vmatpush1.msra.mxu0 %v242
    %1908 = vmatprep.subr.mxu0 %v247
    %1909 = vmatpush1.msra.mxu0 %v246
    %1910 = vmatprep.subr.mxu0 %v251
    %1911 = vmatpush1.msra.mxu0 %v250
    %1912 = vmatprep.subr.mxu0 %v255
    %1913 = vmatpush1.msra.mxu0 %v254
    %1914 = vmatprep.subr.mxu0 %v259
    %1915 = vmatpush1.msra.mxu0 %v258
    %1916 = vmatprep.subr.mxu0 %v263
    %1917 = vmatpush1.msra.mxu0 %v262
    %1918 = vmatprep.subr.mxu0 %v267
    %1919 = vmatpush1.msra.mxu0 %v266
    %1920 = vmatprep.subr.mxu0 %v271
    %1921 = vmatpush1.msra.mxu0 %v270
    %1922 = vmatprep.subr.mxu0 %v275
    %1923 = vmatpush1.msra.mxu0 %v274
    %1924 = vmatprep.subr.mxu0 %v279
    %1925 = vmatpush1.msra.mxu0 %v278
    %1926 = vmatprep.subr.mxu0 %v283
    %1927 = vmatpush1.msra.mxu0 %v282
    %1928 = vmatprep.subr.mxu0 %v287
    %1929 = vmatpush1.msra.mxu0 %v286
    %1930 = vmatprep.subr.mxu0 0.0
    %1931 = vmatpush1.msra.mxu0 0.0
    %1932 = vmatprep.subr.mxu0 0.0
    %1933 = vmatpush1.msra.mxu0 0.0
    %1934 = vmatprep.subr.mxu0 0.0
    %1935 = vmatpush1.msra.mxu0 0.0
    %1936 = vmatprep.subr.mxu0 0.0
    %1937 = vmatpush1.msra.mxu0 0.0
    %1938 = vmatprep.subr.mxu0 0.0
    %1939 = vmatpush1.msra.mxu0 0.0
    %1940 = vmatprep.subr.mxu0 0.0
    %1941 = vmatpush1.msra.mxu0 0.0
    %1942 = vmatprep.subr.mxu0 0.0
    %1943 = vmatpush1.msra.mxu0 0.0
    %1944 = vmatprep.subr.mxu0 0.0
    %1945 = vmatpush1.msra.mxu0 0.0
    %1946 = vmatprep.subr.mxu0 0.0
    %1947 = vmatpush1.msra.mxu0 0.0
    %1948 = vmatprep.subr.mxu0 0.0
    %1949 = vmatpush1.msra.mxu0 0.0
    %1950 = vmatprep.subr.mxu0 0.0
    %1951 = vmatpush1.msra.mxu0 0.0
    %1952 = vmatprep.subr.mxu0 0.0
    %1953 = vmatpush1.msra.mxu0 0.0
    %1954 = vmatprep.subr.mxu0 0.0
    %1955 = vmatpush1.msra.mxu0 0.0
    %1956 = vmatprep.subr.mxu0 0.0
    %1957 = vmatpush1.msra.mxu0 0.0
    %1958 = vmatprep.subr.mxu0 0.0
    %1959 = vmatpush1.msra.mxu0 0.0
    %1960 = vmatprep.subr.mxu0 0.0
    %1961 = vmatpush1.msra.mxu0 0.0
    %1962 = vmatprep.mubr.f32.mxu0 0.0
    %1963 = vmatmul.mubr.f32.gmra.mrb[0].mxu0 %v1201
    %v1964 = vpop.f32.mrb[0].mxu0
    %v1965 = vadd.f32 %v1823, %v1964
    %v1966 = vpop.f32.mrb[0].mxu0
    %v1967 = vadd.f32 %v1825, %v1966
    %1968 = vdwg.mxu0
    %v1969 = vadd.f32 %v1894, %v986
    %v1970 = vadd.f32 %v1896, %v990
    %v1971 = vadd.f32 %v1965, %v994
    %v1972 = vadd.f32 %v1967, %v998
    %v1973 = vxor.u32 %v1969, 2147483648
    %v1974 = vxor.u32 %v1970, 2147483648
    %v1975 = vmul.f32 %v1973, 1.442695
    %v1976 = vpow.pop %v1975
    %v1977 = vmul.f32 %v1974, 1.442695
    %v1978 = vpow.pop %v1977
    %v1979 = vadd.f32 %v1976, 1.0
    %v1980 = vadd.f32 %v1978, 1.0
    %v1981 = vrcp.pop %v1979
    %v1982 = vmul.f32 1.0, %v1981
    %v1983 = vrcp.pop %v1980
    %v1984 = vmul.f32 1.0, %v1983
    %v1985 = vtanh.pop %v1971
    %v1986 = vxor.u32 %v1972, 2147483648
    %v1987 = vmul.f32 %v1986, 1.442695
    %v1988 = vpow.pop %v1987
    %v1989 = vadd.f32 %v1988, 1.0
    %v1990 = vrcp.pop %v1989
    %v1991 = vmul.f32 1.0, %v1990
    %v1992 = vmul.f32 %v1984, %v1511
    %v1993 = vmul.f32 %v1982, %v1985
    %v1994 = vadd.f32 %v1992, %v1993
    %v1995 = vtanh.pop %v1994
    %v1996 = vmul.f32 %v1991, %v1995
    %s1997 = scalar_lea.vmem [#allocation2], 128
    %v1998 = vld [vmem:[%s1997] sm:$0xff]
    %v1999 = vld [vmem:[%s1997 + $0x8] sm:$0xff]
    %v2000 = vld [vmem:[%s1997 + $0x10] sm:$0xff]
    %v2001 = vld [vmem:[%s1997 + $0x18] sm:$0xff]
    %2002 = vmatprep.subr.mxu0 %v161
    %2003 = vmatpush1.msra.mxu0 %v160
    %2004 = vmatprep.subr.mxu0 %v165
    %2005 = vmatpush1.msra.mxu0 %v164
    %2006 = vmatprep.subr.mxu0 %v169
    %2007 = vmatpush1.msra.mxu0 %v168
    %2008 = vmatprep.subr.mxu0 %v173
    %2009 = vmatpush1.msra.mxu0 %v172
    %2010 = vmatprep.subr.mxu0 %v177
    %2011 = vmatpush1.msra.mxu0 %v176
    %2012 = vmatprep.subr.mxu0 %v181
    %2013 = vmatpush1.msra.mxu0 %v180
    %2014 = vmatprep.subr.mxu0 %v185
    %2015 = vmatpush1.msra.mxu0 %v184
    %2016 = vmatprep.subr.mxu0 %v189
    %2017 = vmatpush1.msra.mxu0 %v188
    %2018 = vmatprep.subr.mxu0 %v193
    %2019 = vmatpush1.msra.mxu0 %v192
    %2020 = vmatprep.subr.mxu0 %v197
    %2021 = vmatpush1.msra.mxu0 %v196
    %2022 = vmatprep.subr.mxu0 %v201
    %2023 = vmatpush1.msra.mxu0 %v200
    %2024 = vmatprep.subr.mxu0 %v205
    %2025 = vmatpush1.msra.mxu0 %v204
    %2026 = vmatprep.subr.mxu0 %v209
    %2027 = vmatpush1.msra.mxu0 %v208
    %2028 = vmatprep.subr.mxu0 %v213
    %2029 = vmatpush1.msra.mxu0 %v212
    %2030 = vmatprep.subr.mxu0 %v217
    %2031 = vmatpush1.msra.mxu0 %v216
    %2032 = vmatprep.subr.mxu0 %v221
    %2033 = vmatpush1.msra.mxu0 %v220
    %2034 = vmatprep.subr.mxu0 0.0
    %2035 = vmatpush1.msra.mxu0 0.0
    %2036 = vmatprep.subr.mxu0 0.0
    %2037 = vmatpush1.msra.mxu0 0.0
    %2038 = vmatprep.subr.mxu0 0.0
    %2039 = vmatpush1.msra.mxu0 0.0
    %2040 = vmatprep.subr.mxu0 0.0
    %2041 = vmatpush1.msra.mxu0 0.0
    %2042 = vmatprep.subr.mxu0 0.0
    %2043 = vmatpush1.msra.mxu0 0.0
    %2044 = vmatprep.subr.mxu0 0.0
    %2045 = vmatpush1.msra.mxu0 0.0
    %2046 = vmatprep.subr.mxu0 0.0
    %2047 = vmatpush1.msra.mxu0 0.0
    %2048 = vmatprep.subr.mxu0 0.0
    %2049 = vmatpush1.msra.mxu0 0.0
    %2050 = vmatprep.subr.mxu0 0.0
    %2051 = vmatpush1.msra.mxu0 0.0
    %2052 = vmatprep.subr.mxu0 0.0
    %2053 = vmatpush1.msra.mxu0 0.0
    %2054 = vmatprep.subr.mxu0 0.0
    %2055 = vmatpush1.msra.mxu0 0.0
    %2056 = vmatprep.subr.mxu0 0.0
    %2057 = vmatpush1.msra.mxu0 0.0
    %2058 = vmatprep.subr.mxu0 0.0
    %2059 = vmatpush1.msra.mxu0 0.0
    %2060 = vmatprep.subr.mxu0 0.0
    %2061 = vmatpush1.msra.mxu0 0.0
    %2062 = vmatprep.subr.mxu0 0.0
    %2063 = vmatpush1.msra.mxu0 0.0
    %2064 = vmatprep.subr.mxu0 0.0
    %2065 = vmatpush1.msra.mxu0 0.0
    %2066 = vmatprep.mubr.f32.mxu0 0.0
    %2067 = vmatmul.mubr.f32.gmra.mrb[0].mxu0 %v1684
    %v2068 = vpop.f32.mrb[0].mxu0
    %v2069 = vadd.f32 %v1998, %v2068
    %v2070 = vpop.f32.mrb[0].mxu0
    %v2071 = vadd.f32 %v1999, %v2070
    %2072 = vdwg.mxu0
    %2073 = vmatprep.subr.mxu0 %v163
    %2074 = vmatpush1.msra.mxu0 %v162
    %2075 = vmatprep.subr.mxu0 %v167
    %2076 = vmatpush1.msra.mxu0 %v166
    %2077 = vmatprep.subr.mxu0 %v171
    %2078 = vmatpush1.msra.mxu0 %v170
    %2079 = vmatprep.subr.mxu0 %v175
    %2080 = vmatpush1.msra.mxu0 %v174
    %2081 = vmatprep.subr.mxu0 %v179
    %2082 = vmatpush1.msra.mxu0 %v178
    %2083 = vmatprep.subr.mxu0 %v183
    %2084 = vmatpush1.msra.mxu0 %v182
    %2085 = vmatprep.subr.mxu0 %v187
    %2086 = vmatpush1.msra.mxu0 %v186
    %2087 = vmatprep.subr.mxu0 %v191
    %2088 = vmatpush1.msra.mxu0 %v190
    %2089 = vmatprep.subr.mxu0 %v195
    %2090 = vmatpush1.msra.mxu0 %v194
    %2091 = vmatprep.subr.mxu0 %v199
    %2092 = vmatpush1.msra.mxu0 %v198
    %2093 = vmatprep.subr.mxu0 %v203
    %2094 = vmatpush1.msra.mxu0 %v202
    %2095 = vmatprep.subr.mxu0 %v207
    %2096 = vmatpush1.msra.mxu0 %v206
    %2097 = vmatprep.subr.mxu0 %v211
    %2098 = vmatpush1.msra.mxu0 %v210
    %2099 = vmatprep.subr.mxu0 %v215
    %2100 = vmatpush1.msra.mxu0 %v214
    %2101 = vmatprep.subr.mxu0 %v219
    %2102 = vmatpush1.msra.mxu0 %v218
    %2103 = vmatprep.subr.mxu0 %v223
    %2104 = vmatpush1.msra.mxu0 %v222
    %2105 = vmatprep.subr.mxu0 0.0
    %2106 = vmatpush1.msra.mxu0 0.0
    %2107 = vmatprep.subr.mxu0 0.0
    %2108 = vmatpush1.msra.mxu0 0.0
    %2109 = vmatprep.subr.mxu0 0.0
    %2110 = vmatpush1.msra.mxu0 0.0
    %2111 = vmatprep.subr.mxu0 0.0
    %2112 = vmatpush1.msra.mxu0 0.0
    %2113 = vmatprep.subr.mxu0 0.0
    %2114 = vmatpush1.msra.mxu0 0.0
    %2115 = vmatprep.subr.mxu0 0.0
    %2116 = vmatpush1.msra.mxu0 0.0
    %2117 = vmatprep.subr.mxu0 0.0
    %2118 = vmatpush1.msra.mxu0 0.0
    %2119 = vmatprep.subr.mxu0 0.0
    %2120 = vmatpush1.msra.mxu0 0.0
    %2121 = vmatprep.subr.mxu0 0.0
    %2122 = vmatpush1.msra.mxu0 0.0
    %2123 = vmatprep.subr.mxu0 0.0
    %2124 = vmatpush1.msra.mxu0 0.0
    %2125 = vmatprep.subr.mxu0 0.0
    %2126 = vmatpush1.msra.mxu0 0.0
    %2127 = vmatprep.subr.mxu0 0.0
    %2128 = vmatpush1.msra.mxu0 0.0
    %2129 = vmatprep.subr.mxu0 0.0
    %2130 = vmatpush1.msra.mxu0 0.0
    %2131 = vmatprep.subr.mxu0 0.0
    %2132 = vmatpush1.msra.mxu0 0.0
    %2133 = vmatprep.subr.mxu0 0.0
    %2134 = vmatpush1.msra.mxu0 0.0
    %2135 = vmatprep.subr.mxu0 0.0
    %2136 = vmatpush1.msra.mxu0 0.0
    %2137 = vmatprep.mubr.f32.mxu0 0.0
    %2138 = vmatmul.mubr.f32.gmra.mrb[0].mxu0 %v1684
    %v2139 = vpop.f32.mrb[0].mxu0
    %v2140 = vadd.f32 %v2000, %v2139
    %v2141 = vpop.f32.mrb[0].mxu0
    %v2142 = vadd.f32 %v2001, %v2141
    %2143 = vdwg.mxu0
    %v2144 = vxor.u32 %v2069, 2147483648
    %v2145 = vxor.u32 %v2071, 2147483648
    %v2146 = vmul.f32 %v2144, 1.442695
    %v2147 = vpow.pop %v2146
    %v2148 = vmul.f32 %v2145, 1.442695
    %v2149 = vpow.pop %v2148
    %v2150 = vadd.f32 %v2147, 1.0
    %v2151 = vadd.f32 %v2149, 1.0
    %v2152 = vrcp.pop %v2150
    %v2153 = vmul.f32 1.0, %v2152
    %v2154 = vrcp.pop %v2151
    %v2155 = vmul.f32 1.0, %v2154
    %v2156 = vtanh.pop %v2140
    %v2157 = vxor.u32 %v2142, 2147483648
    %v2158 = vmul.f32 %v2157, 1.442695
    %v2159 = vpow.pop %v2158
    %v2160 = vadd.f32 %v2159, 1.0
    %v2161 = vrcp.pop %v2160
    %v2162 = vmul.f32 1.0, %v2161
    %v2163 = vmul.f32 %v2155, %v1682
    %v2164 = vmul.f32 %v2153, %v2156
    %v2165 = vadd.f32 %v2163, %v2164
    %v2166 = vtanh.pop %v2165
    %v2167 = vmul.f32 %v2162, %v2166
    %2168 = vmatprep.subr.mxu0 %v289
    %2169 = vmatpush1.msra.mxu0 %v288
    %2170 = vmatprep.subr.mxu0 %v293
    %2171 = vmatpush1.msra.mxu0 %v292
    %2172 = vmatprep.subr.mxu0 %v297
    %2173 = vmatpush1.msra.mxu0 %v296
    %2174 = vmatprep.subr.mxu0 %v301
    %2175 = vmatpush1.msra.mxu0 %v300
    %2176 = vmatprep.subr.mxu0 %v305
    %2177 = vmatpush1.msra.mxu0 %v304
    %2178 = vmatprep.subr.mxu0 %v309
    %2179 = vmatpush1.msra.mxu0 %v308
    %2180 = vmatprep.subr.mxu0 %v313
    %2181 = vmatpush1.msra.mxu0 %v312
    %2182 = vmatprep.subr.mxu0 %v317
    %2183 = vmatpush1.msra.mxu0 %v316
    %2184 = vmatprep.subr.mxu0 %v321
    %2185 = vmatpush1.msra.mxu0 %v320
    %2186 = vmatprep.subr.mxu0 %v325
    %2187 = vmatpush1.msra.mxu0 %v324
    %2188 = vmatprep.subr.mxu0 %v329
    %2189 = vmatpush1.msra.mxu0 %v328
    %2190 = vmatprep.subr.mxu0 %v333
    %2191 = vmatpush1.msra.mxu0 %v332
    %2192 = vmatprep.subr.mxu0 %v337
    %2193 = vmatpush1.msra.mxu0 %v336
    %2194 = vmatprep.subr.mxu0 %v341
    %2195 = vmatpush1.msra.mxu0 %v340
    %2196 = vmatprep.subr.mxu0 %v345
    %2197 = vmatpush1.msra.mxu0 %v344
    %2198 = vmatprep.subr.mxu0 %v349
    %2199 = vmatpush1.msra.mxu0 %v348
    %2200 = vmatprep.subr.mxu0 0.0
    %2201 = vmatpush1.msra.mxu0 0.0
    %2202 = vmatprep.subr.mxu0 0.0
    %2203 = vmatpush1.msra.mxu0 0.0
    %2204 = vmatprep.subr.mxu0 0.0
    %2205 = vmatpush1.msra.mxu0 0.0
    %2206 = vmatprep.subr.mxu0 0.0
    %2207 = vmatpush1.msra.mxu0 0.0
    %2208 = vmatprep.subr.mxu0 0.0
    %2209 = vmatpush1.msra.mxu0 0.0
    %2210 = vmatprep.subr.mxu0 0.0
    %2211 = vmatpush1.msra.mxu0 0.0
    %2212 = vmatprep.subr.mxu0 0.0
    %2213 = vmatpush1.msra.mxu0 0.0
    %2214 = vmatprep.subr.mxu0 0.0
    %2215 = vmatpush1.msra.mxu0 0.0
    %2216 = vmatprep.subr.mxu0 0.0
    %2217 = vmatpush1.msra.mxu0 0.0
    %2218 = vmatprep.subr.mxu0 0.0
    %2219 = vmatpush1.msra.mxu0 0.0
    %2220 = vmatprep.subr.mxu0 0.0
    %2221 = vmatpush1.msra.mxu0 0.0
    %2222 = vmatprep.subr.mxu0 0.0
    %2223 = vmatpush1.msra.mxu0 0.0
    %2224 = vmatprep.subr.mxu0 0.0
    %2225 = vmatpush1.msra.mxu0 0.0
    %2226 = vmatprep.subr.mxu0 0.0
    %2227 = vmatpush1.msra.mxu0 0.0
    %2228 = vmatprep.subr.mxu0 0.0
    %2229 = vmatpush1.msra.mxu0 0.0
    %2230 = vmatprep.subr.mxu0 0.0
    %2231 = vmatpush1.msra.mxu0 0.0
    %2232 = vmatprep.mubr.f32.mxu0 0.0
    %2233 = vmatmul.mubr.f32.gmra.mrb[0].mxu0 %v1996
    %v2234 = vpop.f32.mrb[0].mxu0
    %v2235 = vadd.f32 0.0, %v2234
    %v2236 = vpop.f32.mrb[0].mxu0
    %v2237 = vadd.f32 0.0, %v2236
    %2238 = vdwg.mxu0
    %2239 = vmatprep.subr.mxu0 %v291
    %2240 = vmatpush1.msra.mxu0 %v290
    %2241 = vmatprep.subr.mxu0 %v295
    %2242 = vmatpush1.msra.mxu0 %v294
    %2243 = vmatprep.subr.mxu0 %v299
    %2244 = vmatpush1.msra.mxu0 %v298
    %2245 = vmatprep.subr.mxu0 %v303
    %2246 = vmatpush1.msra.mxu0 %v302
    %2247 = vmatprep.subr.mxu0 %v307
    %2248 = vmatpush1.msra.mxu0 %v306
    %2249 = vmatprep.subr.mxu0 %v311
    %2250 = vmatpush1.msra.mxu0 %v310
    %2251 = vmatprep.subr.mxu0 %v315
    %2252 = vmatpush1.msra.mxu0 %v314
    %2253 = vmatprep.subr.mxu0 %v319
    %2254 = vmatpush1.msra.mxu0 %v318
    %2255 = vmatprep.subr.mxu0 %v323
    %2256 = vmatpush1.msra.mxu0 %v322
    %2257 = vmatprep.subr.mxu0 %v327
    %2258 = vmatpush1.msra.mxu0 %v326
    %2259 = vmatprep.subr.mxu0 %v331
    %2260 = vmatpush1.msra.mxu0 %v330
    %2261 = vmatprep.subr.mxu0 %v335
    %2262 = vmatpush1.msra.mxu0 %v334
    %2263 = vmatprep.subr.mxu0 %v339
    %2264 = vmatpush1.msra.mxu0 %v338
    %2265 = vmatprep.subr.mxu0 %v343
    %2266 = vmatpush1.msra.mxu0 %v342
    %2267 = vmatprep.subr.mxu0 %v347
    %2268 = vmatpush1.msra.mxu0 %v346
    %2269 = vmatprep.subr.mxu0 %v351
    %2270 = vmatpush1.msra.mxu0 %v350
    %2271 = vmatprep.subr.mxu0 0.0
    %2272 = vmatpush1.msra.mxu0 0.0
    %2273 = vmatprep.subr.mxu0 0.0
    %2274 = vmatpush1.msra.mxu0 0.0
    %2275 = vmatprep.subr.mxu0 0.0
    %2276 = vmatpush1.msra.mxu0 0.0
    %2277 = vmatprep.subr.mxu0 0.0
    %2278 = vmatpush1.msra.mxu0 0.0
    %2279 = vmatprep.subr.mxu0 0.0
    %2280 = vmatpush1.msra.mxu0 0.0
    %2281 = vmatprep.subr.mxu0 0.0
    %2282 = vmatpush1.msra.mxu0 0.0
    %2283 = vmatprep.subr.mxu0 0.0
    %2284 = vmatpush1.msra.mxu0 0.0
    %2285 = vmatprep.subr.mxu0 0.0
    %2286 = vmatpush1.msra.mxu0 0.0
    %2287 = vmatprep.subr.mxu0 0.0
    %2288 = vmatpush1.msra.mxu0 0.0
    %2289 = vmatprep.subr.mxu0 0.0
    %2290 = vmatpush1.msra.mxu0 0.0
    %2291 = vmatprep.subr.mxu0 0.0
    %2292 = vmatpush1.msra.mxu0 0.0
    %2293 = vmatprep.subr.mxu0 0.0
    %2294 = vmatpush1.msra.mxu0 0.0
    %2295 = vmatprep.subr.mxu0 0.0
    %2296 = vmatpush1.msra.mxu0 0.0
    %2297 = vmatprep.subr.mxu0 0.0
    %2298 = vmatpush1.msra.mxu0 0.0
    %2299 = vmatprep.subr.mxu0 0.0
    %2300 = vmatpush1.msra.mxu0 0.0
    %2301 = vmatprep.subr.mxu0 0.0
    %2302 = vmatpush1.msra.mxu0 0.0
    %2303 = vmatprep.mubr.f32.mxu0 0.0
    %2304 = vmatmul.mubr.f32.gmra.mrb[0].mxu0 %v1996
    %v2305 = vpop.f32.mrb[0].mxu0
    %v2306 = vadd.f32 0.0, %v2305
    %v2307 = vpop.f32.mrb[0].mxu0
    %v2308 = vadd.f32 0.0, %v2307
    %2309 = vdwg.mxu0
    %2310 = vmatprep.subr.mxu0 %v225
    %2311 = vmatpush1.msra.mxu0 %v224
    %2312 = vmatprep.subr.mxu0 %v229
    %2313 = vmatpush1.msra.mxu0 %v228
    %2314 = vmatprep.subr.mxu0 %v233
    %2315 = vmatpush1.msra.mxu0 %v232
    %2316 = vmatprep.subr.mxu0 %v237
    %2317 = vmatpush1.msra.mxu0 %v236
    %2318 = vmatprep.subr.mxu0 %v241
    %2319 = vmatpush1.msra.mxu0 %v240
    %2320 = vmatprep.subr.mxu0 %v245
    %2321 = vmatpush1.msra.mxu0 %v244
    %2322 = vmatprep.subr.mxu0 %v249
    %2323 = vmatpush1.msra.mxu0 %v248
    %2324 = vmatprep.subr.mxu0 %v253
    %2325 = vmatpush1.msra.mxu0 %v252
    %2326 = vmatprep.subr.mxu0 %v257
    %2327 = vmatpush1.msra.mxu0 %v256
    %2328 = vmatprep.subr.mxu0 %v261
    %2329 = vmatpush1.msra.mxu0 %v260
    %2330 = vmatprep.subr.mxu0 %v265
    %2331 = vmatpush1.msra.mxu0 %v264
    %2332 = vmatprep.subr.mxu0 %v269
    %2333 = vmatpush1.msra.mxu0 %v268
    %2334 = vmatprep.subr.mxu0 %v273
    %2335 = vmatpush1.msra.mxu0 %v272
    %2336 = vmatprep.subr.mxu0 %v277
    %2337 = vmatpush1.msra.mxu0 %v276
    %2338 = vmatprep.subr.mxu0 %v281
    %2339 = vmatpush1.msra.mxu0 %v280
    %2340 = vmatprep.subr.mxu0 %v285
    %2341 = vmatpush1.msra.mxu0 %v284
    %2342 = vmatprep.subr.mxu0 0.0
    %2343 = vmatpush1.msra.mxu0 0.0
    %2344 = vmatprep.subr.mxu0 0.0
    %2345 = vmatpush1.msra.mxu0 0.0
    %2346 = vmatprep.subr.mxu0 0.0
    %2347 = vmatpush1.msra.mxu0 0.0
    %2348 = vmatprep.subr.mxu0 0.0
    %2349 = vmatpush1.msra.mxu0 0.0
    %2350 = vmatprep.subr.mxu0 0.0
    %2351 = vmatpush1.msra.mxu0 0.0
    %2352 = vmatprep.subr.mxu0 0.0
    %2353 = vmatpush1.msra.mxu0 0.0
    %2354 = vmatprep.subr.mxu0 0.0
    %2355 = vmatpush1.msra.mxu0 0.0
    %2356 = vmatprep.subr.mxu0 0.0
    %2357 = vmatpush1.msra.mxu0 0.0
    %2358 = vmatprep.subr.mxu0 0.0
    %2359 = vmatpush1.msra.mxu0 0.0
    %2360 = vmatprep.subr.mxu0 0.0
    %2361 = vmatpush1.msra.mxu0 0.0
    %2362 = vmatprep.subr.mxu0 0.0
    %2363 = vmatpush1.msra.mxu0 0.0
    %2364 = vmatprep.subr.mxu0 0.0
    %2365 = vmatpush1.msra.mxu0 0.0
    %2366 = vmatprep.subr.mxu0 0.0
    %2367 = vmatpush1.msra.mxu0 0.0
    %2368 = vmatprep.subr.mxu0 0.0
    %2369 = vmatpush1.msra.mxu0 0.0
    %2370 = vmatprep.subr.mxu0 0.0
    %2371 = vmatpush1.msra.mxu0 0.0
    %2372 = vmatprep.subr.mxu0 0.0
    %2373 = vmatpush1.msra.mxu0 0.0
    %2374 = vmatprep.mubr.f32.mxu0 0.0
    %2375 = vmatmul.mubr.f32.gmra.mrb[0].mxu0 %v1684
    %v2376 = vpop.f32.mrb[0].mxu0
    %v2377 = vadd.f32 %v2235, %v2376
    %v2378 = vpop.f32.mrb[0].mxu0
    %v2379 = vadd.f32 %v2237, %v2378
    %2380 = vdwg.mxu0
    %2381 = vmatprep.subr.mxu0 %v227
    %2382 = vmatpush1.msra.mxu0 %v226
    %2383 = vmatprep.subr.mxu0 %v231
    %2384 = vmatpush1.msra.mxu0 %v230
    %2385 = vmatprep.subr.mxu0 %v235
    %2386 = vmatpush1.msra.mxu0 %v234
    %2387 = vmatprep.subr.mxu0 %v239
    %2388 = vmatpush1.msra.mxu0 %v238
    %2389 = vmatprep.subr.mxu0 %v243
    %2390 = vmatpush1.msra.mxu0 %v242
    %2391 = vmatprep.subr.mxu0 %v247
    %2392 = vmatpush1.msra.mxu0 %v246
    %2393 = vmatprep.subr.mxu0 %v251
    %2394 = vmatpush1.msra.mxu0 %v250
    %2395 = vmatprep.subr.mxu0 %v255
    %2396 = vmatpush1.msra.mxu0 %v254
    %2397 = vmatprep.subr.mxu0 %v259
    %2398 = vmatpush1.msra.mxu0 %v258
    %2399 = vmatprep.subr.mxu0 %v263
    %2400 = vmatpush1.msra.mxu0 %v262
    %2401 = vmatprep.subr.mxu0 %v267
    %2402 = vmatpush1.msra.mxu0 %v266
    %2403 = vmatprep.subr.mxu0 %v271
    %2404 = vmatpush1.msra.mxu0 %v270
    %2405 = vmatprep.subr.mxu0 %v275
    %2406 = vmatpush1.msra.mxu0 %v274
    %2407 = vmatprep.subr.mxu0 %v279
    %2408 = vmatpush1.msra.mxu0 %v278
    %2409 = vmatprep.subr.mxu0 %v283
    %2410 = vmatpush1.msra.mxu0 %v282
    %2411 = vmatprep.subr.mxu0 %v287
    %2412 = vmatpush1.msra.mxu0 %v286
    %2413 = vmatprep.subr.mxu0 0.0
    %2414 = vmatpush1.msra.mxu0 0.0
    %2415 = vmatprep.subr.mxu0 0.0
    %2416 = vmatpush1.msra.mxu0 0.0
    %2417 = vmatprep.subr.mxu0 0.0
    %2418 = vmatpush1.msra.mxu0 0.0
    %2419 = vmatprep.subr.mxu0 0.0
    %2420 = vmatpush1.msra.mxu0 0.0
    %2421 = vmatprep.subr.mxu0 0.0
    %2422 = vmatpush1.msra.mxu0 0.0
    %2423 = vmatprep.subr.mxu0 0.0
    %2424 = vmatpush1.msra.mxu0 0.0
    %2425 = vmatprep.subr.mxu0 0.0
    %2426 = vmatpush1.msra.mxu0 0.0
    %2427 = vmatprep.subr.mxu0 0.0
    %2428 = vmatpush1.msra.mxu0 0.0
    %2429 = vmatprep.subr.mxu0 0.0
    %2430 = vmatpush1.msra.mxu0 0.0
    %2431 = vmatprep.subr.mxu0 0.0
    %2432 = vmatpush1.msra.mxu0 0.0
    %2433 = vmatprep.subr.mxu0 0.0
    %2434 = vmatpush1.msra.mxu0 0.0
    %2435 = vmatprep.subr.mxu0 0.0
    %2436 = vmatpush1.msra.mxu0 0.0
    %2437 = vmatprep.subr.mxu0 0.0
    %2438 = vmatpush1.msra.mxu0 0.0
    %2439 = vmatprep.subr.mxu0 0.0
    %2440 = vmatpush1.msra.mxu0 0.0
    %2441 = vmatprep.subr.mxu0 0.0
    %2442 = vmatpush1.msra.mxu0 0.0
    %2443 = vmatprep.subr.mxu0 0.0
    %2444 = vmatpush1.msra.mxu0 0.0
    %2445 = vmatprep.mubr.f32.mxu0 0.0
    %2446 = vmatmul.mubr.f32.gmra.mrb[0].mxu0 %v1684
    %v2447 = vpop.f32.mrb[0].mxu0
    %v2448 = vadd.f32 %v2306, %v2447
    %v2449 = vpop.f32.mrb[0].mxu0
    %v2450 = vadd.f32 %v2308, %v2449
    %2451 = vdwg.mxu0
    %v2452 = vadd.f32 %v2377, %v986
    %v2453 = vadd.f32 %v2379, %v990
    %v2454 = vadd.f32 %v2448, %v994
    %v2455 = vadd.f32 %v2450, %v998
    %v2456 = vxor.u32 %v2452, 2147483648
    %v2457 = vxor.u32 %v2453, 2147483648
    %v2458 = vmul.f32 %v2456, 1.442695
    %v2459 = vpow.pop %v2458
    %v2460 = vmul.f32 %v2457, 1.442695
    %v2461 = vpow.pop %v2460
    %v2462 = vadd.f32 %v2459, 1.0
    %v2463 = vadd.f32 %v2461, 1.0
    %v2464 = vrcp.pop %v2462
    %v2465 = vmul.f32 1.0, %v2464
    %v2466 = vrcp.pop %v2463
    %v2467 = vmul.f32 1.0, %v2466
    %v2468 = vtanh.pop %v2454
    %v2469 = vxor.u32 %v2455, 2147483648
    %v2470 = vmul.f32 %v2469, 1.442695
    %v2471 = vpow.pop %v2470
    %v2472 = vadd.f32 %v2471, 1.0
    %v2473 = vrcp.pop %v2472
    %v2474 = vmul.f32 1.0, %v2473
    %v2475 = vmul.f32 %v2467, %v1994
    %v2476 = vmul.f32 %v2465, %v2468
    %v2477 = vadd.f32 %v2475, %v2476
    %v2478 = vtanh.pop %v2477
    %v2479 = vmul.f32 %v2474, %v2478
    %s2480 = scalar_lea.vmem [#allocation2], 160
    %v2481 = vld [vmem:[%s2480] sm:$0xff]
    %v2482 = vld [vmem:[%s2480 + $0x8] sm:$0xff]
    %v2483 = vld [vmem:[%s2480 + $0x10] sm:$0xff]
    %v2484 = vld [vmem:[%s2480 + $0x18] sm:$0xff]
    %2485 = vmatprep.subr.mxu0 %v161
    %2486 = vmatpush1.msra.mxu0 %v160
    %2487 = vmatprep.subr.mxu0 %v165
    %2488 = vmatpush1.msra.mxu0 %v164
    %2489 = vmatprep.subr.mxu0 %v169
    %2490 = vmatpush1.msra.mxu0 %v168
    %2491 = vmatprep.subr.mxu0 %v173
    %2492 = vmatpush1.msra.mxu0 %v172
    %2493 = vmatprep.subr.mxu0 %v177
    %2494 = vmatpush1.msra.mxu0 %v176
    %2495 = vmatprep.subr.mxu0 %v181
    %2496 = vmatpush1.msra.mxu0 %v180
    %2497 = vmatprep.subr.mxu0 %v185
    %2498 = vmatpush1.msra.mxu0 %v184
    %2499 = vmatprep.subr.mxu0 %v189
    %2500 = vmatpush1.msra.mxu0 %v188
    %2501 = vmatprep.subr.mxu0 %v193
    %2502 = vmatpush1.msra.mxu0 %v192
    %2503 = vmatprep.subr.mxu0 %v197
    %2504 = vmatpush1.msra.mxu0 %v196
    %2505 = vmatprep.subr.mxu0 %v201
    %2506 = vmatpush1.msra.mxu0 %v200
    %2507 = vmatprep.subr.mxu0 %v205
    %2508 = vmatpush1.msra.mxu0 %v204
    %2509 = vmatprep.subr.mxu0 %v209
    %2510 = vmatpush1.msra.mxu0 %v208
    %2511 = vmatprep.subr.mxu0 %v213
    %2512 = vmatpush1.msra.mxu0 %v212
    %2513 = vmatprep.subr.mxu0 %v217
    %2514 = vmatpush1.msra.mxu0 %v216
    %2515 = vmatprep.subr.mxu0 %v221
    %2516 = vmatpush1.msra.mxu0 %v220
    %2517 = vmatprep.subr.mxu0 0.0
    %2518 = vmatpush1.msra.mxu0 0.0
    %2519 = vmatprep.subr.mxu0 0.0
    %2520 = vmatpush1.msra.mxu0 0.0
    %2521 = vmatprep.subr.mxu0 0.0
    %2522 = vmatpush1.msra.mxu0 0.0
    %2523 = vmatprep.subr.mxu0 0.0
    %2524 = vmatpush1.msra.mxu0 0.0
    %2525 = vmatprep.subr.mxu0 0.0
    %2526 = vmatpush1.msra.mxu0 0.0
    %2527 = vmatprep.subr.mxu0 0.0
    %2528 = vmatpush1.msra.mxu0 0.0
    %2529 = vmatprep.subr.mxu0 0.0
    %2530 = vmatpush1.msra.mxu0 0.0
    %2531 = vmatprep.subr.mxu0 0.0
    %2532 = vmatpush1.msra.mxu0 0.0
    %2533 = vmatprep.subr.mxu0 0.0
    %2534 = vmatpush1.msra.mxu0 0.0
    %2535 = vmatprep.subr.mxu0 0.0
    %2536 = vmatpush1.msra.mxu0 0.0
    %2537 = vmatprep.subr.mxu0 0.0
    %2538 = vmatpush1.msra.mxu0 0.0
    %2539 = vmatprep.subr.mxu0 0.0
    %2540 = vmatpush1.msra.mxu0 0.0
    %2541 = vmatprep.subr.mxu0 0.0
    %2542 = vmatpush1.msra.mxu0 0.0
    %2543 = vmatprep.subr.mxu0 0.0
    %2544 = vmatpush1.msra.mxu0 0.0
    %2545 = vmatprep.subr.mxu0 0.0
    %2546 = vmatpush1.msra.mxu0 0.0
    %2547 = vmatprep.subr.mxu0 0.0
    %2548 = vmatpush1.msra.mxu0 0.0
    %2549 = vmatprep.mubr.f32.mxu0 0.0
    %2550 = vmatmul.mubr.f32.gmra.mrb[0].mxu0 %v2167
    %v2551 = vpop.f32.mrb[0].mxu0
    %v2552 = vadd.f32 %v2481, %v2551
    %v2553 = vpop.f32.mrb[0].mxu0
    %v2554 = vadd.f32 %v2482, %v2553
    %2555 = vdwg.mxu0
    %2556 = vmatprep.subr.mxu0 %v163
    %2557 = vmatpush1.msra.mxu0 %v162
    %2558 = vmatprep.subr.mxu0 %v167
    %2559 = vmatpush1.msra.mxu0 %v166
    %2560 = vmatprep.subr.mxu0 %v171
    %2561 = vmatpush1.msra.mxu0 %v170
    %2562 = vmatprep.subr.mxu0 %v175
    %2563 = vmatpush1.msra.mxu0 %v174
    %2564 = vmatprep.subr.mxu0 %v179
    %2565 = vmatpush1.msra.mxu0 %v178
    %2566 = vmatprep.subr.mxu0 %v183
    %2567 = vmatpush1.msra.mxu0 %v182
    %2568 = vmatprep.subr.mxu0 %v187
    %2569 = vmatpush1.msra.mxu0 %v186
    %2570 = vmatprep.subr.mxu0 %v191
    %2571 = vmatpush1.msra.mxu0 %v190
    %2572 = vmatprep.subr.mxu0 %v195
    %2573 = vmatpush1.msra.mxu0 %v194
    %2574 = vmatprep.subr.mxu0 %v199
    %2575 = vmatpush1.msra.mxu0 %v198
    %2576 = vmatprep.subr.mxu0 %v203
    %2577 = vmatpush1.msra.mxu0 %v202
    %2578 = vmatprep.subr.mxu0 %v207
    %2579 = vmatpush1.msra.mxu0 %v206
    %2580 = vmatprep.subr.mxu0 %v211
    %2581 = vmatpush1.msra.mxu0 %v210
    %2582 = vmatprep.subr.mxu0 %v215
    %2583 = vmatpush1.msra.mxu0 %v214
    %2584 = vmatprep.subr.mxu0 %v219
    %2585 = vmatpush1.msra.mxu0 %v218
    %2586 = vmatprep.subr.mxu0 %v223
    %2587 = vmatpush1.msra.mxu0 %v222
    %2588 = vmatprep.subr.mxu0 0.0
    %2589 = vmatpush1.msra.mxu0 0.0
    %2590 = vmatprep.subr.mxu0 0.0
    %2591 = vmatpush1.msra.mxu0 0.0
    %2592 = vmatprep.subr.mxu0 0.0
    %2593 = vmatpush1.msra.mxu0 0.0
    %2594 = vmatprep.subr.mxu0 0.0
    %2595 = vmatpush1.msra.mxu0 0.0
    %2596 = vmatprep.subr.mxu0 0.0
    %2597 = vmatpush1.msra.mxu0 0.0
    %2598 = vmatprep.subr.mxu0 0.0
    %2599 = vmatpush1.msra.mxu0 0.0
    %2600 = vmatprep.subr.mxu0 0.0
    %2601 = vmatpush1.msra.mxu0 0.0
    %2602 = vmatprep.subr.mxu0 0.0
    %2603 = vmatpush1.msra.mxu0 0.0
    %2604 = vmatprep.subr.mxu0 0.0
    %2605 = vmatpush1.msra.mxu0 0.0
    %2606 = vmatprep.subr.mxu0 0.0
    %2607 = vmatpush1.msra.mxu0 0.0
    %2608 = vmatprep.subr.mxu0 0.0
    %2609 = vmatpush1.msra.mxu0 0.0
    %2610 = vmatprep.subr.mxu0 0.0
    %2611 = vmatpush1.msra.mxu0 0.0
    %2612 = vmatprep.subr.mxu0 0.0
    %2613 = vmatpush1.msra.mxu0 0.0
    %2614 = vmatprep.subr.mxu0 0.0
    %2615 = vmatpush1.msra.mxu0 0.0
    %2616 = vmatprep.subr.mxu0 0.0
    %2617 = vmatpush1.msra.mxu0 0.0
    %2618 = vmatprep.subr.mxu0 0.0
    %2619 = vmatpush1.msra.mxu0 0.0
    %2620 = vmatprep.mubr.f32.mxu0 0.0
    %2621 = vmatmul.mubr.f32.gmra.mrb[0].mxu0 %v2167
    %v2622 = vpop.f32.mrb[0].mxu0
    %v2623 = vadd.f32 %v2483, %v2622
    %v2624 = vpop.f32.mrb[0].mxu0
    %v2625 = vadd.f32 %v2484, %v2624
    %2626 = vdwg.mxu0
    %v2627 = vxor.u32 %v2552, 2147483648
    %v2628 = vxor.u32 %v2554, 2147483648
    %v2629 = vmul.f32 %v2627, 1.442695
    %v2630 = vpow.pop %v2629
    %v2631 = vmul.f32 %v2628, 1.442695
    %v2632 = vpow.pop %v2631
    %v2633 = vadd.f32 %v2630, 1.0
    %v2634 = vadd.f32 %v2632, 1.0
    %v2635 = vrcp.pop %v2633
    %v2636 = vmul.f32 1.0, %v2635
    %v2637 = vrcp.pop %v2634
    %v2638 = vmul.f32 1.0, %v2637
    %v2639 = vtanh.pop %v2623
    %v2640 = vxor.u32 %v2625, 2147483648
    %v2641 = vmul.f32 %v2640, 1.442695
    %v2642 = vpow.pop %v2641
    %v2643 = vadd.f32 %v2642, 1.0
    %v2644 = vrcp.pop %v2643
    %v2645 = vmul.f32 1.0, %v2644
    %v2646 = vmul.f32 %v2638, %v2165
    %v2647 = vmul.f32 %v2636, %v2639
    %v2648 = vadd.f32 %v2646, %v2647
    %v2649 = vtanh.pop %v2648
    %v2650 = vmul.f32 %v2645, %v2649
    %2651 = vmatprep.subr.mxu0 %v289
    %2652 = vmatpush1.msra.mxu0 %v288
    %2653 = vmatprep.subr.mxu0 %v293
    %2654 = vmatpush1.msra.mxu0 %v292
    %2655 = vmatprep.subr.mxu0 %v297
    %2656 = vmatpush1.msra.mxu0 %v296
    %2657 = vmatprep.subr.mxu0 %v301
    %2658 = vmatpush1.msra.mxu0 %v300
    %2659 = vmatprep.subr.mxu0 %v305
    %2660 = vmatpush1.msra.mxu0 %v304
    %2661 = vmatprep.subr.mxu0 %v309
    %2662 = vmatpush1.msra.mxu0 %v308
    %2663 = vmatprep.subr.mxu0 %v313
    %2664 = vmatpush1.msra.mxu0 %v312
    %2665 = vmatprep.subr.mxu0 %v317
    %2666 = vmatpush1.msra.mxu0 %v316
    %2667 = vmatprep.subr.mxu0 %v321
    %2668 = vmatpush1.msra.mxu0 %v320
    %2669 = vmatprep.subr.mxu0 %v325
    %2670 = vmatpush1.msra.mxu0 %v324
    %2671 = vmatprep.subr.mxu0 %v329
    %2672 = vmatpush1.msra.mxu0 %v328
    %2673 = vmatprep.subr.mxu0 %v333
    %2674 = vmatpush1.msra.mxu0 %v332
    %2675 = vmatprep.subr.mxu0 %v337
    %2676 = vmatpush1.msra.mxu0 %v336
    %2677 = vmatprep.subr.mxu0 %v341
    %2678 = vmatpush1.msra.mxu0 %v340
    %2679 = vmatprep.subr.mxu0 %v345
    %2680 = vmatpush1.msra.mxu0 %v344
    %2681 = vmatprep.subr.mxu0 %v349
    %2682 = vmatpush1.msra.mxu0 %v348
    %2683 = vmatprep.subr.mxu0 0.0
    %2684 = vmatpush1.msra.mxu0 0.0
    %2685 = vmatprep.subr.mxu0 0.0
    %2686 = vmatpush1.msra.mxu0 0.0
    %2687 = vmatprep.subr.mxu0 0.0
    %2688 = vmatpush1.msra.mxu0 0.0
    %2689 = vmatprep.subr.mxu0 0.0
    %2690 = vmatpush1.msra.mxu0 0.0
    %2691 = vmatprep.subr.mxu0 0.0
    %2692 = vmatpush1.msra.mxu0 0.0
    %2693 = vmatprep.subr.mxu0 0.0
    %2694 = vmatpush1.msra.mxu0 0.0
    %2695 = vmatprep.subr.mxu0 0.0
    %2696 = vmatpush1.msra.mxu0 0.0
    %2697 = vmatprep.subr.mxu0 0.0
    %2698 = vmatpush1.msra.mxu0 0.0
    %2699 = vmatprep.subr.mxu0 0.0
    %2700 = vmatpush1.msra.mxu0 0.0
    %2701 = vmatprep.subr.mxu0 0.0
    %2702 = vmatpush1.msra.mxu0 0.0
    %2703 = vmatprep.subr.mxu0 0.0
    %2704 = vmatpush1.msra.mxu0 0.0
    %2705 = vmatprep.subr.mxu0 0.0
    %2706 = vmatpush1.msra.mxu0 0.0
    %2707 = vmatprep.subr.mxu0 0.0
    %2708 = vmatpush1.msra.mxu0 0.0
    %2709 = vmatprep.subr.mxu0 0.0
    %2710 = vmatpush1.msra.mxu0 0.0
    %2711 = vmatprep.subr.mxu0 0.0
    %2712 = vmatpush1.msra.mxu0 0.0
    %2713 = vmatprep.subr.mxu0 0.0
    %2714 = vmatpush1.msra.mxu0 0.0
    %2715 = vmatprep.mubr.f32.mxu0 0.0
    %2716 = vmatmul.mubr.f32.gmra.mrb[0].mxu0 %v2479
    %v2717 = vpop.f32.mrb[0].mxu0
    %v2718 = vadd.f32 0.0, %v2717
    %v2719 = vpop.f32.mrb[0].mxu0
    %v2720 = vadd.f32 0.0, %v2719
    %2721 = vdwg.mxu0
    %2722 = vmatprep.subr.mxu0 %v291
    %2723 = vmatpush1.msra.mxu0 %v290
    %2724 = vmatprep.subr.mxu0 %v295
    %2725 = vmatpush1.msra.mxu0 %v294
    %2726 = vmatprep.subr.mxu0 %v299
    %2727 = vmatpush1.msra.mxu0 %v298
    %2728 = vmatprep.subr.mxu0 %v303
    %2729 = vmatpush1.msra.mxu0 %v302
    %2730 = vmatprep.subr.mxu0 %v307
    %2731 = vmatpush1.msra.mxu0 %v306
    %2732 = vmatprep.subr.mxu0 %v311
    %2733 = vmatpush1.msra.mxu0 %v310
    %2734 = vmatprep.subr.mxu0 %v315
    %2735 = vmatpush1.msra.mxu0 %v314
    %2736 = vmatprep.subr.mxu0 %v319
    %2737 = vmatpush1.msra.mxu0 %v318
    %2738 = vmatprep.subr.mxu0 %v323
    %2739 = vmatpush1.msra.mxu0 %v322
    %2740 = vmatprep.subr.mxu0 %v327
    %2741 = vmatpush1.msra.mxu0 %v326
    %2742 = vmatprep.subr.mxu0 %v331
    %2743 = vmatpush1.msra.mxu0 %v330
    %2744 = vmatprep.subr.mxu0 %v335
    %2745 = vmatpush1.msra.mxu0 %v334
    %2746 = vmatprep.subr.mxu0 %v339
    %2747 = vmatpush1.msra.mxu0 %v338
    %2748 = vmatprep.subr.mxu0 %v343
    %2749 = vmatpush1.msra.mxu0 %v342
    %2750 = vmatprep.subr.mxu0 %v347
    %2751 = vmatpush1.msra.mxu0 %v346
    %2752 = vmatprep.subr.mxu0 %v351
    %2753 = vmatpush1.msra.mxu0 %v350
    %2754 = vmatprep.subr.mxu0 0.0
    %2755 = vmatpush1.msra.mxu0 0.0
    %2756 = vmatprep.subr.mxu0 0.0
    %2757 = vmatpush1.msra.mxu0 0.0
    %2758 = vmatprep.subr.mxu0 0.0
    %2759 = vmatpush1.msra.mxu0 0.0
    %2760 = vmatprep.subr.mxu0 0.0
    %2761 = vmatpush1.msra.mxu0 0.0
    %2762 = vmatprep.subr.mxu0 0.0
    %2763 = vmatpush1.msra.mxu0 0.0
    %2764 = vmatprep.subr.mxu0 0.0
    %2765 = vmatpush1.msra.mxu0 0.0
    %2766 = vmatprep.subr.mxu0 0.0
    %2767 = vmatpush1.msra.mxu0 0.0
    %2768 = vmatprep.subr.mxu0 0.0
    %2769 = vmatpush1.msra.mxu0 0.0
    %2770 = vmatprep.subr.mxu0 0.0
    %2771 = vmatpush1.msra.mxu0 0.0
    %2772 = vmatprep.subr.mxu0 0.0
    %2773 = vmatpush1.msra.mxu0 0.0
    %2774 = vmatprep.subr.mxu0 0.0
    %2775 = vmatpush1.msra.mxu0 0.0
    %2776 = vmatprep.subr.mxu0 0.0
    %2777 = vmatpush1.msra.mxu0 0.0
    %2778 = vmatprep.subr.mxu0 0.0
    %2779 = vmatpush1.msra.mxu0 0.0
    %2780 = vmatprep.subr.mxu0 0.0
    %2781 = vmatpush1.msra.mxu0 0.0
    %2782 = vmatprep.subr.mxu0 0.0
    %2783 = vmatpush1.msra.mxu0 0.0
    %2784 = vmatprep.subr.mxu0 0.0
    %2785 = vmatpush1.msra.mxu0 0.0
    %2786 = vmatprep.mubr.f32.mxu0 0.0
    %2787 = vmatmul.mubr.f32.gmra.mrb[0].mxu0 %v2479
    %v2788 = vpop.f32.mrb[0].mxu0
    %v2789 = vadd.f32 0.0, %v2788
    %v2790 = vpop.f32.mrb[0].mxu0
    %v2791 = vadd.f32 0.0, %v2790
    %2792 = vdwg.mxu0
    %2793 = vmatprep.subr.mxu0 %v225
    %2794 = vmatpush1.msra.mxu0 %v224
    %2795 = vmatprep.subr.mxu0 %v229
    %2796 = vmatpush1.msra.mxu0 %v228
    %2797 = vmatprep.subr.mxu0 %v233
    %2798 = vmatpush1.msra.mxu0 %v232
    %2799 = vmatprep.subr.mxu0 %v237
    %2800 = vmatpush1.msra.mxu0 %v236
    %2801 = vmatprep.subr.mxu0 %v241
    %2802 = vmatpush1.msra.mxu0 %v240
    %2803 = vmatprep.subr.mxu0 %v245
    %2804 = vmatpush1.msra.mxu0 %v244
    %2805 = vmatprep.subr.mxu0 %v249
    %2806 = vmatpush1.msra.mxu0 %v248
    %2807 = vmatprep.subr.mxu0 %v253
    %2808 = vmatpush1.msra.mxu0 %v252
    %2809 = vmatprep.subr.mxu0 %v257
    %2810 = vmatpush1.msra.mxu0 %v256
    %2811 = vmatprep.subr.mxu0 %v261
    %2812 = vmatpush1.msra.mxu0 %v260
    %2813 = vmatprep.subr.mxu0 %v265
    %2814 = vmatpush1.msra.mxu0 %v264
    %2815 = vmatprep.subr.mxu0 %v269
    %2816 = vmatpush1.msra.mxu0 %v268
    %2817 = vmatprep.subr.mxu0 %v273
    %2818 = vmatpush1.msra.mxu0 %v272
    %2819 = vmatprep.subr.mxu0 %v277
    %2820 = vmatpush1.msra.mxu0 %v276
    %2821 = vmatprep.subr.mxu0 %v281
    %2822 = vmatpush1.msra.mxu0 %v280
    %2823 = vmatprep.subr.mxu0 %v285
    %2824 = vmatpush1.msra.mxu0 %v284
    %2825 = vmatprep.subr.mxu0 0.0
    %2826 = vmatpush1.msra.mxu0 0.0
    %2827 = vmatprep.subr.mxu0 0.0
    %2828 = vmatpush1.msra.mxu0 0.0
    %2829 = vmatprep.subr.mxu0 0.0
    %2830 = vmatpush1.msra.mxu0 0.0
    %2831 = vmatprep.subr.mxu0 0.0
    %2832 = vmatpush1.msra.mxu0 0.0
    %2833 = vmatprep.subr.mxu0 0.0
    %2834 = vmatpush1.msra.mxu0 0.0
    %2835 = vmatprep.subr.mxu0 0.0
    %2836 = vmatpush1.msra.mxu0 0.0
    %2837 = vmatprep.subr.mxu0 0.0
    %2838 = vmatpush1.msra.mxu0 0.0
    %2839 = vmatprep.subr.mxu0 0.0
    %2840 = vmatpush1.msra.mxu0 0.0
    %2841 = vmatprep.subr.mxu0 0.0
    %2842 = vmatpush1.msra.mxu0 0.0
    %2843 = vmatprep.subr.mxu0 0.0
    %2844 = vmatpush1.msra.mxu0 0.0
    %2845 = vmatprep.subr.mxu0 0.0
    %2846 = vmatpush1.msra.mxu0 0.0
    %2847 = vmatprep.subr.mxu0 0.0
    %2848 = vmatpush1.msra.mxu0 0.0
    %2849 = vmatprep.subr.mxu0 0.0
    %2850 = vmatpush1.msra.mxu0 0.0
    %2851 = vmatprep.subr.mxu0 0.0
    %2852 = vmatpush1.msra.mxu0 0.0
    %2853 = vmatprep.subr.mxu0 0.0
    %2854 = vmatpush1.msra.mxu0 0.0
    %2855 = vmatprep.subr.mxu0 0.0
    %2856 = vmatpush1.msra.mxu0 0.0
    %2857 = vmatprep.mubr.f32.mxu0 0.0
    %2858 = vmatmul.mubr.f32.gmra.mrb[0].mxu0 %v2167
    %v2859 = vpop.f32.mrb[0].mxu0
    %v2860 = vadd.f32 %v2718, %v2859
    %v2861 = vpop.f32.mrb[0].mxu0
    %v2862 = vadd.f32 %v2720, %v2861
    %2863 = vdwg.mxu0
    %2864 = vmatprep.subr.mxu0 %v227
    %2865 = vmatpush1.msra.mxu0 %v226
    %2866 = vmatprep.subr.mxu0 %v231
    %2867 = vmatpush1.msra.mxu0 %v230
    %2868 = vmatprep.subr.mxu0 %v235
    %2869 = vmatpush1.msra.mxu0 %v234
    %2870 = vmatprep.subr.mxu0 %v239
    %2871 = vmatpush1.msra.mxu0 %v238
    %2872 = vmatprep.subr.mxu0 %v243
    %2873 = vmatpush1.msra.mxu0 %v242
    %2874 = vmatprep.subr.mxu0 %v247
    %2875 = vmatpush1.msra.mxu0 %v246
    %2876 = vmatprep.subr.mxu0 %v251
    %2877 = vmatpush1.msra.mxu0 %v250
    %2878 = vmatprep.subr.mxu0 %v255
    %2879 = vmatpush1.msra.mxu0 %v254
    %2880 = vmatprep.subr.mxu0 %v259
    %2881 = vmatpush1.msra.mxu0 %v258
    %2882 = vmatprep.subr.mxu0 %v263
    %2883 = vmatpush1.msra.mxu0 %v262
    %2884 = vmatprep.subr.mxu0 %v267
    %2885 = vmatpush1.msra.mxu0 %v266
    %2886 = vmatprep.subr.mxu0 %v271
    %2887 = vmatpush1.msra.mxu0 %v270
    %2888 = vmatprep.subr.mxu0 %v275
    %2889 = vmatpush1.msra.mxu0 %v274
    %2890 = vmatprep.subr.mxu0 %v279
    %2891 = vmatpush1.msra.mxu0 %v278
    %2892 = vmatprep.subr.mxu0 %v283
    %2893 = vmatpush1.msra.mxu0 %v282
    %2894 = vmatprep.subr.mxu0 %v287
    %2895 = vmatpush1.msra.mxu0 %v286
    %2896 = vmatprep.subr.mxu0 0.0
    %2897 = vmatpush1.msra.mxu0 0.0
    %2898 = vmatprep.subr.mxu0 0.0
    %2899 = vmatpush1.msra.mxu0 0.0
    %2900 = vmatprep.subr.mxu0 0.0
    %2901 = vmatpush1.msra.mxu0 0.0
    %2902 = vmatprep.subr.mxu0 0.0
    %2903 = vmatpush1.msra.mxu0 0.0
    %2904 = vmatprep.subr.mxu0 0.0
    %2905 = vmatpush1.msra.mxu0 0.0
    %2906 = vmatprep.subr.mxu0 0.0
    %2907 = vmatpush1.msra.mxu0 0.0
    %2908 = vmatprep.subr.mxu0 0.0
    %2909 = vmatpush1.msra.mxu0 0.0
    %2910 = vmatprep.subr.mxu0 0.0
    %2911 = vmatpush1.msra.mxu0 0.0
    %2912 = vmatprep.subr.mxu0 0.0
    %2913 = vmatpush1.msra.mxu0 0.0
    %2914 = vmatprep.subr.mxu0 0.0
    %2915 = vmatpush1.msra.mxu0 0.0
    %2916 = vmatprep.subr.mxu0 0.0
    %2917 = vmatpush1.msra.mxu0 0.0
    %2918 = vmatprep.subr.mxu0 0.0
    %2919 = vmatpush1.msra.mxu0 0.0
    %2920 = vmatprep.subr.mxu0 0.0
    %2921 = vmatpush1.msra.mxu0 0.0
    %2922 = vmatprep.subr.mxu0 0.0
    %2923 = vmatpush1.msra.mxu0 0.0
    %2924 = vmatprep.subr.mxu0 0.0
    %2925 = vmatpush1.msra.mxu0 0.0
    %2926 = vmatprep.subr.mxu0 0.0
    %2927 = vmatpush1.msra.mxu0 0.0
    %2928 = vmatprep.mubr.f32.mxu0 0.0
    %2929 = vmatmul.mubr.f32.gmra.mrb[0].mxu0 %v2167
    %v2930 = vpop.f32.mrb[0].mxu0
    %v2931 = vadd.f32 %v2789, %v2930
    %v2932 = vpop.f32.mrb[0].mxu0
    %v2933 = vadd.f32 %v2791, %v2932
    %2934 = vdwg.mxu0
    %v2935 = vadd.f32 %v2860, %v986
    %v2936 = vadd.f32 %v2862, %v990
    %v2937 = vadd.f32 %v2931, %v994
    %v2938 = vadd.f32 %v2933, %v998
    %v2939 = vxor.u32 %v2935, 2147483648
    %v2940 = vxor.u32 %v2936, 2147483648
    %v2941 = vmul.f32 %v2939, 1.442695
    %v2942 = vpow.pop %v2941
    %v2943 = vmul.f32 %v2940, 1.442695
    %v2944 = vpow.pop %v2943
    %v2945 = vadd.f32 %v2942, 1.0
    %v2946 = vadd.f32 %v2944, 1.0
    %v2947 = vrcp.pop %v2945
    %v2948 = vmul.f32 1.0, %v2947
    %v2949 = vrcp.pop %v2946
    %v2950 = vmul.f32 1.0, %v2949
    %v2951 = vtanh.pop %v2937
    %v2952 = vxor.u32 %v2938, 2147483648
    %v2953 = vmul.f32 %v2952, 1.442695
    %v2954 = vpow.pop %v2953
    %v2955 = vadd.f32 %v2954, 1.0
    %v2956 = vrcp.pop %v2955
    %v2957 = vmul.f32 1.0, %v2956
    %v2958 = vmul.f32 %v2950, %v2477
    %v2959 = vmul.f32 %v2948, %v2951
    %v2960 = vadd.f32 %v2958, %v2959
    %v2961 = vtanh.pop %v2960
    %v2962 = vmul.f32 %v2957, %v2961
    %s2963 = scalar_lea.vmem [#allocation2], 192
    %v2964 = vld [vmem:[%s2963] sm:$0xff]
    %v2965 = vld [vmem:[%s2963 + $0x8] sm:$0xff]
    %v2966 = vld [vmem:[%s2963 + $0x10] sm:$0xff]
    %v2967 = vld [vmem:[%s2963 + $0x18] sm:$0xff]
    %2968 = vmatprep.subr.mxu0 %v161
    %2969 = vmatpush1.msra.mxu0 %v160
    %2970 = vmatprep.subr.mxu0 %v165
    %2971 = vmatpush1.msra.mxu0 %v164
    %2972 = vmatprep.subr.mxu0 %v169
    %2973 = vmatpush1.msra.mxu0 %v168
    %2974 = vmatprep.subr.mxu0 %v173
    %2975 = vmatpush1.msra.mxu0 %v172
    %2976 = vmatprep.subr.mxu0 %v177
    %2977 = vmatpush1.msra.mxu0 %v176
    %2978 = vmatprep.subr.mxu0 %v181
    %2979 = vmatpush1.msra.mxu0 %v180
    %2980 = vmatprep.subr.mxu0 %v185
    %2981 = vmatpush1.msra.mxu0 %v184
    %2982 = vmatprep.subr.mxu0 %v189
    %2983 = vmatpush1.msra.mxu0 %v188
    %2984 = vmatprep.subr.mxu0 %v193
    %2985 = vmatpush1.msra.mxu0 %v192
    %2986 = vmatprep.subr.mxu0 %v197
    %2987 = vmatpush1.msra.mxu0 %v196
    %2988 = vmatprep.subr.mxu0 %v201
    %2989 = vmatpush1.msra.mxu0 %v200
    %2990 = vmatprep.subr.mxu0 %v205
    %2991 = vmatpush1.msra.mxu0 %v204
    %2992 = vmatprep.subr.mxu0 %v209
    %2993 = vmatpush1.msra.mxu0 %v208
    %2994 = vmatprep.subr.mxu0 %v213
    %2995 = vmatpush1.msra.mxu0 %v212
    %2996 = vmatprep.subr.mxu0 %v217
    %2997 = vmatpush1.msra.mxu0 %v216
    %2998 = vmatprep.subr.mxu0 %v221
    %2999 = vmatpush1.msra.mxu0 %v220
    %3000 = vmatprep.subr.mxu0 0.0
    %3001 = vmatpush1.msra.mxu0 0.0
    %3002 = vmatprep.subr.mxu0 0.0
    %3003 = vmatpush1.msra.mxu0 0.0
    %3004 = vmatprep.subr.mxu0 0.0
    %3005 = vmatpush1.msra.mxu0 0.0
    %3006 = vmatprep.subr.mxu0 0.0
    %3007 = vmatpush1.msra.mxu0 0.0
    %3008 = vmatprep.subr.mxu0 0.0
    %3009 = vmatpush1.msra.mxu0 0.0
    %3010 = vmatprep.subr.mxu0 0.0
    %3011 = vmatpush1.msra.mxu0 0.0
    %3012 = vmatprep.subr.mxu0 0.0
    %3013 = vmatpush1.msra.mxu0 0.0
    %3014 = vmatprep.subr.mxu0 0.0
    %3015 = vmatpush1.msra.mxu0 0.0
    %3016 = vmatprep.subr.mxu0 0.0
    %3017 = vmatpush1.msra.mxu0 0.0
    %3018 = vmatprep.subr.mxu0 0.0
    %3019 = vmatpush1.msra.mxu0 0.0
    %3020 = vmatprep.subr.mxu0 0.0
    %3021 = vmatpush1.msra.mxu0 0.0
    %3022 = vmatprep.subr.mxu0 0.0
    %3023 = vmatpush1.msra.mxu0 0.0
    %3024 = vmatprep.subr.mxu0 0.0
    %3025 = vmatpush1.msra.mxu0 0.0
    %3026 = vmatprep.subr.mxu0 0.0
    %3027 = vmatpush1.msra.mxu0 0.0
    %3028 = vmatprep.subr.mxu0 0.0
    %3029 = vmatpush1.msra.mxu0 0.0
    %3030 = vmatprep.subr.mxu0 0.0
    %3031 = vmatpush1.msra.mxu0 0.0
    %3032 = vmatprep.mubr.f32.mxu0 0.0
    %3033 = vmatmul.mubr.f32.gmra.mrb[0].mxu0 %v2650
    %v3034 = vpop.f32.mrb[0].mxu0
    %v3035 = vadd.f32 %v2964, %v3034
    %v3036 = vpop.f32.mrb[0].mxu0
    %v3037 = vadd.f32 %v2965, %v3036
    %3038 = vdwg.mxu0
    %3039 = vmatprep.subr.mxu0 %v163
    %3040 = vmatpush1.msra.mxu0 %v162
    %3041 = vmatprep.subr.mxu0 %v167
    %3042 = vmatpush1.msra.mxu0 %v166
    %3043 = vmatprep.subr.mxu0 %v171
    %3044 = vmatpush1.msra.mxu0 %v170
    %3045 = vmatprep.subr.mxu0 %v175
    %3046 = vmatpush1.msra.mxu0 %v174
    %3047 = vmatprep.subr.mxu0 %v179
    %3048 = vmatpush1.msra.mxu0 %v178
    %3049 = vmatprep.subr.mxu0 %v183
    %3050 = vmatpush1.msra.mxu0 %v182
    %3051 = vmatprep.subr.mxu0 %v187
    %3052 = vmatpush1.msra.mxu0 %v186
    %3053 = vmatprep.subr.mxu0 %v191
    %3054 = vmatpush1.msra.mxu0 %v190
    %3055 = vmatprep.subr.mxu0 %v195
    %3056 = vmatpush1.msra.mxu0 %v194
    %3057 = vmatprep.subr.mxu0 %v199
    %3058 = vmatpush1.msra.mxu0 %v198
    %3059 = vmatprep.subr.mxu0 %v203
    %3060 = vmatpush1.msra.mxu0 %v202
    %3061 = vmatprep.subr.mxu0 %v207
    %3062 = vmatpush1.msra.mxu0 %v206
    %3063 = vmatprep.subr.mxu0 %v211
    %3064 = vmatpush1.msra.mxu0 %v210
    %3065 = vmatprep.subr.mxu0 %v215
    %3066 = vmatpush1.msra.mxu0 %v214
    %3067 = vmatprep.subr.mxu0 %v219
    %3068 = vmatpush1.msra.mxu0 %v218
    %3069 = vmatprep.subr.mxu0 %v223
    %3070 = vmatpush1.msra.mxu0 %v222
    %3071 = vmatprep.subr.mxu0 0.0
    %3072 = vmatpush1.msra.mxu0 0.0
    %3073 = vmatprep.subr.mxu0 0.0
    %3074 = vmatpush1.msra.mxu0 0.0
    %3075 = vmatprep.subr.mxu0 0.0
    %3076 = vmatpush1.msra.mxu0 0.0
    %3077 = vmatprep.subr.mxu0 0.0
    %3078 = vmatpush1.msra.mxu0 0.0
    %3079 = vmatprep.subr.mxu0 0.0
    %3080 = vmatpush1.msra.mxu0 0.0
    %3081 = vmatprep.subr.mxu0 0.0
    %3082 = vmatpush1.msra.mxu0 0.0
    %3083 = vmatprep.subr.mxu0 0.0
    %3084 = vmatpush1.msra.mxu0 0.0
    %3085 = vmatprep.subr.mxu0 0.0
    %3086 = vmatpush1.msra.mxu0 0.0
    %3087 = vmatprep.subr.mxu0 0.0
    %3088 = vmatpush1.msra.mxu0 0.0
    %3089 = vmatprep.subr.mxu0 0.0
    %3090 = vmatpush1.msra.mxu0 0.0
    %3091 = vmatprep.subr.mxu0 0.0
    %3092 = vmatpush1.msra.mxu0 0.0
    %3093 = vmatprep.subr.mxu0 0.0
    %3094 = vmatpush1.msra.mxu0 0.0
    %3095 = vmatprep.subr.mxu0 0.0
    %3096 = vmatpush1.msra.mxu0 0.0
    %3097 = vmatprep.subr.mxu0 0.0
    %3098 = vmatpush1.msra.mxu0 0.0
    %3099 = vmatprep.subr.mxu0 0.0
    %3100 = vmatpush1.msra.mxu0 0.0
    %3101 = vmatprep.subr.mxu0 0.0
    %3102 = vmatpush1.msra.mxu0 0.0
    %3103 = vmatprep.mubr.f32.mxu0 0.0
    %3104 = vmatmul.mubr.f32.gmra.mrb[0].mxu0 %v2650
    %v3105 = vpop.f32.mrb[0].mxu0
    %v3106 = vadd.f32 %v2966, %v3105
    %v3107 = vpop.f32.mrb[0].mxu0
    %v3108 = vadd.f32 %v2967, %v3107
    %3109 = vdwg.mxu0
    %v3110 = vxor.u32 %v3035, 2147483648
    %v3111 = vxor.u32 %v3037, 2147483648
    %v3112 = vmul.f32 %v3110, 1.442695
    %v3113 = vpow.pop %v3112
    %v3114 = vmul.f32 %v3111, 1.442695
    %v3115 = vpow.pop %v3114
    %v3116 = vadd.f32 %v3113, 1.0
    %v3117 = vadd.f32 %v3115, 1.0
    %v3118 = vrcp.pop %v3116
    %v3119 = vmul.f32 1.0, %v3118
    %v3120 = vrcp.pop %v3117
    %v3121 = vmul.f32 1.0, %v3120
    %v3122 = vtanh.pop %v3106
    %v3123 = vxor.u32 %v3108, 2147483648
    %v3124 = vmul.f32 %v3123, 1.442695
    %v3125 = vpow.pop %v3124
    %v3126 = vadd.f32 %v3125, 1.0
    %v3127 = vrcp.pop %v3126
    %v3128 = vmul.f32 1.0, %v3127
    %v3129 = vmul.f32 %v3121, %v2648
    %v3130 = vmul.f32 %v3119, %v3122
    %v3131 = vadd.f32 %v3129, %v3130
    %v3132 = vtanh.pop %v3131
    %v3133 = vmul.f32 %v3128, %v3132
    %3134 = vmatprep.subr.mxu0 %v289
    %3135 = vmatpush1.msra.mxu0 %v288
    %3136 = vmatprep.subr.mxu0 %v293
    %3137 = vmatpush1.msra.mxu0 %v292
    %3138 = vmatprep.subr.mxu0 %v297
    %3139 = vmatpush1.msra.mxu0 %v296
    %3140 = vmatprep.subr.mxu0 %v301
    %3141 = vmatpush1.msra.mxu0 %v300
    %3142 = vmatprep.subr.mxu0 %v305
    %3143 = vmatpush1.msra.mxu0 %v304
    %3144 = vmatprep.subr.mxu0 %v309
    %3145 = vmatpush1.msra.mxu0 %v308
    %3146 = vmatprep.subr.mxu0 %v313
    %3147 = vmatpush1.msra.mxu0 %v312
    %3148 = vmatprep.subr.mxu0 %v317
    %3149 = vmatpush1.msra.mxu0 %v316
    %3150 = vmatprep.subr.mxu0 %v321
    %3151 = vmatpush1.msra.mxu0 %v320
    %3152 = vmatprep.subr.mxu0 %v325
    %3153 = vmatpush1.msra.mxu0 %v324
    %3154 = vmatprep.subr.mxu0 %v329
    %3155 = vmatpush1.msra.mxu0 %v328
    %3156 = vmatprep.subr.mxu0 %v333
    %3157 = vmatpush1.msra.mxu0 %v332
    %3158 = vmatprep.subr.mxu0 %v337
    %3159 = vmatpush1.msra.mxu0 %v336
    %3160 = vmatprep.subr.mxu0 %v341
    %3161 = vmatpush1.msra.mxu0 %v340
    %3162 = vmatprep.subr.mxu0 %v345
    %3163 = vmatpush1.msra.mxu0 %v344
    %3164 = vmatprep.subr.mxu0 %v349
    %3165 = vmatpush1.msra.mxu0 %v348
    %3166 = vmatprep.subr.mxu0 0.0
    %3167 = vmatpush1.msra.mxu0 0.0
    %3168 = vmatprep.subr.mxu0 0.0
    %3169 = vmatpush1.msra.mxu0 0.0
    %3170 = vmatprep.subr.mxu0 0.0
    %3171 = vmatpush1.msra.mxu0 0.0
    %3172 = vmatprep.subr.mxu0 0.0
    %3173 = vmatpush1.msra.mxu0 0.0
    %3174 = vmatprep.subr.mxu0 0.0
    %3175 = vmatpush1.msra.mxu0 0.0
    %3176 = vmatprep.subr.mxu0 0.0
    %3177 = vmatpush1.msra.mxu0 0.0
    %3178 = vmatprep.subr.mxu0 0.0
    %3179 = vmatpush1.msra.mxu0 0.0
    %3180 = vmatprep.subr.mxu0 0.0
    %3181 = vmatpush1.msra.mxu0 0.0
    %3182 = vmatprep.subr.mxu0 0.0
    %3183 = vmatpush1.msra.mxu0 0.0
    %3184 = vmatprep.subr.mxu0 0.0
    %3185 = vmatpush1.msra.mxu0 0.0
    %3186 = vmatprep.subr.mxu0 0.0
    %3187 = vmatpush1.msra.mxu0 0.0
    %3188 = vmatprep.subr.mxu0 0.0
    %3189 = vmatpush1.msra.mxu0 0.0
    %3190 = vmatprep.subr.mxu0 0.0
    %3191 = vmatpush1.msra.mxu0 0.0
    %3192 = vmatprep.subr.mxu0 0.0
    %3193 = vmatpush1.msra.mxu0 0.0
    %3194 = vmatprep.subr.mxu0 0.0
    %3195 = vmatpush1.msra.mxu0 0.0
    %3196 = vmatprep.subr.mxu0 0.0
    %3197 = vmatpush1.msra.mxu0 0.0
    %3198 = vmatprep.mubr.f32.mxu0 0.0
    %3199 = vmatmul.mubr.f32.gmra.mrb[0].mxu0 %v2962
    %v3200 = vpop.f32.mrb[0].mxu0
    %v3201 = vadd.f32 0.0, %v3200
    %v3202 = vpop.f32.mrb[0].mxu0
    %v3203 = vadd.f32 0.0, %v3202
    %3204 = vdwg.mxu0
    %3205 = vmatprep.subr.mxu0 %v291
    %3206 = vmatpush1.msra.mxu0 %v290
    %3207 = vmatprep.subr.mxu0 %v295
    %3208 = vmatpush1.msra.mxu0 %v294
    %3209 = vmatprep.subr.mxu0 %v299
    %3210 = vmatpush1.msra.mxu0 %v298
    %3211 = vmatprep.subr.mxu0 %v303
    %3212 = vmatpush1.msra.mxu0 %v302
    %3213 = vmatprep.subr.mxu0 %v307
    %3214 = vmatpush1.msra.mxu0 %v306
    %3215 = vmatprep.subr.mxu0 %v311
    %3216 = vmatpush1.msra.mxu0 %v310
    %3217 = vmatprep.subr.mxu0 %v315
    %3218 = vmatpush1.msra.mxu0 %v314
    %3219 = vmatprep.subr.mxu0 %v319
    %3220 = vmatpush1.msra.mxu0 %v318
    %3221 = vmatprep.subr.mxu0 %v323
    %3222 = vmatpush1.msra.mxu0 %v322
    %3223 = vmatprep.subr.mxu0 %v327
    %3224 = vmatpush1.msra.mxu0 %v326
    %3225 = vmatprep.subr.mxu0 %v331
    %3226 = vmatpush1.msra.mxu0 %v330
    %3227 = vmatprep.subr.mxu0 %v335
    %3228 = vmatpush1.msra.mxu0 %v334
    %3229 = vmatprep.subr.mxu0 %v339
    %3230 = vmatpush1.msra.mxu0 %v338
    %3231 = vmatprep.subr.mxu0 %v343
    %3232 = vmatpush1.msra.mxu0 %v342
    %3233 = vmatprep.subr.mxu0 %v347
    %3234 = vmatpush1.msra.mxu0 %v346
    %3235 = vmatprep.subr.mxu0 %v351
    %3236 = vmatpush1.msra.mxu0 %v350
    %3237 = vmatprep.subr.mxu0 0.0
    %3238 = vmatpush1.msra.mxu0 0.0
    %3239 = vmatprep.subr.mxu0 0.0
    %3240 = vmatpush1.msra.mxu0 0.0
    %3241 = vmatprep.subr.mxu0 0.0
    %3242 = vmatpush1.msra.mxu0 0.0
    %3243 = vmatprep.subr.mxu0 0.0
    %3244 = vmatpush1.msra.mxu0 0.0
    %3245 = vmatprep.subr.mxu0 0.0
    %3246 = vmatpush1.msra.mxu0 0.0
    %3247 = vmatprep.subr.mxu0 0.0
    %3248 = vmatpush1.msra.mxu0 0.0
    %3249 = vmatprep.subr.mxu0 0.0
    %3250 = vmatpush1.msra.mxu0 0.0
    %3251 = vmatprep.subr.mxu0 0.0
    %3252 = vmatpush1.msra.mxu0 0.0
    %3253 = vmatprep.subr.mxu0 0.0
    %3254 = vmatpush1.msra.mxu0 0.0
    %3255 = vmatprep.subr.mxu0 0.0
    %3256 = vmatpush1.msra.mxu0 0.0
    %3257 = vmatprep.subr.mxu0 0.0
    %3258 = vmatpush1.msra.mxu0 0.0
    %3259 = vmatprep.subr.mxu0 0.0
    %3260 = vmatpush1.msra.mxu0 0.0
    %3261 = vmatprep.subr.mxu0 0.0
    %3262 = vmatpush1.msra.mxu0 0.0
    %3263 = vmatprep.subr.mxu0 0.0
    %3264 = vmatpush1.msra.mxu0 0.0
    %3265 = vmatprep.subr.mxu0 0.0
    %3266 = vmatpush1.msra.mxu0 0.0
    %3267 = vmatprep.subr.mxu0 0.0
    %3268 = vmatpush1.msra.mxu0 0.0
    %3269 = vmatprep.mubr.f32.mxu0 0.0
    %3270 = vmatmul.mubr.f32.gmra.mrb[0].mxu0 %v2962
    %v3271 = vpop.f32.mrb[0].mxu0
    %v3272 = vadd.f32 0.0, %v3271
    %v3273 = vpop.f32.mrb[0].mxu0
    %v3274 = vadd.f32 0.0, %v3273
    %3275 = vdwg.mxu0
    %3276 = vmatprep.subr.mxu0 %v225
    %3277 = vmatpush1.msra.mxu0 %v224
    %3278 = vmatprep.subr.mxu0 %v229
    %3279 = vmatpush1.msra.mxu0 %v228
    %3280 = vmatprep.subr.mxu0 %v233
    %3281 = vmatpush1.msra.mxu0 %v232
    %3282 = vmatprep.subr.mxu0 %v237
    %3283 = vmatpush1.msra.mxu0 %v236
    %3284 = vmatprep.subr.mxu0 %v241
    %3285 = vmatpush1.msra.mxu0 %v240
    %3286 = vmatprep.subr.mxu0 %v245
    %3287 = vmatpush1.msra.mxu0 %v244
    %3288 = vmatprep.subr.mxu0 %v249
    %3289 = vmatpush1.msra.mxu0 %v248
    %3290 = vmatprep.subr.mxu0 %v253
    %3291 = vmatpush1.msra.mxu0 %v252
    %3292 = vmatprep.subr.mxu0 %v257
    %3293 = vmatpush1.msra.mxu0 %v256
    %3294 = vmatprep.subr.mxu0 %v261
    %3295 = vmatpush1.msra.mxu0 %v260
    %3296 = vmatprep.subr.mxu0 %v265
    %3297 = vmatpush1.msra.mxu0 %v264
    %3298 = vmatprep.subr.mxu0 %v269
    %3299 = vmatpush1.msra.mxu0 %v268
    %3300 = vmatprep.subr.mxu0 %v273
    %3301 = vmatpush1.msra.mxu0 %v272
    %3302 = vmatprep.subr.mxu0 %v277
    %3303 = vmatpush1.msra.mxu0 %v276
    %3304 = vmatprep.subr.mxu0 %v281
    %3305 = vmatpush1.msra.mxu0 %v280
    %3306 = vmatprep.subr.mxu0 %v285
    %3307 = vmatpush1.msra.mxu0 %v284
    %3308 = vmatprep.subr.mxu0 0.0
    %3309 = vmatpush1.msra.mxu0 0.0
    %3310 = vmatprep.subr.mxu0 0.0
    %3311 = vmatpush1.msra.mxu0 0.0
    %3312 = vmatprep.subr.mxu0 0.0
    %3313 = vmatpush1.msra.mxu0 0.0
    %3314 = vmatprep.subr.mxu0 0.0
    %3315 = vmatpush1.msra.mxu0 0.0
    %3316 = vmatprep.subr.mxu0 0.0
    %3317 = vmatpush1.msra.mxu0 0.0
    %3318 = vmatprep.subr.mxu0 0.0
    %3319 = vmatpush1.msra.mxu0 0.0
    %3320 = vmatprep.subr.mxu0 0.0
    %3321 = vmatpush1.msra.mxu0 0.0
    %3322 = vmatprep.subr.mxu0 0.0
    %3323 = vmatpush1.msra.mxu0 0.0
    %3324 = vmatprep.subr.mxu0 0.0
    %3325 = vmatpush1.msra.mxu0 0.0
    %3326 = vmatprep.subr.mxu0 0.0
    %3327 = vmatpush1.msra.mxu0 0.0
    %3328 = vmatprep.subr.mxu0 0.0
    %3329 = vmatpush1.msra.mxu0 0.0
    %3330 = vmatprep.subr.mxu0 0.0
    %3331 = vmatpush1.msra.mxu0 0.0
    %3332 = vmatprep.subr.mxu0 0.0
    %3333 = vmatpush1.msra.mxu0 0.0
    %3334 = vmatprep.subr.mxu0 0.0
    %3335 = vmatpush1.msra.mxu0 0.0
    %3336 = vmatprep.subr.mxu0 0.0
    %3337 = vmatpush1.msra.mxu0 0.0
    %3338 = vmatprep.subr.mxu0 0.0
    %3339 = vmatpush1.msra.mxu0 0.0
    %3340 = vmatprep.mubr.f32.mxu0 0.0
    %3341 = vmatmul.mubr.f32.gmra.mrb[0].mxu0 %v2650
    %v3342 = vpop.f32.mrb[0].mxu0
    %v3343 = vadd.f32 %v3201, %v3342
    %v3344 = vpop.f32.mrb[0].mxu0
    %v3345 = vadd.f32 %v3203, %v3344
    %3346 = vdwg.mxu0
    %3347 = vmatprep.subr.mxu0 %v227
    %3348 = vmatpush1.msra.mxu0 %v226
    %3349 = vmatprep.subr.mxu0 %v231
    %3350 = vmatpush1.msra.mxu0 %v230
    %3351 = vmatprep.subr.mxu0 %v235
    %3352 = vmatpush1.msra.mxu0 %v234
    %3353 = vmatprep.subr.mxu0 %v239
    %3354 = vmatpush1.msra.mxu0 %v238
    %3355 = vmatprep.subr.mxu0 %v243
    %3356 = vmatpush1.msra.mxu0 %v242
    %3357 = vmatprep.subr.mxu0 %v247
    %3358 = vmatpush1.msra.mxu0 %v246
    %3359 = vmatprep.subr.mxu0 %v251
    %3360 = vmatpush1.msra.mxu0 %v250
    %3361 = vmatprep.subr.mxu0 %v255
    %3362 = vmatpush1.msra.mxu0 %v254
    %3363 = vmatprep.subr.mxu0 %v259
    %3364 = vmatpush1.msra.mxu0 %v258
    %3365 = vmatprep.subr.mxu0 %v263
    %3366 = vmatpush1.msra.mxu0 %v262
    %3367 = vmatprep.subr.mxu0 %v267
    %3368 = vmatpush1.msra.mxu0 %v266
    %3369 = vmatprep.subr.mxu0 %v271
    %3370 = vmatpush1.msra.mxu0 %v270
    %3371 = vmatprep.subr.mxu0 %v275
    %3372 = vmatpush1.msra.mxu0 %v274
    %3373 = vmatprep.subr.mxu0 %v279
    %3374 = vmatpush1.msra.mxu0 %v278
    %3375 = vmatprep.subr.mxu0 %v283
    %3376 = vmatpush1.msra.mxu0 %v282
    %3377 = vmatprep.subr.mxu0 %v287
    %3378 = vmatpush1.msra.mxu0 %v286
    %3379 = vmatprep.subr.mxu0 0.0
    %3380 = vmatpush1.msra.mxu0 0.0
    %3381 = vmatprep.subr.mxu0 0.0
    %3382 = vmatpush1.msra.mxu0 0.0
    %3383 = vmatprep.subr.mxu0 0.0
    %3384 = vmatpush1.msra.mxu0 0.0
    %3385 = vmatprep.subr.mxu0 0.0
    %3386 = vmatpush1.msra.mxu0 0.0
    %3387 = vmatprep.subr.mxu0 0.0
    %3388 = vmatpush1.msra.mxu0 0.0
    %3389 = vmatprep.subr.mxu0 0.0
    %3390 = vmatpush1.msra.mxu0 0.0
    %3391 = vmatprep.subr.mxu0 0.0
    %3392 = vmatpush1.msra.mxu0 0.0
    %3393 = vmatprep.subr.mxu0 0.0
    %3394 = vmatpush1.msra.mxu0 0.0
    %3395 = vmatprep.subr.mxu0 0.0
    %3396 = vmatpush1.msra.mxu0 0.0
    %3397 = vmatprep.subr.mxu0 0.0
    %3398 = vmatpush1.msra.mxu0 0.0
    %3399 = vmatprep.subr.mxu0 0.0
    %3400 = vmatpush1.msra.mxu0 0.0
    %3401 = vmatprep.subr.mxu0 0.0
    %3402 = vmatpush1.msra.mxu0 0.0
    %3403 = vmatprep.subr.mxu0 0.0
    %3404 = vmatpush1.msra.mxu0 0.0
    %3405 = vmatprep.subr.mxu0 0.0
    %3406 = vmatpush1.msra.mxu0 0.0
    %3407 = vmatprep.subr.mxu0 0.0
    %3408 = vmatpush1.msra.mxu0 0.0
    %3409 = vmatprep.subr.mxu0 0.0
    %3410 = vmatpush1.msra.mxu0 0.0
    %3411 = vmatprep.mubr.f32.mxu0 0.0
    %3412 = vmatmul.mubr.f32.gmra.mrb[0].mxu0 %v2650
    %v3413 = vpop.f32.mrb[0].mxu0
    %v3414 = vadd.f32 %v3272, %v3413
    %v3415 = vpop.f32.mrb[0].mxu0
    %v3416 = vadd.f32 %v3274, %v3415
    %3417 = vdwg.mxu0
    %v3418 = vadd.f32 %v3343, %v986
    %v3419 = vadd.f32 %v3345, %v990
    %v3420 = vadd.f32 %v3414, %v994
    %v3421 = vadd.f32 %v3416, %v998
    %v3422 = vxor.u32 %v3418, 2147483648
    %v3423 = vxor.u32 %v3419, 2147483648
    %v3424 = vmul.f32 %v3422, 1.442695
    %v3425 = vpow.pop %v3424
    %v3426 = vmul.f32 %v3423, 1.442695
    %v3427 = vpow.pop %v3426
    %v3428 = vadd.f32 %v3425, 1.0
    %v3429 = vadd.f32 %v3427, 1.0
    %v3430 = vrcp.pop %v3428
    %v3431 = vmul.f32 1.0, %v3430
    %v3432 = vrcp.pop %v3429
    %v3433 = vmul.f32 1.0, %v3432
    %v3434 = vtanh.pop %v3420
    %v3435 = vxor.u32 %v3421, 2147483648
    %v3436 = vmul.f32 %v3435, 1.442695
    %v3437 = vpow.pop %v3436
    %v3438 = vadd.f32 %v3437, 1.0
    %v3439 = vrcp.pop %v3438
    %v3440 = vmul.f32 1.0, %v3439
    %v3441 = vmul.f32 %v3433, %v2960
    %v3442 = vmul.f32 %v3431, %v3434
    %v3443 = vadd.f32 %v3441, %v3442
    %v3444 = vtanh.pop %v3443
    %v3445 = vmul.f32 %v3440, %v3444
    %s3446 = scalar_lea.vmem [#allocation2], 224
    %v3447 = vld [vmem:[%s3446] sm:$0xff]
    %v3448 = vld [vmem:[%s3446 + $0x8] sm:$0xff]
    %v3449 = vld [vmem:[%s3446 + $0x10] sm:$0xff]
    %v3450 = vld [vmem:[%s3446 + $0x18] sm:$0xff]
    %3451 = vmatprep.subr.mxu0 %v161
    %3452 = vmatpush1.msra.mxu0 %v160
    %3453 = vmatprep.subr.mxu0 %v165
    %3454 = vmatpush1.msra.mxu0 %v164
    %3455 = vmatprep.subr.mxu0 %v169
    %3456 = vmatpush1.msra.mxu0 %v168
    %3457 = vmatprep.subr.mxu0 %v173
    %3458 = vmatpush1.msra.mxu0 %v172
    %3459 = vmatprep.subr.mxu0 %v177
    %3460 = vmatpush1.msra.mxu0 %v176
    %3461 = vmatprep.subr.mxu0 %v181
    %3462 = vmatpush1.msra.mxu0 %v180
    %3463 = vmatprep.subr.mxu0 %v185
    %3464 = vmatpush1.msra.mxu0 %v184
    %3465 = vmatprep.subr.mxu0 %v189
    %3466 = vmatpush1.msra.mxu0 %v188
    %3467 = vmatprep.subr.mxu0 %v193
    %3468 = vmatpush1.msra.mxu0 %v192
    %3469 = vmatprep.subr.mxu0 %v197
    %3470 = vmatpush1.msra.mxu0 %v196
    %3471 = vmatprep.subr.mxu0 %v201
    %3472 = vmatpush1.msra.mxu0 %v200
    %3473 = vmatprep.subr.mxu0 %v205
    %3474 = vmatpush1.msra.mxu0 %v204
    %3475 = vmatprep.subr.mxu0 %v209
    %3476 = vmatpush1.msra.mxu0 %v208
    %3477 = vmatprep.subr.mxu0 %v213
    %3478 = vmatpush1.msra.mxu0 %v212
    %3479 = vmatprep.subr.mxu0 %v217
    %3480 = vmatpush1.msra.mxu0 %v216
    %3481 = vmatprep.subr.mxu0 %v221
    %3482 = vmatpush1.msra.mxu0 %v220
    %3483 = vmatprep.subr.mxu0 0.0
    %3484 = vmatpush1.msra.mxu0 0.0
    %3485 = vmatprep.subr.mxu0 0.0
    %3486 = vmatpush1.msra.mxu0 0.0
    %3487 = vmatprep.subr.mxu0 0.0
    %3488 = vmatpush1.msra.mxu0 0.0
    %3489 = vmatprep.subr.mxu0 0.0
    %3490 = vmatpush1.msra.mxu0 0.0
    %3491 = vmatprep.subr.mxu0 0.0
    %3492 = vmatpush1.msra.mxu0 0.0
    %3493 = vmatprep.subr.mxu0 0.0
    %3494 = vmatpush1.msra.mxu0 0.0
    %3495 = vmatprep.subr.mxu0 0.0
    %3496 = vmatpush1.msra.mxu0 0.0
    %3497 = vmatprep.subr.mxu0 0.0
    %3498 = vmatpush1.msra.mxu0 0.0
    %3499 = vmatprep.subr.mxu0 0.0
    %3500 = vmatpush1.msra.mxu0 0.0
    %3501 = vmatprep.subr.mxu0 0.0
    %3502 = vmatpush1.msra.mxu0 0.0
    %3503 = vmatprep.subr.mxu0 0.0
    %3504 = vmatpush1.msra.mxu0 0.0
    %3505 = vmatprep.subr.mxu0 0.0
    %3506 = vmatpush1.msra.mxu0 0.0
    %3507 = vmatprep.subr.mxu0 0.0
    %3508 = vmatpush1.msra.mxu0 0.0
    %3509 = vmatprep.subr.mxu0 0.0
    %3510 = vmatpush1.msra.mxu0 0.0
    %3511 = vmatprep.subr.mxu0 0.0
    %3512 = vmatpush1.msra.mxu0 0.0
    %3513 = vmatprep.subr.mxu0 0.0
    %3514 = vmatpush1.msra.mxu0 0.0
    %3515 = vmatprep.mubr.f32.mxu0 0.0
    %3516 = vmatmul.mubr.f32.gmra.mrb[0].mxu0 %v3133
    %v3517 = vpop.f32.mrb[0].mxu0
    %v3518 = vadd.f32 %v3447, %v3517
    %v3519 = vpop.f32.mrb[0].mxu0
    %v3520 = vadd.f32 %v3448, %v3519
    %3521 = vdwg.mxu0
    %3522 = vmatprep.subr.mxu0 %v163
    %3523 = vmatpush1.msra.mxu0 %v162
    %3524 = vmatprep.subr.mxu0 %v167
    %3525 = vmatpush1.msra.mxu0 %v166
    %3526 = vmatprep.subr.mxu0 %v171
    %3527 = vmatpush1.msra.mxu0 %v170
    %3528 = vmatprep.subr.mxu0 %v175
    %3529 = vmatpush1.msra.mxu0 %v174
    %3530 = vmatprep.subr.mxu0 %v179
    %3531 = vmatpush1.msra.mxu0 %v178
    %3532 = vmatprep.subr.mxu0 %v183
    %3533 = vmatpush1.msra.mxu0 %v182
    %3534 = vmatprep.subr.mxu0 %v187
    %3535 = vmatpush1.msra.mxu0 %v186
    %3536 = vmatprep.subr.mxu0 %v191
    %3537 = vmatpush1.msra.mxu0 %v190
    %3538 = vmatprep.subr.mxu0 %v195
    %3539 = vmatpush1.msra.mxu0 %v194
    %3540 = vmatprep.subr.mxu0 %v199
    %3541 = vmatpush1.msra.mxu0 %v198
    %3542 = vmatprep.subr.mxu0 %v203
    %3543 = vmatpush1.msra.mxu0 %v202
    %3544 = vmatprep.subr.mxu0 %v207
    %3545 = vmatpush1.msra.mxu0 %v206
    %3546 = vmatprep.subr.mxu0 %v211
    %3547 = vmatpush1.msra.mxu0 %v210
    %3548 = vmatprep.subr.mxu0 %v215
    %3549 = vmatpush1.msra.mxu0 %v214
    %3550 = vmatprep.subr.mxu0 %v219
    %3551 = vmatpush1.msra.mxu0 %v218
    %3552 = vmatprep.subr.mxu0 %v223
    %3553 = vmatpush1.msra.mxu0 %v222
    %3554 = vmatprep.subr.mxu0 0.0
    %3555 = vmatpush1.msra.mxu0 0.0
    %3556 = vmatprep.subr.mxu0 0.0
    %3557 = vmatpush1.msra.mxu0 0.0
    %3558 = vmatprep.subr.mxu0 0.0
    %3559 = vmatpush1.msra.mxu0 0.0
    %3560 = vmatprep.subr.mxu0 0.0
    %3561 = vmatpush1.msra.mxu0 0.0
    %3562 = vmatprep.subr.mxu0 0.0
    %3563 = vmatpush1.msra.mxu0 0.0
    %3564 = vmatprep.subr.mxu0 0.0
    %3565 = vmatpush1.msra.mxu0 0.0
    %3566 = vmatprep.subr.mxu0 0.0
    %3567 = vmatpush1.msra.mxu0 0.0
    %3568 = vmatprep.subr.mxu0 0.0
    %3569 = vmatpush1.msra.mxu0 0.0
    %3570 = vmatprep.subr.mxu0 0.0
    %3571 = vmatpush1.msra.mxu0 0.0
    %3572 = vmatprep.subr.mxu0 0.0
    %3573 = vmatpush1.msra.mxu0 0.0
    %3574 = vmatprep.subr.mxu0 0.0
    %3575 = vmatpush1.msra.mxu0 0.0
    %3576 = vmatprep.subr.mxu0 0.0
    %3577 = vmatpush1.msra.mxu0 0.0
    %3578 = vmatprep.subr.mxu0 0.0
    %3579 = vmatpush1.msra.mxu0 0.0
    %3580 = vmatprep.subr.mxu0 0.0
    %3581 = vmatpush1.msra.mxu0 0.0
    %3582 = vmatprep.subr.mxu0 0.0
    %3583 = vmatpush1.msra.mxu0 0.0
    %3584 = vmatprep.subr.mxu0 0.0
    %3585 = vmatpush1.msra.mxu0 0.0
    %3586 = vmatprep.mubr.f32.mxu0 0.0
    %3587 = vmatmul.mubr.f32.gmra.mrb[0].mxu0 %v3133
    %v3588 = vpop.f32.mrb[0].mxu0
    %v3589 = vadd.f32 %v3449, %v3588
    %v3590 = vpop.f32.mrb[0].mxu0
    %v3591 = vadd.f32 %v3450, %v3590
    %3592 = vdwg.mxu0
    %v3593 = vxor.u32 %v3518, 2147483648
    %v3594 = vxor.u32 %v3520, 2147483648
    %v3595 = vmul.f32 %v3593, 1.442695
    %v3596 = vpow.pop %v3595
    %v3597 = vmul.f32 %v3594, 1.442695
    %v3598 = vpow.pop %v3597
    %v3599 = vadd.f32 %v3596, 1.0
    %v3600 = vadd.f32 %v3598, 1.0
    %v3601 = vrcp.pop %v3599
    %v3602 = vmul.f32 1.0, %v3601
    %v3603 = vrcp.pop %v3600
    %v3604 = vmul.f32 1.0, %v3603
    %v3605 = vtanh.pop %v3589
    %v3606 = vxor.u32 %v3591, 2147483648
    %v3607 = vmul.f32 %v3606, 1.442695
    %v3608 = vpow.pop %v3607
    %v3609 = vadd.f32 %v3608, 1.0
    %v3610 = vrcp.pop %v3609
    %v3611 = vmul.f32 1.0, %v3610
    %v3612 = vmul.f32 %v3604, %v3131
    %v3613 = vmul.f32 %v3602, %v3605
    %v3614 = vadd.f32 %v3612, %v3613
    %v3615 = vtanh.pop %v3614
    %v3616 = vmul.f32 %v3611, %v3615
    %3617 = vmatprep.subr.mxu0 %v289
    %3618 = vmatpush1.msra.mxu0 %v288
    %3619 = vmatprep.subr.mxu0 %v293
    %3620 = vmatpush1.msra.mxu0 %v292
    %3621 = vmatprep.subr.mxu0 %v297
    %3622 = vmatpush1.msra.mxu0 %v296
    %3623 = vmatprep.subr.mxu0 %v301
    %3624 = vmatpush1.msra.mxu0 %v300
    %3625 = vmatprep.subr.mxu0 %v305
    %3626 = vmatpush1.msra.mxu0 %v304
    %3627 = vmatprep.subr.mxu0 %v309
    %3628 = vmatpush1.msra.mxu0 %v308
    %3629 = vmatprep.subr.mxu0 %v313
    %3630 = vmatpush1.msra.mxu0 %v312
    %3631 = vmatprep.subr.mxu0 %v317
    %3632 = vmatpush1.msra.mxu0 %v316
    %3633 = vmatprep.subr.mxu0 %v321
    %3634 = vmatpush1.msra.mxu0 %v320
    %3635 = vmatprep.subr.mxu0 %v325
    %3636 = vmatpush1.msra.mxu0 %v324
    %3637 = vmatprep.subr.mxu0 %v329
    %3638 = vmatpush1.msra.mxu0 %v328
    %3639 = vmatprep.subr.mxu0 %v333
    %3640 = vmatpush1.msra.mxu0 %v332
    %3641 = vmatprep.subr.mxu0 %v337
    %3642 = vmatpush1.msra.mxu0 %v336
    %3643 = vmatprep.subr.mxu0 %v341
    %3644 = vmatpush1.msra.mxu0 %v340
    %3645 = vmatprep.subr.mxu0 %v345
    %3646 = vmatpush1.msra.mxu0 %v344
    %3647 = vmatprep.subr.mxu0 %v349
    %3648 = vmatpush1.msra.mxu0 %v348
    %3649 = vmatprep.subr.mxu0 0.0
    %3650 = vmatpush1.msra.mxu0 0.0
    %3651 = vmatprep.subr.mxu0 0.0
    %3652 = vmatpush1.msra.mxu0 0.0
    %3653 = vmatprep.subr.mxu0 0.0
    %3654 = vmatpush1.msra.mxu0 0.0
    %3655 = vmatprep.subr.mxu0 0.0
    %3656 = vmatpush1.msra.mxu0 0.0
    %3657 = vmatprep.subr.mxu0 0.0
    %3658 = vmatpush1.msra.mxu0 0.0
    %3659 = vmatprep.subr.mxu0 0.0
    %3660 = vmatpush1.msra.mxu0 0.0
    %3661 = vmatprep.subr.mxu0 0.0
    %3662 = vmatpush1.msra.mxu0 0.0
    %3663 = vmatprep.subr.mxu0 0.0
    %3664 = vmatpush1.msra.mxu0 0.0
    %3665 = vmatprep.subr.mxu0 0.0
    %3666 = vmatpush1.msra.mxu0 0.0
    %3667 = vmatprep.subr.mxu0 0.0
    %3668 = vmatpush1.msra.mxu0 0.0
    %3669 = vmatprep.subr.mxu0 0.0
    %3670 = vmatpush1.msra.mxu0 0.0
    %3671 = vmatprep.subr.mxu0 0.0
    %3672 = vmatpush1.msra.mxu0 0.0
    %3673 = vmatprep.subr.mxu0 0.0
    %3674 = vmatpush1.msra.mxu0 0.0
    %3675 = vmatprep.subr.mxu0 0.0
    %3676 = vmatpush1.msra.mxu0 0.0
    %3677 = vmatprep.subr.mxu0 0.0
    %3678 = vmatpush1.msra.mxu0 0.0
    %3679 = vmatprep.subr.mxu0 0.0
    %3680 = vmatpush1.msra.mxu0 0.0
    %3681 = vmatprep.mubr.f32.mxu0 0.0
    %3682 = vmatmul.mubr.f32.gmra.mrb[0].mxu0 %v3445
    %v3683 = vpop.f32.mrb[0].mxu0
    %v3684 = vadd.f32 0.0, %v3683
    %v3685 = vpop.f32.mrb[0].mxu0
    %v3686 = vadd.f32 0.0, %v3685
    %3687 = vdwg.mxu0
    %3688 = vmatprep.subr.mxu0 %v291
    %3689 = vmatpush1.msra.mxu0 %v290
    %3690 = vmatprep.subr.mxu0 %v295
    %3691 = vmatpush1.msra.mxu0 %v294
    %3692 = vmatprep.subr.mxu0 %v299
    %3693 = vmatpush1.msra.mxu0 %v298
    %3694 = vmatprep.subr.mxu0 %v303
    %3695 = vmatpush1.msra.mxu0 %v302
    %3696 = vmatprep.subr.mxu0 %v307
    %3697 = vmatpush1.msra.mxu0 %v306
    %3698 = vmatprep.subr.mxu0 %v311
    %3699 = vmatpush1.msra.mxu0 %v310
    %3700 = vmatprep.subr.mxu0 %v315
    %3701 = vmatpush1.msra.mxu0 %v314
    %3702 = vmatprep.subr.mxu0 %v319
    %3703 = vmatpush1.msra.mxu0 %v318
    %3704 = vmatprep.subr.mxu0 %v323
    %3705 = vmatpush1.msra.mxu0 %v322
    %3706 = vmatprep.subr.mxu0 %v327
    %3707 = vmatpush1.msra.mxu0 %v326
    %3708 = vmatprep.subr.mxu0 %v331
    %3709 = vmatpush1.msra.mxu0 %v330
    %3710 = vmatprep.subr.mxu0 %v335
    %3711 = vmatpush1.msra.mxu0 %v334
    %3712 = vmatprep.subr.mxu0 %v339
    %3713 = vmatpush1.msra.mxu0 %v338
    %3714 = vmatprep.subr.mxu0 %v343
    %3715 = vmatpush1.msra.mxu0 %v342
    %3716 = vmatprep.subr.mxu0 %v347
    %3717 = vmatpush1.msra.mxu0 %v346
    %3718 = vmatprep.subr.mxu0 %v351
    %3719 = vmatpush1.msra.mxu0 %v350
    %3720 = vmatprep.subr.mxu0 0.0
    %3721 = vmatpush1.msra.mxu0 0.0
    %3722 = vmatprep.subr.mxu0 0.0
    %3723 = vmatpush1.msra.mxu0 0.0
    %3724 = vmatprep.subr.mxu0 0.0
    %3725 = vmatpush1.msra.mxu0 0.0
    %3726 = vmatprep.subr.mxu0 0.0
    %3727 = vmatpush1.msra.mxu0 0.0
    %3728 = vmatprep.subr.mxu0 0.0
    %3729 = vmatpush1.msra.mxu0 0.0
    %3730 = vmatprep.subr.mxu0 0.0
    %3731 = vmatpush1.msra.mxu0 0.0
    %3732 = vmatprep.subr.mxu0 0.0
    %3733 = vmatpush1.msra.mxu0 0.0
    %3734 = vmatprep.subr.mxu0 0.0
    %3735 = vmatpush1.msra.mxu0 0.0
    %3736 = vmatprep.subr.mxu0 0.0
    %3737 = vmatpush1.msra.mxu0 0.0
    %3738 = vmatprep.subr.mxu0 0.0
    %3739 = vmatpush1.msra.mxu0 0.0
    %3740 = vmatprep.subr.mxu0 0.0
    %3741 = vmatpush1.msra.mxu0 0.0
    %3742 = vmatprep.subr.mxu0 0.0
    %3743 = vmatpush1.msra.mxu0 0.0
    %3744 = vmatprep.subr.mxu0 0.0
    %3745 = vmatpush1.msra.mxu0 0.0
    %3746 = vmatprep.subr.mxu0 0.0
    %3747 = vmatpush1.msra.mxu0 0.0
    %3748 = vmatprep.subr.mxu0 0.0
    %3749 = vmatpush1.msra.mxu0 0.0
    %3750 = vmatprep.subr.mxu0 0.0
    %3751 = vmatpush1.msra.mxu0 0.0
    %3752 = vmatprep.mubr.f32.mxu0 0.0
    %3753 = vmatmul.mubr.f32.gmra.mrb[0].mxu0 %v3445
    %v3754 = vpop.f32.mrb[0].mxu0
    %v3755 = vadd.f32 0.0, %v3754
    %v3756 = vpop.f32.mrb[0].mxu0
    %v3757 = vadd.f32 0.0, %v3756
    %3758 = vdwg.mxu0
    %3759 = vmatprep.subr.mxu0 %v225
    %3760 = vmatpush1.msra.mxu0 %v224
    %3761 = vmatprep.subr.mxu0 %v229
    %3762 = vmatpush1.msra.mxu0 %v228
    %3763 = vmatprep.subr.mxu0 %v233
    %3764 = vmatpush1.msra.mxu0 %v232
    %3765 = vmatprep.subr.mxu0 %v237
    %3766 = vmatpush1.msra.mxu0 %v236
    %3767 = vmatprep.subr.mxu0 %v241
    %3768 = vmatpush1.msra.mxu0 %v240
    %3769 = vmatprep.subr.mxu0 %v245
    %3770 = vmatpush1.msra.mxu0 %v244
    %3771 = vmatprep.subr.mxu0 %v249
    %3772 = vmatpush1.msra.mxu0 %v248
    %3773 = vmatprep.subr.mxu0 %v253
    %3774 = vmatpush1.msra.mxu0 %v252
    %3775 = vmatprep.subr.mxu0 %v257
    %3776 = vmatpush1.msra.mxu0 %v256
    %3777 = vmatprep.subr.mxu0 %v261
    %3778 = vmatpush1.msra.mxu0 %v260
    %3779 = vmatprep.subr.mxu0 %v265
    %3780 = vmatpush1.msra.mxu0 %v264
    %3781 = vmatprep.subr.mxu0 %v269
    %3782 = vmatpush1.msra.mxu0 %v268
    %3783 = vmatprep.subr.mxu0 %v273
    %3784 = vmatpush1.msra.mxu0 %v272
    %3785 = vmatprep.subr.mxu0 %v277
    %3786 = vmatpush1.msra.mxu0 %v276
    %3787 = vmatprep.subr.mxu0 %v281
    %3788 = vmatpush1.msra.mxu0 %v280
    %3789 = vmatprep.subr.mxu0 %v285
    %3790 = vmatpush1.msra.mxu0 %v284
    %3791 = vmatprep.subr.mxu0 0.0
    %3792 = vmatpush1.msra.mxu0 0.0
    %3793 = vmatprep.subr.mxu0 0.0
    %3794 = vmatpush1.msra.mxu0 0.0
    %3795 = vmatprep.subr.mxu0 0.0
    %3796 = vmatpush1.msra.mxu0 0.0
    %3797 = vmatprep.subr.mxu0 0.0
    %3798 = vmatpush1.msra.mxu0 0.0
    %3799 = vmatprep.subr.mxu0 0.0
    %3800 = vmatpush1.msra.mxu0 0.0
    %3801 = vmatprep.subr.mxu0 0.0
    %3802 = vmatpush1.msra.mxu0 0.0
    %3803 = vmatprep.subr.mxu0 0.0
    %3804 = vmatpush1.msra.mxu0 0.0
    %3805 = vmatprep.subr.mxu0 0.0
    %3806 = vmatpush1.msra.mxu0 0.0
    %3807 = vmatprep.subr.mxu0 0.0
    %3808 = vmatpush1.msra.mxu0 0.0
    %3809 = vmatprep.subr.mxu0 0.0
    %3810 = vmatpush1.msra.mxu0 0.0
    %3811 = vmatprep.subr.mxu0 0.0
    %3812 = vmatpush1.msra.mxu0 0.0
    %3813 = vmatprep.subr.mxu0 0.0
    %3814 = vmatpush1.msra.mxu0 0.0
    %3815 = vmatprep.subr.mxu0 0.0
    %3816 = vmatpush1.msra.mxu0 0.0
    %3817 = vmatprep.subr.mxu0 0.0
    %3818 = vmatpush1.msra.mxu0 0.0
    %3819 = vmatprep.subr.mxu0 0.0
    %3820 = vmatpush1.msra.mxu0 0.0
    %3821 = vmatprep.subr.mxu0 0.0
    %3822 = vmatpush1.msra.mxu0 0.0
    %3823 = vmatprep.mubr.f32.mxu0 0.0
    %3824 = vmatmul.mubr.f32.gmra.mrb[0].mxu0 %v3133
    %v3825 = vpop.f32.mrb[0].mxu0
    %v3826 = vadd.f32 %v3684, %v3825
    %v3827 = vpop.f32.mrb[0].mxu0
    %v3828 = vadd.f32 %v3686, %v3827
    %3829 = vdwg.mxu0
    %3830 = vmatprep.subr.mxu0 %v227
    %3831 = vmatpush1.msra.mxu0 %v226
    %3832 = vmatprep.subr.mxu0 %v231
    %3833 = vmatpush1.msra.mxu0 %v230
    %3834 = vmatprep.subr.mxu0 %v235
    %3835 = vmatpush1.msra.mxu0 %v234
    %3836 = vmatprep.subr.mxu0 %v239
    %3837 = vmatpush1.msra.mxu0 %v238
    %3838 = vmatprep.subr.mxu0 %v243
    %3839 = vmatpush1.msra.mxu0 %v242
    %3840 = vmatprep.subr.mxu0 %v247
    %3841 = vmatpush1.msra.mxu0 %v246
    %3842 = vmatprep.subr.mxu0 %v251
    %3843 = vmatpush1.msra.mxu0 %v250
    %3844 = vmatprep.subr.mxu0 %v255
    %3845 = vmatpush1.msra.mxu0 %v254
    %3846 = vmatprep.subr.mxu0 %v259
    %3847 = vmatpush1.msra.mxu0 %v258
    %3848 = vmatprep.subr.mxu0 %v263
    %3849 = vmatpush1.msra.mxu0 %v262
    %3850 = vmatprep.subr.mxu0 %v267
    %3851 = vmatpush1.msra.mxu0 %v266
    %3852 = vmatprep.subr.mxu0 %v271
    %3853 = vmatpush1.msra.mxu0 %v270
    %3854 = vmatprep.subr.mxu0 %v275
    %3855 = vmatpush1.msra.mxu0 %v274
    %3856 = vmatprep.subr.mxu0 %v279
    %3857 = vmatpush1.msra.mxu0 %v278
    %3858 = vmatprep.subr.mxu0 %v283
    %3859 = vmatpush1.msra.mxu0 %v282
    %3860 = vmatprep.subr.mxu0 %v287
    %3861 = vmatpush1.msra.mxu0 %v286
    %3862 = vmatprep.subr.mxu0 0.0
    %3863 = vmatpush1.msra.mxu0 0.0
    %3864 = vmatprep.subr.mxu0 0.0
    %3865 = vmatpush1.msra.mxu0 0.0
    %3866 = vmatprep.subr.mxu0 0.0
    %3867 = vmatpush1.msra.mxu0 0.0
    %3868 = vmatprep.subr.mxu0 0.0
    %3869 = vmatpush1.msra.mxu0 0.0
    %3870 = vmatprep.subr.mxu0 0.0
    %3871 = vmatpush1.msra.mxu0 0.0
    %3872 = vmatprep.subr.mxu0 0.0
    %3873 = vmatpush1.msra.mxu0 0.0
    %3874 = vmatprep.subr.mxu0 0.0
    %3875 = vmatpush1.msra.mxu0 0.0
    %3876 = vmatprep.subr.mxu0 0.0
    %3877 = vmatpush1.msra.mxu0 0.0
    %3878 = vmatprep.subr.mxu0 0.0
    %3879 = vmatpush1.msra.mxu0 0.0
    %3880 = vmatprep.subr.mxu0 0.0
    %3881 = vmatpush1.msra.mxu0 0.0
    %3882 = vmatprep.subr.mxu0 0.0
    %3883 = vmatpush1.msra.mxu0 0.0
    %3884 = vmatprep.subr.mxu0 0.0
    %3885 = vmatpush1.msra.mxu0 0.0
    %3886 = vmatprep.subr.mxu0 0.0
    %3887 = vmatpush1.msra.mxu0 0.0
    %3888 = vmatprep.subr.mxu0 0.0
    %3889 = vmatpush1.msra.mxu0 0.0
    %3890 = vmatprep.subr.mxu0 0.0
    %3891 = vmatpush1.msra.mxu0 0.0
    %3892 = vmatprep.subr.mxu0 0.0
    %3893 = vmatpush1.msra.mxu0 0.0
    %3894 = vmatprep.mubr.f32.mxu0 0.0
    %3895 = vmatmul.mubr.f32.gmra.mrb[0].mxu0 %v3133
    %v3896 = vpop.f32.mrb[0].mxu0
    %v3897 = vadd.f32 %v3755, %v3896
    %v3898 = vpop.f32.mrb[0].mxu0
    %v3899 = vadd.f32 %v3757, %v3898
    %3900 = vdwg.mxu0
    %v3901 = vadd.f32 %v3826, %v986
    %v3902 = vadd.f32 %v3828, %v990
    %v3903 = vadd.f32 %v3897, %v994
    %v3904 = vadd.f32 %v3899, %v998
    %v3905 = vxor.u32 %v3901, 2147483648
    %v3906 = vxor.u32 %v3902, 2147483648
    %v3907 = vmul.f32 %v3905, 1.442695
    %v3908 = vpow.pop %v3907
    %v3909 = vmul.f32 %v3906, 1.442695
    %v3910 = vpow.pop %v3909
    %v3911 = vadd.f32 %v3908, 1.0
    %v3912 = vadd.f32 %v3910, 1.0
    %v3913 = vrcp.pop %v3911
    %v3914 = vmul.f32 1.0, %v3913
    %v3915 = vrcp.pop %v3912
    %v3916 = vmul.f32 1.0, %v3915
    %v3917 = vtanh.pop %v3903
    %v3918 = vxor.u32 %v3904, 2147483648
    %v3919 = vmul.f32 %v3918, 1.442695
    %v3920 = vpow.pop %v3919
    %v3921 = vadd.f32 %v3920, 1.0
    %v3922 = vrcp.pop %v3921
    %v3923 = vmul.f32 1.0, %v3922
    %v3924 = vmul.f32 %v3916, %v3443
    %v3925 = vmul.f32 %v3914, %v3917
    %v3926 = vadd.f32 %v3924, %v3925
    %v3927 = vtanh.pop %v3926
    %v3928 = vmul.f32 %v3923, %v3927
    %3929 = vmatprep.subr.mxu0 %v289
    %3930 = vmatpush1.msra.mxu0 %v288
    %3931 = vmatprep.subr.mxu0 %v293
    %3932 = vmatpush1.msra.mxu0 %v292
    %3933 = vmatprep.subr.mxu0 %v297
    %3934 = vmatpush1.msra.mxu0 %v296
    %3935 = vmatprep.subr.mxu0 %v301
    %3936 = vmatpush1.msra.mxu0 %v300
    %3937 = vmatprep.subr.mxu0 %v305
    %3938 = vmatpush1.msra.mxu0 %v304
    %3939 = vmatprep.subr.mxu0 %v309
    %3940 = vmatpush1.msra.mxu0 %v308
    %3941 = vmatprep.subr.mxu0 %v313
    %3942 = vmatpush1.msra.mxu0 %v312
    %3943 = vmatprep.subr.mxu0 %v317
    %3944 = vmatpush1.msra.mxu0 %v316
    %3945 = vmatprep.subr.mxu0 %v321
    %3946 = vmatpush1.msra.mxu0 %v320
    %3947 = vmatprep.subr.mxu0 %v325
    %3948 = vmatpush1.msra.mxu0 %v324
    %3949 = vmatprep.subr.mxu0 %v329
    %3950 = vmatpush1.msra.mxu0 %v328
    %3951 = vmatprep.subr.mxu0 %v333
    %3952 = vmatpush1.msra.mxu0 %v332
    %3953 = vmatprep.subr.mxu0 %v337
    %3954 = vmatpush1.msra.mxu0 %v336
    %3955 = vmatprep.subr.mxu0 %v341
    %3956 = vmatpush1.msra.mxu0 %v340
    %3957 = vmatprep.subr.mxu0 %v345
    %3958 = vmatpush1.msra.mxu0 %v344
    %3959 = vmatprep.subr.mxu0 %v349
    %3960 = vmatpush1.msra.mxu0 %v348
    %3961 = vmatprep.subr.mxu0 0.0
    %3962 = vmatpush1.msra.mxu0 0.0
    %3963 = vmatprep.subr.mxu0 0.0
    %3964 = vmatpush1.msra.mxu0 0.0
    %3965 = vmatprep.subr.mxu0 0.0
    %3966 = vmatpush1.msra.mxu0 0.0
    %3967 = vmatprep.subr.mxu0 0.0
    %3968 = vmatpush1.msra.mxu0 0.0
    %3969 = vmatprep.subr.mxu0 0.0
    %3970 = vmatpush1.msra.mxu0 0.0
    %3971 = vmatprep.subr.mxu0 0.0
    %3972 = vmatpush1.msra.mxu0 0.0
    %3973 = vmatprep.subr.mxu0 0.0
    %3974 = vmatpush1.msra.mxu0 0.0
    %3975 = vmatprep.subr.mxu0 0.0
    %3976 = vmatpush1.msra.mxu0 0.0
    %3977 = vmatprep.subr.mxu0 0.0
    %3978 = vmatpush1.msra.mxu0 0.0
    %3979 = vmatprep.subr.mxu0 0.0
    %3980 = vmatpush1.msra.mxu0 0.0
    %3981 = vmatprep.subr.mxu0 0.0
    %3982 = vmatpush1.msra.mxu0 0.0
    %3983 = vmatprep.subr.mxu0 0.0
    %3984 = vmatpush1.msra.mxu0 0.0
    %3985 = vmatprep.subr.mxu0 0.0
    %3986 = vmatpush1.msra.mxu0 0.0
    %3987 = vmatprep.subr.mxu0 0.0
    %3988 = vmatpush1.msra.mxu0 0.0
    %3989 = vmatprep.subr.mxu0 0.0
    %3990 = vmatpush1.msra.mxu0 0.0
    %3991 = vmatprep.subr.mxu0 0.0
    %3992 = vmatpush1.msra.mxu0 0.0
    %3993 = vmatprep.mubr.f32.mxu0 0.0
    %3994 = vmatmul.mubr.f32.gmra.mrb[0].mxu0 %v3928
    %v3995 = vpop.f32.mrb[0].mxu0
    %v3996 = vadd.f32 0.0, %v3995
    %v3997 = vpop.f32.mrb[0].mxu0
    %v3998 = vadd.f32 0.0, %v3997
    %3999 = vdwg.mxu0
    %4000 = vmatprep.subr.mxu0 %v291
    %4001 = vmatpush1.msra.mxu0 %v290
    %4002 = vmatprep.subr.mxu0 %v295
    %4003 = vmatpush1.msra.mxu0 %v294
    %4004 = vmatprep.subr.mxu0 %v299
    %4005 = vmatpush1.msra.mxu0 %v298
    %4006 = vmatprep.subr.mxu0 %v303
    %4007 = vmatpush1.msra.mxu0 %v302
    %4008 = vmatprep.subr.mxu0 %v307
    %4009 = vmatpush1.msra.mxu0 %v306
    %4010 = vmatprep.subr.mxu0 %v311
    %4011 = vmatpush1.msra.mxu0 %v310
    %4012 = vmatprep.subr.mxu0 %v315
    %4013 = vmatpush1.msra.mxu0 %v314
    %4014 = vmatprep.subr.mxu0 %v319
    %4015 = vmatpush1.msra.mxu0 %v318
    %4016 = vmatprep.subr.mxu0 %v323
    %4017 = vmatpush1.msra.mxu0 %v322
    %4018 = vmatprep.subr.mxu0 %v327
    %4019 = vmatpush1.msra.mxu0 %v326
    %4020 = vmatprep.subr.mxu0 %v331
    %4021 = vmatpush1.msra.mxu0 %v330
    %4022 = vmatprep.subr.mxu0 %v335
    %4023 = vmatpush1.msra.mxu0 %v334
    %4024 = vmatprep.subr.mxu0 %v339
    %4025 = vmatpush1.msra.mxu0 %v338
    %4026 = vmatprep.subr.mxu0 %v343
    %4027 = vmatpush1.msra.mxu0 %v342
    %4028 = vmatprep.subr.mxu0 %v347
    %4029 = vmatpush1.msra.mxu0 %v346
    %4030 = vmatprep.subr.mxu0 %v351
    %4031 = vmatpush1.msra.mxu0 %v350
    %4032 = vmatprep.subr.mxu0 0.0
    %4033 = vmatpush1.msra.mxu0 0.0
    %4034 = vmatprep.subr.mxu0 0.0
    %4035 = vmatpush1.msra.mxu0 0.0
    %4036 = vmatprep.subr.mxu0 0.0
    %4037 = vmatpush1.msra.mxu0 0.0
    %4038 = vmatprep.subr.mxu0 0.0
    %4039 = vmatpush1.msra.mxu0 0.0
    %4040 = vmatprep.subr.mxu0 0.0
    %4041 = vmatpush1.msra.mxu0 0.0
    %4042 = vmatprep.subr.mxu0 0.0
    %4043 = vmatpush1.msra.mxu0 0.0
    %4044 = vmatprep.subr.mxu0 0.0
    %4045 = vmatpush1.msra.mxu0 0.0
    %4046 = vmatprep.subr.mxu0 0.0
    %4047 = vmatpush1.msra.mxu0 0.0
    %4048 = vmatprep.subr.mxu0 0.0
    %4049 = vmatpush1.msra.mxu0 0.0
    %4050 = vmatprep.subr.mxu0 0.0
    %4051 = vmatpush1.msra.mxu0 0.0
    %4052 = vmatprep.subr.mxu0 0.0
    %4053 = vmatpush1.msra.mxu0 0.0
    %4054 = vmatprep.subr.mxu0 0.0
    %4055 = vmatpush1.msra.mxu0 0.0
    %4056 = vmatprep.subr.mxu0 0.0
    %4057 = vmatpush1.msra.mxu0 0.0
    %4058 = vmatprep.subr.mxu0 0.0
    %4059 = vmatpush1.msra.mxu0 0.0
    %4060 = vmatprep.subr.mxu0 0.0
    %4061 = vmatpush1.msra.mxu0 0.0
    %4062 = vmatprep.subr.mxu0 0.0
    %4063 = vmatpush1.msra.mxu0 0.0
    %4064 = vmatprep.mubr.f32.mxu0 0.0
    %4065 = vmatmul.mubr.f32.gmra.mrb[0].mxu0 %v3928
    %v4066 = vpop.f32.mrb[0].mxu0
    %v4067 = vadd.f32 0.0, %v4066
    %v4068 = vpop.f32.mrb[0].mxu0
    %v4069 = vadd.f32 0.0, %v4068
    %4070 = vdwg.mxu0
    %4071 = vmatprep.subr.mxu0 %v225
    %4072 = vmatpush1.msra.mxu0 %v224
    %4073 = vmatprep.subr.mxu0 %v229
    %4074 = vmatpush1.msra.mxu0 %v228
    %4075 = vmatprep.subr.mxu0 %v233
    %4076 = vmatpush1.msra.mxu0 %v232
    %4077 = vmatprep.subr.mxu0 %v237
    %4078 = vmatpush1.msra.mxu0 %v236
    %4079 = vmatprep.subr.mxu0 %v241
    %4080 = vmatpush1.msra.mxu0 %v240
    %4081 = vmatprep.subr.mxu0 %v245
    %4082 = vmatpush1.msra.mxu0 %v244
    %4083 = vmatprep.subr.mxu0 %v249
    %4084 = vmatpush1.msra.mxu0 %v248
    %4085 = vmatprep.subr.mxu0 %v253
    %4086 = vmatpush1.msra.mxu0 %v252
    %4087 = vmatprep.subr.mxu0 %v257
    %4088 = vmatpush1.msra.mxu0 %v256
    %4089 = vmatprep.subr.mxu0 %v261
    %4090 = vmatpush1.msra.mxu0 %v260
    %4091 = vmatprep.subr.mxu0 %v265
    %4092 = vmatpush1.msra.mxu0 %v264
    %4093 = vmatprep.subr.mxu0 %v269
    %4094 = vmatpush1.msra.mxu0 %v268
    %4095 = vmatprep.subr.mxu0 %v273
    %4096 = vmatpush1.msra.mxu0 %v272
    %4097 = vmatprep.subr.mxu0 %v277
    %4098 = vmatpush1.msra.mxu0 %v276
    %4099 = vmatprep.subr.mxu0 %v281
    %4100 = vmatpush1.msra.mxu0 %v280
    %4101 = vmatprep.subr.mxu0 %v285
    %4102 = vmatpush1.msra.mxu0 %v284
    %4103 = vmatprep.subr.mxu0 0.0
    %4104 = vmatpush1.msra.mxu0 0.0
    %4105 = vmatprep.subr.mxu0 0.0
    %4106 = vmatpush1.msra.mxu0 0.0
    %4107 = vmatprep.subr.mxu0 0.0
    %4108 = vmatpush1.msra.mxu0 0.0
    %4109 = vmatprep.subr.mxu0 0.0
    %4110 = vmatpush1.msra.mxu0 0.0
    %4111 = vmatprep.subr.mxu0 0.0
    %4112 = vmatpush1.msra.mxu0 0.0
    %4113 = vmatprep.subr.mxu0 0.0
    %4114 = vmatpush1.msra.mxu0 0.0
    %4115 = vmatprep.subr.mxu0 0.0
    %4116 = vmatpush1.msra.mxu0 0.0
    %4117 = vmatprep.subr.mxu0 0.0
    %4118 = vmatpush1.msra.mxu0 0.0
    %4119 = vmatprep.subr.mxu0 0.0
    %4120 = vmatpush1.msra.mxu0 0.0
    %4121 = vmatprep.subr.mxu0 0.0
    %4122 = vmatpush1.msra.mxu0 0.0
    %4123 = vmatprep.subr.mxu0 0.0
    %4124 = vmatpush1.msra.mxu0 0.0
    %4125 = vmatprep.subr.mxu0 0.0
    %4126 = vmatpush1.msra.mxu0 0.0
    %4127 = vmatprep.subr.mxu0 0.0
    %4128 = vmatpush1.msra.mxu0 0.0
    %4129 = vmatprep.subr.mxu0 0.0
    %4130 = vmatpush1.msra.mxu0 0.0
    %4131 = vmatprep.subr.mxu0 0.0
    %4132 = vmatpush1.msra.mxu0 0.0
    %4133 = vmatprep.subr.mxu0 0.0
    %4134 = vmatpush1.msra.mxu0 0.0
    %4135 = vmatprep.mubr.f32.mxu0 0.0
    %4136 = vmatmul.mubr.f32.gmra.mrb[0].mxu0 %v3616
    %v4137 = vpop.f32.mrb[0].mxu0
    %v4138 = vadd.f32 %v3996, %v4137
    %v4139 = vpop.f32.mrb[0].mxu0
    %v4140 = vadd.f32 %v3998, %v4139
    %4141 = vdwg.mxu0
    %4142 = vmatprep.subr.mxu0 %v227
    %4143 = vmatpush1.msra.mxu0 %v226
    %4144 = vmatprep.subr.mxu0 %v231
    %4145 = vmatpush1.msra.mxu0 %v230
    %4146 = vmatprep.subr.mxu0 %v235
    %4147 = vmatpush1.msra.mxu0 %v234
    %4148 = vmatprep.subr.mxu0 %v239
    %4149 = vmatpush1.msra.mxu0 %v238
    %4150 = vmatprep.subr.mxu0 %v243
    %4151 = vmatpush1.msra.mxu0 %v242
    %4152 = vmatprep.subr.mxu0 %v247
    %4153 = vmatpush1.msra.mxu0 %v246
    %4154 = vmatprep.subr.mxu0 %v251
    %4155 = vmatpush1.msra.mxu0 %v250
    %4156 = vmatprep.subr.mxu0 %v255
    %4157 = vmatpush1.msra.mxu0 %v254
    %4158 = vmatprep.subr.mxu0 %v259
    %4159 = vmatpush1.msra.mxu0 %v258
    %4160 = vmatprep.subr.mxu0 %v263
    %4161 = vmatpush1.msra.mxu0 %v262
    %4162 = vmatprep.subr.mxu0 %v267
    %4163 = vmatpush1.msra.mxu0 %v266
    %4164 = vmatprep.subr.mxu0 %v271
    %4165 = vmatpush1.msra.mxu0 %v270
    %4166 = vmatprep.subr.mxu0 %v275
    %4167 = vmatpush1.msra.mxu0 %v274
    %4168 = vmatprep.subr.mxu0 %v279
    %4169 = vmatpush1.msra.mxu0 %v278
    %4170 = vmatprep.subr.mxu0 %v283
    %4171 = vmatpush1.msra.mxu0 %v282
    %4172 = vmatprep.subr.mxu0 %v287
    %4173 = vmatpush1.msra.mxu0 %v286
    %4174 = vmatprep.subr.mxu0 0.0
    %4175 = vmatpush1.msra.mxu0 0.0
    %4176 = vmatprep.subr.mxu0 0.0
    %4177 = vmatpush1.msra.mxu0 0.0
    %4178 = vmatprep.subr.mxu0 0.0
    %4179 = vmatpush1.msra.mxu0 0.0
    %4180 = vmatprep.subr.mxu0 0.0
    %4181 = vmatpush1.msra.mxu0 0.0
    %4182 = vmatprep.subr.mxu0 0.0
    %4183 = vmatpush1.msra.mxu0 0.0
    %4184 = vmatprep.subr.mxu0 0.0
    %4185 = vmatpush1.msra.mxu0 0.0
    %4186 = vmatprep.subr.mxu0 0.0
    %4187 = vmatpush1.msra.mxu0 0.0
    %4188 = vmatprep.subr.mxu0 0.0
    %4189 = vmatpush1.msra.mxu0 0.0
    %4190 = vmatprep.subr.mxu0 0.0
    %4191 = vmatpush1.msra.mxu0 0.0
    %4192 = vmatprep.subr.mxu0 0.0
    %4193 = vmatpush1.msra.mxu0 0.0
    %4194 = vmatprep.subr.mxu0 0.0
    %4195 = vmatpush1.msra.mxu0 0.0
    %4196 = vmatprep.subr.mxu0 0.0
    %4197 = vmatpush1.msra.mxu0 0.0
    %4198 = vmatprep.subr.mxu0 0.0
    %4199 = vmatpush1.msra.mxu0 0.0
    %4200 = vmatprep.subr.mxu0 0.0
    %4201 = vmatpush1.msra.mxu0 0.0
    %4202 = vmatprep.subr.mxu0 0.0
    %4203 = vmatpush1.msra.mxu0 0.0
    %4204 = vmatprep.subr.mxu0 0.0
    %4205 = vmatpush1.msra.mxu0 0.0
    %4206 = vmatprep.mubr.f32.mxu0 0.0
    %4207 = vmatmul.mubr.f32.gmra.mrb[0].mxu0 %v3616
    %v4208 = vpop.f32.mrb[0].mxu0
    %v4209 = vadd.f32 %v4067, %v4208
    %v4210 = vpop.f32.mrb[0].mxu0
    %v4211 = vadd.f32 %v4069, %v4210
    %4212 = vdwg.mxu0
    %v4213 = vadd.f32 %v4138, %v986
    %v4214 = vadd.f32 %v4140, %v990
    %v4215 = vadd.f32 %v4209, %v994
    %v4216 = vadd.f32 %v4211, %v998
    %v4217 = vxor.u32 %v4213, 2147483648
    %v4218 = vxor.u32 %v4214, 2147483648
    %v4219 = vmul.f32 %v4217, 1.442695
    %v4220 = vpow.pop %v4219
    %v4221 = vmul.f32 %v4218, 1.442695
    %v4222 = vpow.pop %v4221
    %v4223 = vadd.f32 %v4220, 1.0
    %v4224 = vadd.f32 %v4222, 1.0
    %v4225 = vrcp.pop %v4223
    %v4226 = vmul.f32 1.0, %v4225
    %v4227 = vrcp.pop %v4224
    %v4228 = vmul.f32 1.0, %v4227
    %v4229 = vtanh.pop %v4215
    %v4230 = vxor.u32 %v4216, 2147483648
    %v4231 = vmul.f32 %v4230, 1.442695
    %v4232 = vpow.pop %v4231
    %v4233 = vadd.f32 %v4232, 1.0
    %v4234 = vrcp.pop %v4233
    %v4235 = vmul.f32 1.0, %v4234
    %v4236 = vmul.f32 %v4228, %v3926
    %v4237 = vmul.f32 %v4226, %v4229
    %v4238 = vadd.f32 %v4236, %v4237
    %v4239 = vtanh.pop %v4238
    %v4240 = vmul.f32 %v4235, %v4239
    %4241 = vst [vmem:[#allocation18] sm:$0xff] %v3616
    %4242 = vst [vmem:[#allocation20] sm:$0xff] %v3614
    %4243 = vst [vmem:[#allocation21] sm:$0xff] %v4240
    %4244 = vst [vmem:[#allocation23] sm:$0xff] %v4238
    %v4245 = vld [vmem:[#allocation10] sm:$0xff]
    %v4246 = vld [vmem:[#allocation10 + $0x8] sm:$0xff]
    %v4247 = vld [vmem:[#allocation10 + $0x10] sm:$0xff]
    %v4248 = vld [vmem:[#allocation10 + $0x18] sm:$0xff]
    %v4249 = vld [vmem:[#allocation10 + $0x20] sm:$0xff]
    %v4250 = vld [vmem:[#allocation10 + $0x28] sm:$0xff]
    %v4251 = vld [vmem:[#allocation10 + $0x30] sm:$0xff]
    %v4252 = vld [vmem:[#allocation10 + $0x38] sm:$0xff]
    %v4253 = vld [vmem:[#allocation10 + $0x40] sm:$0xff]
    %v4254 = vld [vmem:[#allocation10 + $0x48] sm:$0xff]
    %v4255 = vld [vmem:[#allocation10 + $0x50] sm:$0xff]
    %v4256 = vld [vmem:[#allocation10 + $0x58] sm:$0xff]
    %v4257 = vld [vmem:[#allocation10 + $0x60] sm:$0xff]
    %v4258 = vld [vmem:[#allocation10 + $0x68] sm:$0xff]
    %v4259 = vld [vmem:[#allocation10 + $0x70] sm:$0xff]
    %v4260 = vld [vmem:[#allocation10 + $0x78] sm:$0xff]
    %v4261 = vld [vmem:[%s6] sm:$0x1]
    %v4263 = vlaneseq
    %v4264 = vshrl.u32 %v4263, 7
    %v4265 = vsub.s32 0, %v4264
    %v4266 = vrot.slane %v4261, %v4265
    %4268 = vmatprep.subr.mxu0 0.0
    %4269 = vmatpush1.msra.mxu0 %v4245
    %4270 = vmatprep.subr.mxu0 0.0
    %4271 = vmatpush1.msra.mxu0 %v4246
    %4272 = vmatprep.subr.mxu0 0.0
    %4273 = vmatpush1.msra.mxu0 %v4247
    %4274 = vmatprep.subr.mxu0 0.0
    %4275 = vmatpush1.msra.mxu0 %v4248
    %4276 = vmatprep.subr.mxu0 0.0
    %4277 = vmatpush1.msra.mxu0 %v4249
    %4278 = vmatprep.subr.mxu0 0.0
    %4279 = vmatpush1.msra.mxu0 %v4250
    %4280 = vmatprep.subr.mxu0 0.0
    %4281 = vmatpush1.msra.mxu0 %v4251
    %4282 = vmatprep.subr.mxu0 0.0
    %4283 = vmatpush1.msra.mxu0 %v4252
    %4284 = vmatprep.subr.mxu0 0.0
    %4285 = vmatpush1.msra.mxu0 %v4253
    %4286 = vmatprep.subr.mxu0 0.0
    %4287 = vmatpush1.msra.mxu0 %v4254
    %4288 = vmatprep.subr.mxu0 0.0
    %4289 = vmatpush1.msra.mxu0 %v4255
    %4290 = vmatprep.subr.mxu0 0.0
    %4291 = vmatpush1.msra.mxu0 %v4256
    %4292 = vmatprep.subr.mxu0 0.0
    %4293 = vmatpush1.msra.mxu0 %v4257
    %4294 = vmatprep.subr.mxu0 0.0
    %4295 = vmatpush1.msra.mxu0 %v4258
    %4296 = vmatprep.subr.mxu0 0.0
    %4297 = vmatpush1.msra.mxu0 %v4259
    %4298 = vmatprep.subr.mxu0 0.0
    %4299 = vmatpush1.msra.mxu0 %v4260
    %4300 = vmatprep.subr.mxu0 0.0
    %4301 = vmatpush1.msra.mxu0 0.0
    %4302 = vmatprep.subr.mxu0 0.0
    %4303 = vmatpush1.msra.mxu0 0.0
    %4304 = vmatprep.subr.mxu0 0.0
    %4305 = vmatpush1.msra.mxu0 0.0
    %4306 = vmatprep.subr.mxu0 0.0
    %4307 = vmatpush1.msra.mxu0 0.0
    %4308 = vmatprep.subr.mxu0 0.0
    %4309 = vmatpush1.msra.mxu0 0.0
    %4310 = vmatprep.subr.mxu0 0.0
    %4311 = vmatpush1.msra.mxu0 0.0
    %4312 = vmatprep.subr.mxu0 0.0
    %4313 = vmatpush1.msra.mxu0 0.0
    %4314 = vmatprep.subr.mxu0 0.0
    %4315 = vmatpush1.msra.mxu0 0.0
    %4316 = vmatprep.subr.mxu0 0.0
    %4317 = vmatpush1.msra.mxu0 0.0
    %4318 = vmatprep.subr.mxu0 0.0
    %4319 = vmatpush1.msra.mxu0 0.0
    %4320 = vmatprep.subr.mxu0 0.0
    %4321 = vmatpush1.msra.mxu0 0.0
    %4322 = vmatprep.subr.mxu0 0.0
    %4323 = vmatpush1.msra.mxu0 0.0
    %4324 = vmatprep.subr.mxu0 0.0
    %4325 = vmatpush1.msra.mxu0 0.0
    %4326 = vmatprep.subr.mxu0 0.0
    %4327 = vmatpush1.msra.mxu0 0.0
    %4328 = vmatprep.subr.mxu0 0.0
    %4329 = vmatpush1.msra.mxu0 0.0
    %4330 = vmatprep.subr.mxu0 0.0
    %4331 = vmatpush1.msra.mxu0 0.0
    %4332 = vmatprep.mubr.f32.mxu0 0.0
    %4333 = vmatmul.mubr.f32.gmra.mrb[0].mxu0 %v4240
    %v4334 = vpop.f32.mrb[0].mxu0
    %v4335 = vadd.f32 %v4266, %v4334
    %v4336 = vpop.f32.mrb[0].mxu0
    %4337 = vdwg.mxu0
    %v4338 = vxor.u32 %v4335, 2147483648
    %v4339 = vmul.f32 %v4338, 1.442695
    %v4340 = vpow.pop %v4339
    %v4341 = vadd.f32 %v4340, 1.0
    %v4342 = vrcp.pop %v4341
    %v4343 = vmul.f32 1.0, %v4342
    %4344 = vst [vmem:[#allocation17] sm:$0xff] %v4343
    // Predicated region
    $region82: #{tpu_custom_call.1} parent=1 // pred_check
      _
    $region83: #{tpu_custom_call.1} parent=1 // pred_check_branch
      %4346 = sbr.rel (0) target = $region85
    $region84: #{tpu_custom_call.1} parent=1 // pred_region
      %s4348 = ssub.s32 128, 128
      %4349 = vsyncadd [#allocation4], %s4348
      %s4351 = sshll.u32 [#allocation17], 4
      %s4352 = int_to_ptr.vmem [resolvable:$true] %s4351
      %4354 = dma.vmem_to_hbm [thread:$0]  %s4352, 128, %s11, [#allocation4]
    $region85: #{tpu_custom_call.1} parent=1 // pred_fallthru
      _
    // Predicated region
    $region86: #{tpu_custom_call.1} parent=1 // pred_check
      _
    $region87: #{tpu_custom_call.1} parent=1 // pred_check_branch
      %4356 = sbr.rel (0) target = $region89
    $region88: #{tpu_custom_call.1} parent=1 // pred_region
      %s4358 = ssub.s32 128, 128
      %4359 = vsyncadd [#allocation19], %s4358
      %s4361 = sshll.u32 [#allocation18], 4
      %s4362 = int_to_ptr.vmem [resolvable:$true] %s4361
      %4364 = dma.vmem_to_hbm [thread:$0]  %s4362, 128, %s12, [#allocation19]
    $region89: #{tpu_custom_call.1} parent=1 // pred_fallthru
      _
    // Predicated region
    $region90: #{tpu_custom_call.1} parent=1 // pred_check
      _
    $region91: #{tpu_custom_call.1} parent=1 // pred_check_branch
      %4366 = sbr.rel (0) target = $region93
    $region92: #{tpu_custom_call.1} parent=1 // pred_region
      %s4368 = ssub.s32 128, 128
      %4369 = vsyncadd [#allocation19], %s4368
      %s4371 = sshll.u32 [#allocation20], 4
      %s4372 = int_to_ptr.vmem [resolvable:$true] %s4371
      %4374 = dma.vmem_to_hbm [thread:$0]  %s4372, 128, %s13, [#allocation19]
    $region93: #{tpu_custom_call.1} parent=1 // pred_fallthru
      _
    // Predicated region
    $region94: #{tpu_custom_call.1} parent=1 // pred_check
      _
    $region95: #{tpu_custom_call.1} parent=1 // pred_check_branch
      %4376 = sbr.rel (0) target = $region97
    $region96: #{tpu_custom_call.1} parent=1 // pred_region
      %s4378 = ssub.s32 128, 128
      %4379 = vsyncadd [#allocation22], %s4378
      %s4381 = sshll.u32 [#allocation21], 4
      %s4382 = int_to_ptr.vmem [resolvable:$true] %s4381
      %4384 = dma.vmem_to_hbm [thread:$0]  %s4382, 128, %s14, [#allocation22]
    $region97: #{tpu_custom_call.1} parent=1 // pred_fallthru
      _
    // Predicated region
    $region98: #{tpu_custom_call.1} parent=1 // pred_check
      _
    $region99: #{tpu_custom_call.1} parent=1 // pred_check_branch
      %4386 = sbr.rel (0) target = $region101
    $region100: #{tpu_custom_call.1} parent=1 // pred_region
      %s4388 = ssub.s32 128, 128
      %4389 = vsyncadd [#allocation22], %s4388
      %s4391 = sshll.u32 [#allocation23], 4
      %s4392 = int_to_ptr.vmem [resolvable:$true] %s4391
      %4394 = dma.vmem_to_hbm [thread:$0]  %s4392, 128, %s15, [#allocation22]
    $region101: #{tpu_custom_call.1} parent=1 // pred_fallthru
      _
    // Predicated region
    $region102: #{tpu_custom_call.1} parent=1 // pred_check
      _
    $region103: #{tpu_custom_call.1} parent=1 // pred_check_branch
      %4396 = sbr.rel (0) target = $region105
    $region104: #{tpu_custom_call.1} parent=1 // pred_region
      %4397 = dma.done [#allocation4], 128
    $region105: #{tpu_custom_call.1} parent=1 // pred_fallthru
      _
    // Predicated region
    $region106: #{tpu_custom_call.1} parent=1 // pred_check
      _
    $region107: #{tpu_custom_call.1} parent=1 // pred_check_branch
      %4399 = sbr.rel (0) target = $region109
    $region108: #{tpu_custom_call.1} parent=1 // pred_region
      %4400 = dma.done [#allocation19], 128
    $region109: #{tpu_custom_call.1} parent=1 // pred_fallthru
      _
    // Predicated region
    $region110: #{tpu_custom_call.1} parent=1 // pred_check
      _
    $region111: #{tpu_custom_call.1} parent=1 // pred_check_branch
      %4402 = sbr.rel (0) target = $region113
    $region112: #{tpu_custom_call.1} parent=1 // pred_region
      %4403 = dma.done [#allocation19], 128
    $region113: #{tpu_custom_call.1} parent=1 // pred_fallthru
      _
    // Predicated region
    $region114: #{tpu_custom_call.1} parent=1 // pred_check
      _
    $region115: #{tpu_custom_call.1} parent=1 // pred_check_branch
      %4405 = sbr.rel (0) target = $region117
    $region116: #{tpu_custom_call.1} parent=1 // pred_region
      %4406 = dma.done [#allocation22], 128
    $region117: #{tpu_custom_call.1} parent=1 // pred_fallthru
      _
    // Predicated region
    $region118: #{tpu_custom_call.1} parent=1 // pred_check
      _
    $region119: #{tpu_custom_call.1} parent=1 // pred_check_branch
      %4408 = sbr.rel (0) target = $region121
    $region120: #{tpu_custom_call.1} parent=1 // pred_region
      %4409 = dma.done [#allocation22], 128
    $region121: #{tpu_custom_call.1} parent=1 // pred_fallthru
      _
    %4410 = vsyncpa [#allocation3], 1
    %4411 = vsyncpa [#allocation6], 1
    %4412 = vsyncpa [#allocation9], 1
    %4413 = vsyncpa [#allocation12], 1
    %4414 = vsyncpa [#allocation15], 1
    %4415 = vsyncpa [#allocation4], 1
    %4416 = vsyncpa [#allocation19], 1
    %4417 = vsyncpa [#allocation22], 1

</llo_original>
